<compile_context>
chip_gen: v7x
topology: tpu7x:2x2x1
jax: 0.10.0
libtpu: 0.0.40
codegen_flags: <defaults>
</compile_context>

<pallas_src>
import functools
import math

import jax
import jax.numpy as jnp
from jax import lax
from jax.experimental import pallas as pl
from jax.experimental.pallas import tpu as pltpu


def _round_up(x, m):
    return ((x + m - 1) // m) * m


# --------------------------------------------------------------------------- #
# Pallas kernel
# --------------------------------------------------------------------------- #
def _dcn_scale_minmax_kernel(x2_ref, scale_ref, base_ref, w_ref, b_ref,
                             out_ref, col_ref, *,
                             C_in_pad, CC, H, W, bound_min, bound_max,
                             compute_dtype):
    """One grid step = (batch n, output-column tile pt).

    x2_ref    : (1, C_in_pad*H, W)     image, row index = c*H + h, col index = w
    scale_ref : (1, 2, TP)             raw conv_scale output (pre-hardtanh), f32
    base_ref  : (2, TP)                base sampling coords (out_y - pad, out_x - pad)
    w_ref     : (C_out, 2*9*C_in_pad)  [W_min | W_max], K index = k*C_in_pad + c
    b_ref     : (C_out, 1)             b_min + b_max
    out_ref   : (1, C_out, TP)
    col_ref   : (2*9*C_in_pad, TP)     VMEM deformable-im2col scratch (tap-major)
    """
    TP = out_ref.shape[-1]
    base_y = base_ref[0:1, :]                               # (1, TP) f32
    base_x = base_ref[1:2, :]
    raw = scale_ref[0]                                      # (2, TP) f32

    h_iota = lax.broadcasted_iota(jnp.int32, (H, TP), 0).astype(jnp.float32)
    w_iota = lax.broadcasted_iota(jnp.int32, (W, TP), 0).astype(jnp.float32)

    # ---- separable bilinear "hat" factors (3 rows + 3 cols per conv) -------- #
    # hat(a, s) = max(0, 1 - |a - s|): equals the per-corner bilinear weights and
    # is exactly 0 for every row/col outside [0, H)/[0, W)  (== CUDA validity).
    bounds = ((0.0, float(bound_min)), (float(bound_min), float(bound_max)))
    Ays = []   # Ays[conv][i] : (H, TP) f32
    Axs = []   # Axs[conv][j] : (W, TP) compute_dtype (MXU RHS)
    for conv_idx, (lo, hi) in enumerate(bounds):
        # hardtanh(s, lo, hi) - 1 ; anchor offsets are (i-1, j-1) * this.
        t = jnp.clip(raw[conv_idx:conv_idx + 1, :], lo, hi) - 1.0   # (1, TP)
        ay, ax = [], []
        for i in range(3):
            y = base_y + 1.0 if i == 1 else base_y + float(i) + float(i - 1) * t
            ay.append(jnp.maximum(0.0, 1.0 - jnp.abs(h_iota - y)))
        for j in range(3):
            x = base_x + 1.0 if j == 1 else base_x + float(j) + float(j - 1) * t
            ax.append(jnp.maximum(0.0, 1.0 - jnp.abs(w_iota - x))
                      .astype(compute_dtype))
        Ays.append(ay)
        Axs.append(ax)

    # ---- deformable im2col: channel-chunked column gather + row weighting --- #
    for c0 in range(0, C_in_pad, CC):
        cc = min(CC, C_in_pad - c0)
        xc = x2_ref[0, c0 * H:(c0 + cc) * H, :]             # (cc*H, W)
        for conv_idx in range(2):
            for j in range(3):
                # Column gather on the MXU: (cc*H, W) @ (W, TP) -> (cc*H, TP)
                U = jnp.dot(xc, Axs[conv_idx][j],
                            preferred_element_type=jnp.float32)
                U3 = U.reshape(cc, H, TP)
                for i in range(3):
                    # Row weighting + reduce over H -> (cc, TP)
                    colk = jnp.sum(U3 * Ays[conv_idx][i][None, :, :], axis=1)
                    # Tap-major, sublane-aligned slab of the im2col scratch.
                    r0 = (conv_idx * 9 + i * 3 + j) * C_in_pad + c0
                    col_ref[r0:r0 + cc, :] = colk.astype(col_ref.dtype)

    # Both deform convs + their biases in one stacked GEMM.
    out = jnp.dot(w_ref[...], col_ref[...],
                  preferred_element_type=jnp.float32)       # (C_out, TP)
    out_ref[0] = (out + b_ref[...]).astype(out_ref.dtype)


# --------------------------------------------------------------------------- #
# Host wrapper
# --------------------------------------------------------------------------- #
def deform_conv_scale_minmax_forward(x, w_scale, b_scale, w_min, b_min,
                                     w_max, b_max, *, bound_min=4.0,
                                     bound_max=8.0, tp=None,
                                     compute_dtype=jnp.float32):
    """Forward pass of DeformConvWithOffsetScaleBoundMinMax.

    x: (N, C_in, H, W); w_scale: (2, C_in, 3, 3); b_scale: (2,);
    w_min/w_max: (C_out, C_in, 3, 3); b_min/b_max: (C_out,).
    Returns (N, C_out, H, W).
    """
    N, C_in, H, W = x.shape
    C_out = w_min.shape[0]
    assert w_min.shape == (C_out, C_in, 3, 3) and w_max.shape == (C_out, C_in, 3, 3)
    Ho, Wo = H, W                       # 3x3, stride 1, pad 1, dilation 1
    P = Ho * Wo

    # conv_scale: plain 3x3 conv producing the two scale maps (hardtanh is fused
    # into the Pallas kernel).
    # TODO(synk): conv_scale (3x3 -> 2 ch) stays on XLA; it is negligible FLOPs
    # next to the deformable convs and fusing it would double kernel complexity.
    scale = lax.conv_general_dilated(
        x, w_scale, window_strides=(1, 1), padding=((1, 1), (1, 1)),
        dimension_numbers=("NCHW", "OIHW", "NCHW"))
    scale = scale + b_scale[None, :, None, None]

    # ---- generation-aware tiling -------------------------------------------- #
    try:
        vmem_cap = int(pltpu.get_tpu_info().vmem_capacity_bytes)
    except Exception:
        vmem_cap = 128 * 2**20
    try:
        kind = jax.devices()[0].device_kind.lower()
    except Exception:
        kind = ""
    small_vmem = ("v7" in kind) or (vmem_cap <= 96 * 2**20)   # v7x-class (64 MiB)

    if tp is not None:
        tp_target = tp
    elif small_vmem:
        tp_target = 256
    else:
        tp_target = 1024 if P >= 4096 else 512
    TP = _round_up(min(tp_target, P), 128)
    if small_vmem:
        # v7x has 2 TensorCores: make sure the ("parallel","parallel") grid has
        # at least 2 iterations so both cores get work for small N / small P.
        while N * pl.cdiv(P, TP) < 2 and TP > 128:
            TP = _round_up(max(128, TP // 2), 128)
    P_pad = _round_up(P, TP)
    pad = P_pad - P
    num_pt = P_pad // TP

    # Sublane alignment: pad channels to a multiple of 8 so every per-tap slab
    # write of the im2col scratch is a full-sublane, unmasked store (padded
    # channels are zero in x2 and in the stacked weights -> contribute nothing).
    C_in_pad = _round_up(C_in, 8)

    # Channel-chunk size: bound the (CC*H, TP) gather intermediate + (CC, H, TP)
    # weighting temp to a few MiB (v7x's 64 MiB VMEM), CC a multiple of 8.
    tmp_budget = (4 if small_vmem else 8) * 2**20
    cc_cap = max(8, (tmp_budget // max(1, H * TP * 4)) // 8 * 8)
    CC = int(min(C_in_pad, cc_cap))

    # ---- host-side layout plumbing (lane-dense DMA blocks) ------------------ #
    x_p = x if C_in_pad == C_in else jnp.pad(
        x, ((0, 0), (0, C_in_pad - C_in), (0, 0), (0, 0)))
    x2 = x_p.reshape(N, C_in_pad * H, W).astype(compute_dtype)
    scale2 = scale.reshape(N, 2, P).astype(jnp.float32)
    # base coords are a tiny (2, P_pad) f32 DMA; kept as an input (in-kernel
    # int div/mod reconstruction risks vector-divide lowering for no real gain).
    p_idx = jnp.arange(P, dtype=jnp.int32)
    base = jnp.stack([(p_idx // Wo).astype(jnp.float32) - 1.0,   # out_y*1 - pad
                      (p_idx % Wo).astype(jnp.float32) - 1.0],   # out_x*1 - pad
                     axis=0)                                      # (2, P)
    if pad:
        scale2 = jnp.pad(scale2, ((0, 0), (0, 0), (0, pad)))
        base = jnp.pad(base, ((0, 0), (0, pad)))

    # Weight K layout = k*C_in_pad + c (tap-major) so each tap writes a
    # contiguous row slab of the im2col scratch; stack [W_min | W_max].
    def _perm(wt):
        if C_in_pad != C_in:
            wt = jnp.pad(wt, ((0, 0), (0, C_in_pad - C_in), (0, 0), (0, 0)))
        return jnp.transpose(wt, (0, 2, 3, 1)).reshape(C_out, 9 * C_in_pad)
    w_stacked = jnp.concatenate([_perm(w_min), _perm(w_max)],
                                axis=1).astype(compute_dtype)
    b_sum = (b_min + b_max).reshape(C_out, 1).astype(jnp.float32)

    kernel = functools.partial(
        _dcn_scale_minmax_kernel, C_in_pad=C_in_pad, CC=CC, H=H, W=W,
        bound_min=float(bound_min), bound_max=float(bound_max),
        compute_dtype=compute_dtype)

    # ---- advisory cost estimate + explicit VMEM budget ---------------------- #
    dsize = jnp.dtype(compute_dtype).itemsize
    osize = jnp.dtype(x.dtype).itemsize
    flops = int(N * (2 * 3 * 2 * (C_in_pad * H) * W * P_pad      # 6 gather matmuls
                     + 2 * 9 * 2 * (C_in_pad * H) * P_pad        # row weight+reduce
                     + 2 * C_out * 18 * C_in_pad * P_pad))       # stacked GEMM
    bytes_accessed = int(N * C_in_pad * H * W * dsize            # x2 once per batch
                         + N * 2 * P_pad * 4 + 2 * P_pad * 4
                         + C_out * 18 * C_in_pad * dsize + C_out * 4
                         + N * C_out * P_pad * osize)
    in_block = (C_in_pad * H * W * dsize + 2 * TP * 4 + 2 * TP * 4
                + C_out * 18 * C_in_pad * dsize + C_out * 4)
    out_block = C_out * TP * osize
    col_bytes = 18 * C_in_pad * TP * dsize
    tmp_bytes = 2 * CC * H * TP * 4 + 12 * max(H, W) * TP * 4    # U, weight temp, factors
    est = 2 * in_block + 2 * out_block + col_bytes + tmp_bytes
    vmem_limit = int(max(32 * 2**20, min(int(0.85 * vmem_cap), int(1.5 * est))))

    # INVARIANT: grid = (N outer, pt inner) with constant index_maps for x2 / w /
    # b so the (largest) image block is DMA'd once per batch, not once per tile.
    out2 = pl.pallas_call(
        kernel,
        out_shape=jax.ShapeDtypeStruct((N, C_out, P_pad), x.dtype),
        grid_spec=pltpu.PrefetchScalarGridSpec(
            num_scalar_prefetch=0,
            grid=(N, num_pt),
            in_specs=[
                pl.BlockSpec((1, C_in_pad * H, W), lambda n, pt: (n, 0, 0)),
                pl.BlockSpec((1, 2, TP), lambda n, pt: (n, 0, pt)),
                pl.BlockSpec((2, TP), lambda n, pt: (0, pt)),
                pl.BlockSpec((C_out, 2 * 9 * C_in_pad), lambda n, pt: (0, 0)),
                pl.BlockSpec((C_out, 1), lambda n, pt: (0, 0)),
            ],
            out_specs=pl.BlockSpec((1, C_out, TP), lambda n, pt: (n, 0, pt)),
            scratch_shapes=[pltpu.VMEM((2 * 9 * C_in_pad, TP), compute_dtype)],
        ),
        compiler_params=pltpu.CompilerParams(
            dimension_semantics=("parallel", "parallel"),
            vmem_limit_bytes=vmem_limit),
        cost_estimate=pl.CostEstimate(flops=flops, transcendentals=0,
                                      bytes_accessed=bytes_accessed),
    )(x2, scale2, base, w_stacked, b_sum)

    return out2[:, :, :P].reshape(N, C_out, Ho, Wo)


# --------------------------------------------------------------------------- #
# Pure-JAX reference (same math as the CUDA DeformConvFunction forward)
# --------------------------------------------------------------------------- #
def _deform_conv_reference(data, offset, weight):
    """3x3 / stride 1 / pad 1 / dilation 1 / groups 1 / deformable_groups 1."""
    N, C_in, H, W = data.shape
    C_out = weight.shape[0]
    Ho, Wo = H, W
    oy = jnp.arange(Ho, dtype=jnp.float32)[:, None] - 1.0
    ox = jnp.arange(Wo, dtype=jnp.float32)[None, :] - 1.0
    n_idx = jnp.arange(N)[:, None, None]

    cols = []
    for c in range(C_in):
        per_k = []
        for k in range(9):
            i, j = k // 3, k % 3
            off_y = offset[:, 2 * k]
            off_x = offset[:, 2 * k + 1]
            y = oy[None] + i + off_y
            x = ox[None] + j + off_x
            y0 = jnp.floor(y)
            x0 = jnp.floor(x)
            ly, lx = y - y0, x - x0
            val = jnp.zeros_like(y)
            for (yn, xn, wgt) in ((y0, x0, (1 - ly) * (1 - lx)),
                                  (y0, x0 + 1, (1 - ly) * lx),
                                  (y0 + 1, x0, ly * (1 - lx)),
                                  (y0 + 1, x0 + 1, ly * lx)):
                valid = (yn >= 0) & (yn <= H - 1) & (xn >= 0) & (xn <= W - 1)
                yi = jnp.clip(yn, 0, H - 1).astype(jnp.int32)
                xi = jnp.clip(xn, 0, W - 1).astype(jnp.int32)
                v = data[:, c][n_idx, yi, xi]
                val = val + jnp.where(valid, wgt * v, 0.0)
            per_k.append(val)
        cols.append(jnp.stack(per_k, axis=1))                 # (N, 9, Ho, Wo)
    col = jnp.stack(cols, axis=1).reshape(N, C_in * 9, Ho * Wo)
    w2d = weight.reshape(C_out, C_in * 9)
    return jnp.einsum('ok,nkp->nop', w2d, col).reshape(N, C_out, Ho, Wo)


def reference_forward(x, w_scale, b_scale, w_min, b_min, w_max, b_max,
                      bound_min=4.0, bound_max=8.0):
    scale = lax.conv_general_dilated(
        x, w_scale, (1, 1), ((1, 1), (1, 1)),
        dimension_numbers=("NCHW", "OIHW", "NCHW")) + b_scale[None, :, None, None]
    s_min, s_max = scale[:, 0:1], scale[:, 1:2]
    anchor = jnp.array([-1, -1, -1, 0, -1, 1, 0, -1, 0, 0, 0, 1, 1, -1, 1, 0, 1, 1],
                       jnp.float32)[None, :, None, None]
    o_min = anchor * (jnp.clip(s_min, 0.0, bound_min) - 1.0)
    o_max = anchor * (jnp.clip(s_max, bound_min, bound_max) - 1.0)
    y_min = _deform_conv_reference(x, o_min, w_min) + b_min[None, :, None, None]
    y_max = _deform_conv_reference(x, o_max, w_max) + b_max[None, :, None, None]
    return y_min + y_max


# --------------------------------------------------------------------------- #
if __name__ == "__main__":
    key = jax.random.PRNGKey(0)
    N, C_in, C_out, H, W = 2, 4, 8, 16, 16
    bound_min, bound_max = 4.0, 8.0

    k1, k2, k3, k4, k5, k6 = jax.random.split(key, 6)
    x = jax.random.normal(k1, (N, C_in, H, W), jnp.float32)

    # conv_scale params.  The module zero-inits the weight (bias=1), which makes
    # every offset exactly 0; use small random weights + biases inside the two
    # hardtanh ranges so the fractional-offset (deformable) path is exercised.
    w_scale = 0.5 * jax.random.normal(k2, (2, C_in, 3, 3), jnp.float32)
    b_scale = jnp.array([2.0, 6.0], jnp.float32)

    # DeformConv params: uniform(-stdv, stdv), stdv = 1/sqrt(C_in*kh*kw), bias=True.
    stdv = 1.0 / math.sqrt(C_in * 3 * 3)
    w_min = jax.random.uniform(k3, (C_out, C_in, 3, 3), jnp.float32, -stdv, stdv)
    b_min = jax.random.uniform(k4, (C_out,), jnp.float32, -stdv, stdv)
    w_max = jax.random.uniform(k5, (C_out, C_in, 3, 3), jnp.float32, -stdv, stdv)
    b_max = jax.random.uniform(k6, (C_out,), jnp.float32, -stdv, stdv)

    out = deform_conv_scale_minmax_forward(
        x, w_scale, b_scale, w_min, b_min, w_max, b_max,
        bound_min=bound_min, bound_max=bound_max, tp=128)
    out = jax.block_until_ready(out)

    ref = reference_forward(x, w_scale, b_scale, w_min, b_min, w_max, b_max,
                            bound_min, bound_max)
    ref = jax.block_until_ready(ref)

    assert out.shape == (N, C_out, H, W)
    max_err = float(jnp.max(jnp.abs(out - ref)))
    assert max_err < 1e-3, f"mismatch vs reference: {max_err}"
    print("KERNEL_OK")
</pallas_src>

<mosaic_0001>
module attributes {stable_mosaic.version = 11 : i64} {
  func.func @_dcn_scale_minmax_kernel(%arg0: i32, %arg1: i32, %arg2: memref<1x128x16xf32, #tpu.memory_space<vmem>>, %arg3: memref<1x2x128xf32, #tpu.memory_space<vmem>>, %arg4: memref<2x128xf32, #tpu.memory_space<vmem>>, %arg5: memref<8x144xf32, #tpu.memory_space<vmem>>, %arg6: memref<8x1xf32, #tpu.memory_space<vmem>>, %arg7: memref<1x8x128xf32, #tpu.memory_space<vmem>>, %arg8: memref<144x128xf32, #tpu.memory_space<vmem>>) attributes {dimension_semantics = [#tpu.dimension_semantics<parallel>, #tpu.dimension_semantics<parallel>], iteration_bounds = array<i64: 2, 2>, scalar_prefetch = 0 : i64, scratch_operands = 1 : i64, tpu.core_type = #tpu.core_type<tc>, window_params = [{transform_indices = @transform_0, window_bounds = array<i64: 1, 128, 16>}, {transform_indices = @transform_1, window_bounds = array<i64: 1, 2, 128>}, {transform_indices = @transform_2, window_bounds = array<i64: 2, 128>}, {pipeline_mode = #tpu.pipeline_mode<synchronous>, transform_indices = @transform_3, window_bounds = array<i64: 8, 144>}, {pipeline_mode = #tpu.pipeline_mode<synchronous>, transform_indices = @transform_4, window_bounds = array<i64: 8, 1>}, {transform_indices = @transform_5, window_bounds = array<i64: 1, 8, 128>}]} {
    %c0 = arith.constant 0 : index
    %c0_0 = arith.constant 0 : index
    %0 = vector.load %arg4[%c0, %c0_0] : memref<2x128xf32, #tpu.memory_space<vmem>>, vector<1x128xf32>
    %c1 = arith.constant 1 : index
    %c0_1 = arith.constant 0 : index
    %1 = vector.load %arg4[%c1, %c0_1] : memref<2x128xf32, #tpu.memory_space<vmem>>, vector<1x128xf32>
    %c0_2 = arith.constant 0 : index
    %c0_3 = arith.constant 0 : index
    %c0_4 = arith.constant 0 : index
    %2 = vector.load %arg3[%c0_2, %c0_3, %c0_4] : memref<1x2x128xf32, #tpu.memory_space<vmem>>, vector<1x2x128xf32>
    %3 = vector.shape_cast %2 : vector<1x2x128xf32> to vector<2x128xf32>
    %4 = tpu.iota {dimensions = array<i32: 0>} : vector<16x128xi32>
    %5 = arith.sitofp %4 : vector<16x128xi32> to vector<16x128xf32>
    %6 = tpu.iota {dimensions = array<i32: 0>} : vector<16x128xi32>
    %7 = arith.sitofp %6 : vector<16x128xi32> to vector<16x128xf32>
    %8 = vector.extract_strided_slice %3 {offsets = [0, 0], sizes = [1, 128], strides = [1, 1]} : vector<2x128xf32> to vector<1x128xf32>
    %cst = arith.constant 0.000000e+00 : f32
    %cst_5 = arith.constant 4.000000e+00 : f32
    %9 = vector.broadcast %cst : f32 to vector<1x128xf32>
    %10 = arith.maximumf %9, %8 : vector<1x128xf32>
    %11 = vector.broadcast %cst_5 : f32 to vector<1x128xf32>
    %12 = arith.minimumf %11, %10 : vector<1x128xf32>
    %cst_6 = arith.constant 1.000000e+00 : f32
    %13 = vector.broadcast %cst_6 : f32 to vector<1x128xf32>
    %14 = arith.subf %12, %13 : vector<1x128xf32>
    %cst_7 = arith.constant 0.000000e+00 : f32
    %15 = vector.broadcast %cst_7 : f32 to vector<1x128xf32>
    %16 = arith.addf %0, %15 : vector<1x128xf32>
    %cst_8 = arith.constant -1.000000e+00 : f32
    %17 = vector.broadcast %cst_8 : f32 to vector<1x128xf32>
    %18 = arith.mulf %17, %14 : vector<1x128xf32>
    %19 = arith.addf %16, %18 : vector<1x128xf32>
    %20 = vector.broadcast %19 : vector<1x128xf32> to vector<16x128xf32>
    %21 = arith.subf %5, %20 : vector<16x128xf32>
    %22 = math.absf %21 : vector<16x128xf32>
    %cst_9 = arith.constant 1.000000e+00 : f32
    %23 = vector.broadcast %cst_9 : f32 to vector<16x128xf32>
    %24 = arith.subf %23, %22 : vector<16x128xf32>
    %cst_10 = arith.constant 0.000000e+00 : f32
    %25 = vector.broadcast %cst_10 : f32 to vector<16x128xf32>
    %26 = arith.maximumf %25, %24 : vector<16x128xf32>
    %cst_11 = arith.constant 1.000000e+00 : f32
    %27 = vector.broadcast %cst_11 : f32 to vector<1x128xf32>
    %28 = arith.addf %0, %27 : vector<1x128xf32>
    %29 = vector.broadcast %28 : vector<1x128xf32> to vector<16x128xf32>
    %30 = arith.subf %5, %29 : vector<16x128xf32>
    %31 = math.absf %30 : vector<16x128xf32>
    %cst_12 = arith.constant 1.000000e+00 : f32
    %32 = vector.broadcast %cst_12 : f32 to vector<16x128xf32>
    %33 = arith.subf %32, %31 : vector<16x128xf32>
    %cst_13 = arith.constant 0.000000e+00 : f32
    %34 = vector.broadcast %cst_13 : f32 to vector<16x128xf32>
    %35 = arith.maximumf %34, %33 : vector<16x128xf32>
    %cst_14 = arith.constant 2.000000e+00 : f32
    %36 = vector.broadcast %cst_14 : f32 to vector<1x128xf32>
    %37 = arith.addf %0, %36 : vector<1x128xf32>
    %cst_15 = arith.constant 1.000000e+00 : f32
    %38 = vector.broadcast %cst_15 : f32 to vector<1x128xf32>
    %39 = arith.mulf %38, %14 : vector<1x128xf32>
    %40 = arith.addf %37, %39 : vector<1x128xf32>
    %41 = vector.broadcast %40 : vector<1x128xf32> to vector<16x128xf32>
    %42 = arith.subf %5, %41 : vector<16x128xf32>
    %43 = math.absf %42 : vector<16x128xf32>
    %cst_16 = arith.constant 1.000000e+00 : f32
    %44 = vector.broadcast %cst_16 : f32 to vector<16x128xf32>
    %45 = arith.subf %44, %43 : vector<16x128xf32>
    %cst_17 = arith.constant 0.000000e+00 : f32
    %46 = vector.broadcast %cst_17 : f32 to vector<16x128xf32>
    %47 = arith.maximumf %46, %45 : vector<16x128xf32>
    %cst_18 = arith.constant 0.000000e+00 : f32
    %48 = vector.broadcast %cst_18 : f32 to vector<1x128xf32>
    %49 = arith.addf %1, %48 : vector<1x128xf32>
    %cst_19 = arith.constant -1.000000e+00 : f32
    %50 = vector.broadcast %cst_19 : f32 to vector<1x128xf32>
    %51 = arith.mulf %50, %14 : vector<1x128xf32>
    %52 = arith.addf %49, %51 : vector<1x128xf32>
    %53 = vector.broadcast %52 : vector<1x128xf32> to vector<16x128xf32>
    %54 = arith.subf %7, %53 : vector<16x128xf32>
    %55 = math.absf %54 : vector<16x128xf32>
    %cst_20 = arith.constant 1.000000e+00 : f32
    %56 = vector.broadcast %cst_20 : f32 to vector<16x128xf32>
    %57 = arith.subf %56, %55 : vector<16x128xf32>
    %cst_21 = arith.constant 0.000000e+00 : f32
    %58 = vector.broadcast %cst_21 : f32 to vector<16x128xf32>
    %59 = arith.maximumf %58, %57 : vector<16x128xf32>
    %cst_22 = arith.constant 1.000000e+00 : f32
    %60 = vector.broadcast %cst_22 : f32 to vector<1x128xf32>
    %61 = arith.addf %1, %60 : vector<1x128xf32>
    %62 = vector.broadcast %61 : vector<1x128xf32> to vector<16x128xf32>
    %63 = arith.subf %7, %62 : vector<16x128xf32>
    %64 = math.absf %63 : vector<16x128xf32>
    %cst_23 = arith.constant 1.000000e+00 : f32
    %65 = vector.broadcast %cst_23 : f32 to vector<16x128xf32>
    %66 = arith.subf %65, %64 : vector<16x128xf32>
    %cst_24 = arith.constant 0.000000e+00 : f32
    %67 = vector.broadcast %cst_24 : f32 to vector<16x128xf32>
    %68 = arith.maximumf %67, %66 : vector<16x128xf32>
    %cst_25 = arith.constant 2.000000e+00 : f32
    %69 = vector.broadcast %cst_25 : f32 to vector<1x128xf32>
    %70 = arith.addf %1, %69 : vector<1x128xf32>
    %cst_26 = arith.constant 1.000000e+00 : f32
    %71 = vector.broadcast %cst_26 : f32 to vector<1x128xf32>
    %72 = arith.mulf %71, %14 : vector<1x128xf32>
    %73 = arith.addf %70, %72 : vector<1x128xf32>
    %74 = vector.broadcast %73 : vector<1x128xf32> to vector<16x128xf32>
    %75 = arith.subf %7, %74 : vector<16x128xf32>
    %76 = math.absf %75 : vector<16x128xf32>
    %cst_27 = arith.constant 1.000000e+00 : f32
    %77 = vector.broadcast %cst_27 : f32 to vector<16x128xf32>
    %78 = arith.subf %77, %76 : vector<16x128xf32>
    %cst_28 = arith.constant 0.000000e+00 : f32
    %79 = vector.broadcast %cst_28 : f32 to vector<16x128xf32>
    %80 = arith.maximumf %79, %78 : vector<16x128xf32>
    %81 = vector.extract_strided_slice %3 {offsets = [1, 0], sizes = [1, 128], strides = [1, 1]} : vector<2x128xf32> to vector<1x128xf32>
    %cst_29 = arith.constant 4.000000e+00 : f32
    %cst_30 = arith.constant 8.000000e+00 : f32
    %82 = vector.broadcast %cst_29 : f32 to vector<1x128xf32>
    %83 = arith.maximumf %82, %81 : vector<1x128xf32>
    %84 = vector.broadcast %cst_30 : f32 to vector<1x128xf32>
    %85 = arith.minimumf %84, %83 : vector<1x128xf32>
    %cst_31 = arith.constant 1.000000e+00 : f32
    %86 = vector.broadcast %cst_31 : f32 to vector<1x128xf32>
    %87 = arith.subf %85, %86 : vector<1x128xf32>
    %cst_32 = arith.constant 0.000000e+00 : f32
    %88 = vector.broadcast %cst_32 : f32 to vector<1x128xf32>
    %89 = arith.addf %0, %88 : vector<1x128xf32>
    %cst_33 = arith.constant -1.000000e+00 : f32
    %90 = vector.broadcast %cst_33 : f32 to vector<1x128xf32>
    %91 = arith.mulf %90, %87 : vector<1x128xf32>
    %92 = arith.addf %89, %91 : vector<1x128xf32>
    %93 = vector.broadcast %92 : vector<1x128xf32> to vector<16x128xf32>
    %94 = arith.subf %5, %93 : vector<16x128xf32>
    %95 = math.absf %94 : vector<16x128xf32>
    %cst_34 = arith.constant 1.000000e+00 : f32
    %96 = vector.broadcast %cst_34 : f32 to vector<16x128xf32>
    %97 = arith.subf %96, %95 : vector<16x128xf32>
    %cst_35 = arith.constant 0.000000e+00 : f32
    %98 = vector.broadcast %cst_35 : f32 to vector<16x128xf32>
    %99 = arith.maximumf %98, %97 : vector<16x128xf32>
    %cst_36 = arith.constant 1.000000e+00 : f32
    %100 = vector.broadcast %cst_36 : f32 to vector<1x128xf32>
    %101 = arith.addf %0, %100 : vector<1x128xf32>
    %102 = vector.broadcast %101 : vector<1x128xf32> to vector<16x128xf32>
    %103 = arith.subf %5, %102 : vector<16x128xf32>
    %104 = math.absf %103 : vector<16x128xf32>
    %cst_37 = arith.constant 1.000000e+00 : f32
    %105 = vector.broadcast %cst_37 : f32 to vector<16x128xf32>
    %106 = arith.subf %105, %104 : vector<16x128xf32>
    %cst_38 = arith.constant 0.000000e+00 : f32
    %107 = vector.broadcast %cst_38 : f32 to vector<16x128xf32>
    %108 = arith.maximumf %107, %106 : vector<16x128xf32>
    %cst_39 = arith.constant 2.000000e+00 : f32
    %109 = vector.broadcast %cst_39 : f32 to vector<1x128xf32>
    %110 = arith.addf %0, %109 : vector<1x128xf32>
    %cst_40 = arith.constant 1.000000e+00 : f32
    %111 = vector.broadcast %cst_40 : f32 to vector<1x128xf32>
    %112 = arith.mulf %111, %87 : vector<1x128xf32>
    %113 = arith.addf %110, %112 : vector<1x128xf32>
    %114 = vector.broadcast %113 : vector<1x128xf32> to vector<16x128xf32>
    %115 = arith.subf %5, %114 : vector<16x128xf32>
    %116 = math.absf %115 : vector<16x128xf32>
    %cst_41 = arith.constant 1.000000e+00 : f32
    %117 = vector.broadcast %cst_41 : f32 to vector<16x128xf32>
    %118 = arith.subf %117, %116 : vector<16x128xf32>
    %cst_42 = arith.constant 0.000000e+00 : f32
    %119 = vector.broadcast %cst_42 : f32 to vector<16x128xf32>
    %120 = arith.maximumf %119, %118 : vector<16x128xf32>
    %cst_43 = arith.constant 0.000000e+00 : f32
    %121 = vector.broadcast %cst_43 : f32 to vector<1x128xf32>
    %122 = arith.addf %1, %121 : vector<1x128xf32>
    %cst_44 = arith.constant -1.000000e+00 : f32
    %123 = vector.broadcast %cst_44 : f32 to vector<1x128xf32>
    %124 = arith.mulf %123, %87 : vector<1x128xf32>
    %125 = arith.addf %122, %124 : vector<1x128xf32>
    %126 = vector.broadcast %125 : vector<1x128xf32> to vector<16x128xf32>
    %127 = arith.subf %7, %126 : vector<16x128xf32>
    %128 = math.absf %127 : vector<16x128xf32>
    %cst_45 = arith.constant 1.000000e+00 : f32
    %129 = vector.broadcast %cst_45 : f32 to vector<16x128xf32>
    %130 = arith.subf %129, %128 : vector<16x128xf32>
    %cst_46 = arith.constant 0.000000e+00 : f32
    %131 = vector.broadcast %cst_46 : f32 to vector<16x128xf32>
    %132 = arith.maximumf %131, %130 : vector<16x128xf32>
    %cst_47 = arith.constant 1.000000e+00 : f32
    %133 = vector.broadcast %cst_47 : f32 to vector<1x128xf32>
    %134 = arith.addf %1, %133 : vector<1x128xf32>
    %135 = vector.broadcast %134 : vector<1x128xf32> to vector<16x128xf32>
    %136 = arith.subf %7, %135 : vector<16x128xf32>
    %137 = math.absf %136 : vector<16x128xf32>
    %cst_48 = arith.constant 1.000000e+00 : f32
    %138 = vector.broadcast %cst_48 : f32 to vector<16x128xf32>
    %139 = arith.subf %138, %137 : vector<16x128xf32>
    %cst_49 = arith.constant 0.000000e+00 : f32
    %140 = vector.broadcast %cst_49 : f32 to vector<16x128xf32>
    %141 = arith.maximumf %140, %139 : vector<16x128xf32>
    %cst_50 = arith.constant 2.000000e+00 : f32
    %142 = vector.broadcast %cst_50 : f32 to vector<1x128xf32>
    %143 = arith.addf %1, %142 : vector<1x128xf32>
    %cst_51 = arith.constant 1.000000e+00 : f32
    %144 = vector.broadcast %cst_51 : f32 to vector<1x128xf32>
    %145 = arith.mulf %144, %87 : vector<1x128xf32>
    %146 = arith.addf %143, %145 : vector<1x128xf32>
    %147 = vector.broadcast %146 : vector<1x128xf32> to vector<16x128xf32>
    %148 = arith.subf %7, %147 : vector<16x128xf32>
    %149 = math.absf %148 : vector<16x128xf32>
    %cst_52 = arith.constant 1.000000e+00 : f32
    %150 = vector.broadcast %cst_52 : f32 to vector<16x128xf32>
    %151 = arith.subf %150, %149 : vector<16x128xf32>
    %cst_53 = arith.constant 0.000000e+00 : f32
    %152 = vector.broadcast %cst_53 : f32 to vector<16x128xf32>
    %153 = arith.maximumf %152, %151 : vector<16x128xf32>
    %c0_54 = arith.constant 0 : index
    %c0_55 = arith.constant 0 : index
    %c0_56 = arith.constant 0 : index
    %154 = vector.load %arg2[%c0_54, %c0_55, %c0_56] : memref<1x128x16xf32, #tpu.memory_space<vmem>>, vector<1x128x16xf32>
    %155 = vector.shape_cast %154 : vector<1x128x16xf32> to vector<128x16xf32>
    %cst_57 = arith.constant dense<0.000000e+00> : vector<128x128xf32>
    %156 = tpu.matmul %155, %59, %cst_57 {dimension_numbers = #tpu.dot_dimension_numbers<[1], [0], [0], [1], [0, 0, 1, 1], [], []>} : vector<128x16xf32>, vector<16x128xf32>, vector<128x128xf32> -> vector<128x128xf32>
    %157 = vector.shape_cast %156 : vector<128x128xf32> to vector<8x16x128xf32>
    %158 = vector.shape_cast %26 : vector<16x128xf32> to vector<1x16x128xf32>
    %159 = vector.broadcast %158 : vector<1x16x128xf32> to vector<8x16x128xf32>
    %160 = arith.mulf %157, %159 : vector<8x16x128xf32>
    %cst_58 = arith.constant dense<0.000000e+00> : vector<8x128xf32>
    %161 = vector.multi_reduction <add>, %160, %cst_58 [1] : vector<8x16x128xf32> to vector<8x128xf32>
    %c0_59 = arith.constant 0 : index
    %c0_60 = arith.constant 0 : index
    %162 = vector.load %arg8[%c0_59, %c0_60] : memref<144x128xf32, #tpu.memory_space<vmem>>, vector<8x128xf32>
    tpu.vector_store %arg8[%c0_59, %c0_60], %161 {strides = array<i32>} : memref<144x128xf32, #tpu.memory_space<vmem>>, vector<8x128xf32>,
    %163 = vector.shape_cast %35 : vector<16x128xf32> to vector<1x16x128xf32>
    %164 = vector.broadcast %163 : vector<1x16x128xf32> to vector<8x16x128xf32>
    %165 = arith.mulf %157, %164 : vector<8x16x128xf32>
    %cst_61 = arith.constant dense<0.000000e+00> : vector<8x128xf32>
    %166 = vector.multi_reduction <add>, %165, %cst_61 [1] : vector<8x16x128xf32> to vector<8x128xf32>
    %c24 = arith.constant 24 : index
    %c0_62 = arith.constant 0 : index
    %167 = vector.load %arg8[%c24, %c0_62] : memref<144x128xf32, #tpu.memory_space<vmem>>, vector<8x128xf32>
    tpu.vector_store %arg8[%c24, %c0_62], %166 {strides = array<i32>} : memref<144x128xf32, #tpu.memory_space<vmem>>, vector<8x128xf32>,
    %168 = vector.shape_cast %47 : vector<16x128xf32> to vector<1x16x128xf32>
    %169 = vector.broadcast %168 : vector<1x16x128xf32> to vector<8x16x128xf32>
    %170 = arith.mulf %157, %169 : vector<8x16x128xf32>
    %cst_63 = arith.constant dense<0.000000e+00> : vector<8x128xf32>
    %171 = vector.multi_reduction <add>, %170, %cst_63 [1] : vector<8x16x128xf32> to vector<8x128xf32>
    %c48 = arith.constant 48 : index
    %c0_64 = arith.constant 0 : index
    %172 = vector.load %arg8[%c48, %c0_64] : memref<144x128xf32, #tpu.memory_space<vmem>>, vector<8x128xf32>
    tpu.vector_store %arg8[%c48, %c0_64], %171 {strides = array<i32>} : memref<144x128xf32, #tpu.memory_space<vmem>>, vector<8x128xf32>,
    %cst_65 = arith.constant dense<0.000000e+00> : vector<128x128xf32>
    %173 = tpu.matmul %155, %68, %cst_65 {dimension_numbers = #tpu.dot_dimension_numbers<[1], [0], [0], [1], [0, 0, 1, 1], [], []>} : vector<128x16xf32>, vector<16x128xf32>, vector<128x128xf32> -> vector<128x128xf32>
    %174 = vector.shape_cast %173 : vector<128x128xf32> to vector<8x16x128xf32>
    %175 = vector.shape_cast %26 : vector<16x128xf32> to vector<1x16x128xf32>
    %176 = vector.broadcast %175 : vector<1x16x128xf32> to vector<8x16x128xf32>
    %177 = arith.mulf %174, %176 : vector<8x16x128xf32>
    %cst_66 = arith.constant dense<0.000000e+00> : vector<8x128xf32>
    %178 = vector.multi_reduction <add>, %177, %cst_66 [1] : vector<8x16x128xf32> to vector<8x128xf32>
    %c8 = arith.constant 8 : index
    %c0_67 = arith.constant 0 : index
    %179 = vector.load %arg8[%c8, %c0_67] : memref<144x128xf32, #tpu.memory_space<vmem>>, vector<8x128xf32>
    tpu.vector_store %arg8[%c8, %c0_67], %178 {strides = array<i32>} : memref<144x128xf32, #tpu.memory_space<vmem>>, vector<8x128xf32>,
    %180 = vector.shape_cast %35 : vector<16x128xf32> to vector<1x16x128xf32>
    %181 = vector.broadcast %180 : vector<1x16x128xf32> to vector<8x16x128xf32>
    %182 = arith.mulf %174, %181 : vector<8x16x128xf32>
    %cst_68 = arith.constant dense<0.000000e+00> : vector<8x128xf32>
    %183 = vector.multi_reduction <add>, %182, %cst_68 [1] : vector<8x16x128xf32> to vector<8x128xf32>
    %c32 = arith.constant 32 : index
    %c0_69 = arith.constant 0 : index
    %184 = vector.load %arg8[%c32, %c0_69] : memref<144x128xf32, #tpu.memory_space<vmem>>, vector<8x128xf32>
    tpu.vector_store %arg8[%c32, %c0_69], %183 {strides = array<i32>} : memref<144x128xf32, #tpu.memory_space<vmem>>, vector<8x128xf32>,
    %185 = vector.shape_cast %47 : vector<16x128xf32> to vector<1x16x128xf32>
    %186 = vector.broadcast %185 : vector<1x16x128xf32> to vector<8x16x128xf32>
    %187 = arith.mulf %174, %186 : vector<8x16x128xf32>
    %cst_70 = arith.constant dense<0.000000e+00> : vector<8x128xf32>
    %188 = vector.multi_reduction <add>, %187, %cst_70 [1] : vector<8x16x128xf32> to vector<8x128xf32>
    %c56 = arith.constant 56 : index
    %c0_71 = arith.constant 0 : index
    %189 = vector.load %arg8[%c56, %c0_71] : memref<144x128xf32, #tpu.memory_space<vmem>>, vector<8x128xf32>
    tpu.vector_store %arg8[%c56, %c0_71], %188 {strides = array<i32>} : memref<144x128xf32, #tpu.memory_space<vmem>>, vector<8x128xf32>,
    %cst_72 = arith.constant dense<0.000000e+00> : vector<128x128xf32>
    %190 = tpu.matmul %155, %80, %cst_72 {dimension_numbers = #tpu.dot_dimension_numbers<[1], [0], [0], [1], [0, 0, 1, 1], [], []>} : vector<128x16xf32>, vector<16x128xf32>, vector<128x128xf32> -> vector<128x128xf32>
    %191 = vector.shape_cast %190 : vector<128x128xf32> to vector<8x16x128xf32>
    %192 = vector.shape_cast %26 : vector<16x128xf32> to vector<1x16x128xf32>
    %193 = vector.broadcast %192 : vector<1x16x128xf32> to vector<8x16x128xf32>
    %194 = arith.mulf %191, %193 : vector<8x16x128xf32>
    %cst_73 = arith.constant dense<0.000000e+00> : vector<8x128xf32>
    %195 = vector.multi_reduction <add>, %194, %cst_73 [1] : vector<8x16x128xf32> to vector<8x128xf32>
    %c16 = arith.constant 16 : index
    %c0_74 = arith.constant 0 : index
    %196 = vector.load %arg8[%c16, %c0_74] : memref<144x128xf32, #tpu.memory_space<vmem>>, vector<8x128xf32>
    tpu.vector_store %arg8[%c16, %c0_74], %195 {strides = array<i32>} : memref<144x128xf32, #tpu.memory_space<vmem>>, vector<8x128xf32>,
    %197 = vector.shape_cast %35 : vector<16x128xf32> to vector<1x16x128xf32>
    %198 = vector.broadcast %197 : vector<1x16x128xf32> to vector<8x16x128xf32>
    %199 = arith.mulf %191, %198 : vector<8x16x128xf32>
    %cst_75 = arith.constant dense<0.000000e+00> : vector<8x128xf32>
    %200 = vector.multi_reduction <add>, %199, %cst_75 [1] : vector<8x16x128xf32> to vector<8x128xf32>
    %c40 = arith.constant 40 : index
    %c0_76 = arith.constant 0 : index
    %201 = vector.load %arg8[%c40, %c0_76] : memref<144x128xf32, #tpu.memory_space<vmem>>, vector<8x128xf32>
    tpu.vector_store %arg8[%c40, %c0_76], %200 {strides = array<i32>} : memref<144x128xf32, #tpu.memory_space<vmem>>, vector<8x128xf32>,
    %202 = vector.shape_cast %47 : vector<16x128xf32> to vector<1x16x128xf32>
    %203 = vector.broadcast %202 : vector<1x16x128xf32> to vector<8x16x128xf32>
    %204 = arith.mulf %191, %203 : vector<8x16x128xf32>
    %cst_77 = arith.constant dense<0.000000e+00> : vector<8x128xf32>
    %205 = vector.multi_reduction <add>, %204, %cst_77 [1] : vector<8x16x128xf32> to vector<8x128xf32>
    %c64 = arith.constant 64 : index
    %c0_78 = arith.constant 0 : index
    %206 = vector.load %arg8[%c64, %c0_78] : memref<144x128xf32, #tpu.memory_space<vmem>>, vector<8x128xf32>
    tpu.vector_store %arg8[%c64, %c0_78], %205 {strides = array<i32>} : memref<144x128xf32, #tpu.memory_space<vmem>>, vector<8x128xf32>,
    %cst_79 = arith.constant dense<0.000000e+00> : vector<128x128xf32>
    %207 = tpu.matmul %155, %132, %cst_79 {dimension_numbers = #tpu.dot_dimension_numbers<[1], [0], [0], [1], [0, 0, 1, 1], [], []>} : vector<128x16xf32>, vector<16x128xf32>, vector<128x128xf32> -> vector<128x128xf32>
    %208 = vector.shape_cast %207 : vector<128x128xf32> to vector<8x16x128xf32>
    %209 = vector.shape_cast %99 : vector<16x128xf32> to vector<1x16x128xf32>
    %210 = vector.broadcast %209 : vector<1x16x128xf32> to vector<8x16x128xf32>
    %211 = arith.mulf %208, %210 : vector<8x16x128xf32>
    %cst_80 = arith.constant dense<0.000000e+00> : vector<8x128xf32>
    %212 = vector.multi_reduction <add>, %211, %cst_80 [1] : vector<8x16x128xf32> to vector<8x128xf32>
    %c72 = arith.constant 72 : index
    %c0_81 = arith.constant 0 : index
    %213 = vector.load %arg8[%c72, %c0_81] : memref<144x128xf32, #tpu.memory_space<vmem>>, vector<8x128xf32>
    tpu.vector_store %arg8[%c72, %c0_81], %212 {strides = array<i32>} : memref<144x128xf32, #tpu.memory_space<vmem>>, vector<8x128xf32>,
    %214 = vector.shape_cast %108 : vector<16x128xf32> to vector<1x16x128xf32>
    %215 = vector.broadcast %214 : vector<1x16x128xf32> to vector<8x16x128xf32>
    %216 = arith.mulf %208, %215 : vector<8x16x128xf32>
    %cst_82 = arith.constant dense<0.000000e+00> : vector<8x128xf32>
    %217 = vector.multi_reduction <add>, %216, %cst_82 [1] : vector<8x16x128xf32> to vector<8x128xf32>
    %c96 = arith.constant 96 : index
    %c0_83 = arith.constant 0 : index
    %218 = vector.load %arg8[%c96, %c0_83] : memref<144x128xf32, #tpu.memory_space<vmem>>, vector<8x128xf32>
    tpu.vector_store %arg8[%c96, %c0_83], %217 {strides = array<i32>} : memref<144x128xf32, #tpu.memory_space<vmem>>, vector<8x128xf32>,
    %219 = vector.shape_cast %120 : vector<16x128xf32> to vector<1x16x128xf32>
    %220 = vector.broadcast %219 : vector<1x16x128xf32> to vector<8x16x128xf32>
    %221 = arith.mulf %208, %220 : vector<8x16x128xf32>
    %cst_84 = arith.constant dense<0.000000e+00> : vector<8x128xf32>
    %222 = vector.multi_reduction <add>, %221, %cst_84 [1] : vector<8x16x128xf32> to vector<8x128xf32>
    %c120 = arith.constant 120 : index
    %c0_85 = arith.constant 0 : index
    %223 = vector.load %arg8[%c120, %c0_85] : memref<144x128xf32, #tpu.memory_space<vmem>>, vector<8x128xf32>
    tpu.vector_store %arg8[%c120, %c0_85], %222 {strides = array<i32>} : memref<144x128xf32, #tpu.memory_space<vmem>>, vector<8x128xf32>,
    %cst_86 = arith.constant dense<0.000000e+00> : vector<128x128xf32>
    %224 = tpu.matmul %155, %141, %cst_86 {dimension_numbers = #tpu.dot_dimension_numbers<[1], [0], [0], [1], [0, 0, 1, 1], [], []>} : vector<128x16xf32>, vector<16x128xf32>, vector<128x128xf32> -> vector<128x128xf32>
    %225 = vector.shape_cast %224 : vector<128x128xf32> to vector<8x16x128xf32>
    %226 = vector.shape_cast %99 : vector<16x128xf32> to vector<1x16x128xf32>
    %227 = vector.broadcast %226 : vector<1x16x128xf32> to vector<8x16x128xf32>
    %228 = arith.mulf %225, %227 : vector<8x16x128xf32>
    %cst_87 = arith.constant dense<0.000000e+00> : vector<8x128xf32>
    %229 = vector.multi_reduction <add>, %228, %cst_87 [1] : vector<8x16x128xf32> to vector<8x128xf32>
    %c80 = arith.constant 80 : index
    %c0_88 = arith.constant 0 : index
    %230 = vector.load %arg8[%c80, %c0_88] : memref<144x128xf32, #tpu.memory_space<vmem>>, vector<8x128xf32>
    tpu.vector_store %arg8[%c80, %c0_88], %229 {strides = array<i32>} : memref<144x128xf32, #tpu.memory_space<vmem>>, vector<8x128xf32>,
    %231 = vector.shape_cast %108 : vector<16x128xf32> to vector<1x16x128xf32>
    %232 = vector.broadcast %231 : vector<1x16x128xf32> to vector<8x16x128xf32>
    %233 = arith.mulf %225, %232 : vector<8x16x128xf32>
    %cst_89 = arith.constant dense<0.000000e+00> : vector<8x128xf32>
    %234 = vector.multi_reduction <add>, %233, %cst_89 [1] : vector<8x16x128xf32> to vector<8x128xf32>
    %c104 = arith.constant 104 : index
    %c0_90 = arith.constant 0 : index
    %235 = vector.load %arg8[%c104, %c0_90] : memref<144x128xf32, #tpu.memory_space<vmem>>, vector<8x128xf32>
    tpu.vector_store %arg8[%c104, %c0_90], %234 {strides = array<i32>} : memref<144x128xf32, #tpu.memory_space<vmem>>, vector<8x128xf32>,
    %236 = vector.shape_cast %120 : vector<16x128xf32> to vector<1x16x128xf32>
    %237 = vector.broadcast %236 : vector<1x16x128xf32> to vector<8x16x128xf32>
    %238 = arith.mulf %225, %237 : vector<8x16x128xf32>
    %cst_91 = arith.constant dense<0.000000e+00> : vector<8x128xf32>
    %239 = vector.multi_reduction <add>, %238, %cst_91 [1] : vector<8x16x128xf32> to vector<8x128xf32>
    %c128 = arith.constant 128 : index
    %c0_92 = arith.constant 0 : index
    %240 = vector.load %arg8[%c128, %c0_92] : memref<144x128xf32, #tpu.memory_space<vmem>>, vector<8x128xf32>
    tpu.vector_store %arg8[%c128, %c0_92], %239 {strides = array<i32>} : memref<144x128xf32, #tpu.memory_space<vmem>>, vector<8x128xf32>,
    %cst_93 = arith.constant dense<0.000000e+00> : vector<128x128xf32>
    %241 = tpu.matmul %155, %153, %cst_93 {dimension_numbers = #tpu.dot_dimension_numbers<[1], [0], [0], [1], [0, 0, 1, 1], [], []>} : vector<128x16xf32>, vector<16x128xf32>, vector<128x128xf32> -> vector<128x128xf32>
    %242 = vector.shape_cast %241 : vector<128x128xf32> to vector<8x16x128xf32>
    %243 = vector.shape_cast %99 : vector<16x128xf32> to vector<1x16x128xf32>
    %244 = vector.broadcast %243 : vector<1x16x128xf32> to vector<8x16x128xf32>
    %245 = arith.mulf %242, %244 : vector<8x16x128xf32>
    %cst_94 = arith.constant dense<0.000000e+00> : vector<8x128xf32>
    %246 = vector.multi_reduction <add>, %245, %cst_94 [1] : vector<8x16x128xf32> to vector<8x128xf32>
    %c88 = arith.constant 88 : index
    %c0_95 = arith.constant 0 : index
    %247 = vector.load %arg8[%c88, %c0_95] : memref<144x128xf32, #tpu.memory_space<vmem>>, vector<8x128xf32>
    tpu.vector_store %arg8[%c88, %c0_95], %246 {strides = array<i32>} : memref<144x128xf32, #tpu.memory_space<vmem>>, vector<8x128xf32>,
    %248 = vector.shape_cast %108 : vector<16x128xf32> to vector<1x16x128xf32>
    %249 = vector.broadcast %248 : vector<1x16x128xf32> to vector<8x16x128xf32>
    %250 = arith.mulf %242, %249 : vector<8x16x128xf32>
    %cst_96 = arith.constant dense<0.000000e+00> : vector<8x128xf32>
    %251 = vector.multi_reduction <add>, %250, %cst_96 [1] : vector<8x16x128xf32> to vector<8x128xf32>
    %c112 = arith.constant 112 : index
    %c0_97 = arith.constant 0 : index
    %252 = vector.load %arg8[%c112, %c0_97] : memref<144x128xf32, #tpu.memory_space<vmem>>, vector<8x128xf32>
    tpu.vector_store %arg8[%c112, %c0_97], %251 {strides = array<i32>} : memref<144x128xf32, #tpu.memory_space<vmem>>, vector<8x128xf32>,
    %253 = vector.shape_cast %120 : vector<16x128xf32> to vector<1x16x128xf32>
    %254 = vector.broadcast %253 : vector<1x16x128xf32> to vector<8x16x128xf32>
    %255 = arith.mulf %242, %254 : vector<8x16x128xf32>
    %cst_98 = arith.constant dense<0.000000e+00> : vector<8x128xf32>
    %256 = vector.multi_reduction <add>, %255, %cst_98 [1] : vector<8x16x128xf32> to vector<8x128xf32>
    %c136 = arith.constant 136 : index
    %c0_99 = arith.constant 0 : index
    %257 = vector.load %arg8[%c136, %c0_99] : memref<144x128xf32, #tpu.memory_space<vmem>>, vector<8x128xf32>
    tpu.vector_store %arg8[%c136, %c0_99], %256 {strides = array<i32>} : memref<144x128xf32, #tpu.memory_space<vmem>>, vector<8x128xf32>,
    %c0_100 = arith.constant 0 : index
    %c0_101 = arith.constant 0 : index
    %258 = vector.load %arg5[%c0_100, %c0_101] : memref<8x144xf32, #tpu.memory_space<vmem>>, vector<8x144xf32>
    %c0_102 = arith.constant 0 : index
    %c0_103 = arith.constant 0 : index
    %259 = vector.load %arg8[%c0_102, %c0_103] : memref<144x128xf32, #tpu.memory_space<vmem>>, vector<144x128xf32>
    %cst_104 = arith.constant dense<0.000000e+00> : vector<8x128xf32>
    %260 = tpu.matmul %258, %259, %cst_104 {dimension_numbers = #tpu.dot_dimension_numbers<[1], [0], [0], [1], [0, 0, 1, 1], [], []>} : vector<8x144xf32>, vector<144x128xf32>, vector<8x128xf32> -> vector<8x128xf32>
    %c0_105 = arith.constant 0 : index
    %c0_106 = arith.constant 0 : index
    %261 = vector.load %arg6[%c0_105, %c0_106] : memref<8x1xf32, #tpu.memory_space<vmem>>, vector<8x1xf32>
    %262 = vector.broadcast %261 : vector<8x1xf32> to vector<8x128xf32>
    %263 = arith.addf %260, %262 : vector<8x128xf32>
    %c0_107 = arith.constant 0 : index
    %c0_108 = arith.constant 0 : index
    %c0_109 = arith.constant 0 : index
    %264 = vector.load %arg7[%c0_107, %c0_108, %c0_109] : memref<1x8x128xf32, #tpu.memory_space<vmem>>, vector<1x8x128xf32>
    %265 = vector.shape_cast %264 : vector<1x8x128xf32> to vector<8x128xf32>
    %266 = vector.shape_cast %263 : vector<8x128xf32> to vector<1x8x128xf32>
    tpu.vector_store %arg7[%c0_107, %c0_108, %c0_109], %266 {strides = array<i32>} : memref<1x8x128xf32, #tpu.memory_space<vmem>>, vector<1x8x128xf32>,
    return
  }
  func.func @transform_0(%arg0: i32, %arg1: i32) -> (i32, i32, i32) {
    %c0_i32 = arith.constant 0 : i32
    %c0_i32_0 = arith.constant 0 : i32
    %c0_i32_1 = arith.constant 0 : i32
    return %arg0, %c0_i32, %c0_i32_0 : i32, i32, i32
  }
  func.func @transform_1(%arg0: i32, %arg1: i32) -> (i32, i32, i32) {
    %c0_i32 = arith.constant 0 : i32
    %c0_i32_0 = arith.constant 0 : i32
    return %arg0, %c0_i32, %arg1 : i32, i32, i32
  }
  func.func @transform_2(%arg0: i32, %arg1: i32) -> (i32, i32) {
    %c0_i32 = arith.constant 0 : i32
    %c0_i32_0 = arith.constant 0 : i32
    return %c0_i32, %arg1 : i32, i32
  }
  func.func @transform_3(%arg0: i32, %arg1: i32) -> (i32, i32) {
    %c0_i32 = arith.constant 0 : i32
    %c0_i32_0 = arith.constant 0 : i32
    %c0_i32_1 = arith.constant 0 : i32
    return %c0_i32, %c0_i32_0 : i32, i32
  }
  func.func @transform_4(%arg0: i32, %arg1: i32) -> (i32, i32) {
    %c0_i32 = arith.constant 0 : i32
    %c0_i32_0 = arith.constant 0 : i32
    %c0_i32_1 = arith.constant 0 : i32
    return %c0_i32, %c0_i32_0 : i32, i32
  }
  func.func @transform_5(%arg0: i32, %arg1: i32) -> (i32, i32, i32) {
    %c0_i32 = arith.constant 0 : i32
    %c0_i32_0 = arith.constant 0 : i32
    return %arg0, %c0_i32, %arg1 : i32, i32, i32
  }
}

</mosaic_0001>

<llo_original>
// kernel: tpu_custom_call.1
$region0: #{tpu_custom_call.1}
  #allocation0 [shape = 'u32[]', space=smem, size = 0x4, offset = 0x4, fixed_abs, tag = 'smem constant byte address 0x4 - core index']
  #allocation1 [shape = 'u32[144,128]{1,0:T(1,128)}', space=vmem, size = 0x12000, scoped, tag = 'internal scratch']
  #allocation2 [shape = 'f32[144,128]{1,0:T(8,128)}', space=vmem, size = 0x12000, scoped, tag = 'scratch operand']
  %s0 = inlined_call_operand.vmem [shape: f32[2,128,16], index: 0, kind: input, shape index: {}]
  %s1 = inlined_call_operand.vmem [shape: f32[2,2,256], index: 1, kind: input, shape index: {}]
  %s2 = inlined_call_operand.vmem [shape: f32[2,256], index: 2, kind: input, shape index: {}]
  %s3 = inlined_call_operand.vmem [shape: f32[8,144], index: 3, kind: input, shape index: {}]
  %s4 = inlined_call_operand.vmem [shape: f32[8,1], index: 4, kind: input, shape index: {}]
  %s5 = inlined_call_operand.hbm [shape: f32[2,8,256], index: 5, kind: output, shape index: {}]
  %s6 = sld [smem:[#allocation0]]
  $region53: #{tpu_custom_call.1} parent=0
    _
  %s8 = ssub.s32 1, %s6
  %s9 = scalar_select 0, %s8, %s6
  $region1: #{tpu_custom_call.1} parent=0
    #allocation3 [shape = 'u8[8192]{0}', space=vmem, size = 0x2000, scoped, tag = 'output window, operand 0']
    #allocation4 [shape = 's32[2]{0}', space=sflag, size = 0x8, scoped, tag = 'scoped memory for tpu_custom_call.1']
    %10 = vsyncpa [#allocation4], 0
    %s11 = scalar_lea.sflag [#allocation4], 1
    %12 = vsyncpa %s11, 0
    loop: start=0, step=1, limit=6
    $region2: #{tpu_custom_call.1} parent=1 // loop_pre_header
      _
    $region3: #{tpu_custom_call.1} parent=1 // loop_header
      %s14 = sphi 0, %s18
      %p15 = scmp.ge.s32.totalorder %s14, 6
      %s21 = sphi 0, %s33
      %s22 = sphi 0, %s29
      %s23 = sphi 0, %s21
      %s24 = sphi 0, %s22
      %s25 = sphi 0, %s23
      %s26 = sphi 0, %s24
      %s36 = sphi 0, %s38
      %s39 = sphi 0, %s36
      %s40 = sphi 0, %s39
      %s56 = sphi 0, %s40
      %s64 = sphi 0, %s66
      %s67 = sphi 0, %s64
      %s68 = sphi 0, %s67
      %s84 = sphi 0, %s68
      %s90 = sphi 0, %s92
      %s93 = sphi 0, %s90
      %s94 = sphi 0, %s93
      %s110 = sphi 0, %s94
      %s114 = sphi 0, %s114
      %s116 = sphi 0, %s114
      %s117 = sphi 0, %s116
      %s131 = sphi 0, %s117
      %s135 = sphi 0, %s135
      %s137 = sphi 0, %s135
      %s138 = sphi 0, %s137
      %s152 = sphi 0, %s138
      %s160 = sphi 0, %s162
      %s163 = sphi 0, %s160
      %s164 = sphi 0, %s163
      %s180 = sphi 0, %s164
    $region4: #{tpu_custom_call.1} parent=1 // loop_header_branch
      %17 = sbr.rel (%p15) target = $region8
    $region5: #{tpu_custom_call.1} parent=1 // loop_body
      %s19 = ssub.s32 %s14, 1
      %s20 = ssub.s32 %s14, 2
      %s27 = sadd.s32 1, %s22
      %p28 = scmp.ge.s32.totalorder %s27, 2
      %s29 = scalar_select %p28, 0, %s27
      %s30 = sadd.s32 1, %s21
      %s31 = scalar_select %p28, %s30, %s21
      %p32 = scmp.ge.s32.totalorder %s31, 2
      %s33 = scalar_select %p32, 0, %s31
      %s34 = ssub.s32 %s21, %s33
      %p35 = scmp.eq.s32.totalorder %s34, 0
      %s37 = sadd.s32 %s36, 1
      %s38 = scalar_select %p35, %s36, %s37
      %p41 = pneg %p35
      %p42 = scmp.eq.s32.totalorder %s14, 3
      %p43 = por %p41, %p42
      %p44 = scmp.ne.s32.totalorder %s36, %s39
      %p45 = scmp.eq.s32.totalorder %s14, 0
      %p46 = por %p44, %p45
      %p47 = scmp.ne.s32.totalorder %s36, %s39
      %p48 = scmp.eq.s32.totalorder %s19, 3
      %p49 = por %p47, %p48
      %p50 = scmp.ne.s32.totalorder %s39, %s40
      %p51 = scmp.eq.s32.totalorder %s19, 0
      %p52 = por %p50, %p51
      %p53 = scmp.ne.s32.totalorder %s39, %s40
      %p54 = scmp.eq.s32.totalorder %s20, 3
      %p55 = por %p53, %p54
      %p57 = scmp.ne.s32.totalorder %s40, %s56
      %p58 = scmp.eq.s32.totalorder %s20, 0
      %p59 = por %p57, %p58
      %s60 = ssub.s32 %s21, %s33
      %s61 = ssub.s32 %s22, %s29
      %s62 = sor.u32 %s60, %s61
      %p63 = scmp.eq.s32.totalorder %s62, 0
      %s65 = sadd.s32 %s64, 1
      %s66 = scalar_select %p63, %s64, %s65
      %p69 = pneg %p63
      %p70 = scmp.eq.s32.totalorder %s14, 3
      %p71 = por %p69, %p70
      %p72 = scmp.ne.s32.totalorder %s64, %s67
      %p73 = scmp.eq.s32.totalorder %s14, 0
      %p74 = por %p72, %p73
      %p75 = scmp.ne.s32.totalorder %s64, %s67
      %p76 = scmp.eq.s32.totalorder %s19, 3
      %p77 = por %p75, %p76
      %p78 = scmp.ne.s32.totalorder %s67, %s68
      %p79 = scmp.eq.s32.totalorder %s19, 0
      %p80 = por %p78, %p79
      %p81 = scmp.ne.s32.totalorder %s67, %s68
      %p82 = scmp.eq.s32.totalorder %s20, 3
      %p83 = por %p81, %p82
      %p85 = scmp.ne.s32.totalorder %s68, %s84
      %p86 = scmp.eq.s32.totalorder %s20, 0
      %p87 = por %p85, %p86
      %s88 = ssub.s32 %s22, %s29
      %p89 = scmp.eq.s32.totalorder %s88, 0
      %s91 = sadd.s32 %s90, 1
      %s92 = scalar_select %p89, %s90, %s91
      %p95 = pneg %p89
      %p96 = scmp.eq.s32.totalorder %s14, 3
      %p97 = por %p95, %p96
      %p98 = scmp.ne.s32.totalorder %s90, %s93
      %p99 = scmp.eq.s32.totalorder %s14, 0
      %p100 = por %p98, %p99
      %p101 = scmp.ne.s32.totalorder %s90, %s93
      %p102 = scmp.eq.s32.totalorder %s19, 3
      %p103 = por %p101, %p102
      %p104 = scmp.ne.s32.totalorder %s93, %s94
      %p105 = scmp.eq.s32.totalorder %s19, 0
      %p106 = por %p104, %p105
      %p107 = scmp.ne.s32.totalorder %s93, %s94
      %p108 = scmp.eq.s32.totalorder %s20, 3
      %p109 = por %p107, %p108
      %p111 = scmp.ne.s32.totalorder %s94, %s110
      %p112 = scmp.eq.s32.totalorder %s20, 0
      %p113 = por %p111, %p112
      %s115 = sadd.s32 %s114, 1
      %p118 = scmp.eq.s32.totalorder %s14, 3
      %p119 = scmp.ne.s32.totalorder %s114, %s116
      %p120 = scmp.eq.s32.totalorder %s14, 0
      %p121 = por %p119, %p120
      %p122 = scmp.ne.s32.totalorder %s114, %s116
      %p123 = scmp.eq.s32.totalorder %s19, 3
      %p124 = por %p122, %p123
      %p125 = scmp.ne.s32.totalorder %s116, %s117
      %p126 = scmp.eq.s32.totalorder %s19, 0
      %p127 = por %p125, %p126
      %p128 = scmp.ne.s32.totalorder %s116, %s117
      %p129 = scmp.eq.s32.totalorder %s20, 3
      %p130 = por %p128, %p129
      %p132 = scmp.ne.s32.totalorder %s117, %s131
      %p133 = scmp.eq.s32.totalorder %s20, 0
      %p134 = por %p132, %p133
      %s136 = sadd.s32 %s135, 1
      %p139 = scmp.eq.s32.totalorder %s14, 3
      %p140 = scmp.ne.s32.totalorder %s135, %s137
      %p141 = scmp.eq.s32.totalorder %s14, 0
      %p142 = por %p140, %p141
      %p143 = scmp.ne.s32.totalorder %s135, %s137
      %p144 = scmp.eq.s32.totalorder %s19, 3
      %p145 = por %p143, %p144
      %p146 = scmp.ne.s32.totalorder %s137, %s138
      %p147 = scmp.eq.s32.totalorder %s19, 0
      %p148 = por %p146, %p147
      %p149 = scmp.ne.s32.totalorder %s137, %s138
      %p150 = scmp.eq.s32.totalorder %s20, 3
      %p151 = por %p149, %p150
      %p153 = scmp.ne.s32.totalorder %s138, %s152
      %p154 = scmp.eq.s32.totalorder %s20, 0
      %p155 = por %p153, %p154
      %s156 = ssub.s32 %s21, %s33
      %s157 = ssub.s32 %s22, %s29
      %s158 = sor.u32 %s156, %s157
      %p159 = scmp.eq.s32.totalorder %s158, 0
      %s161 = sadd.s32 %s160, 1
      %s162 = scalar_select %p159, %s160, %s161
      %p165 = pneg %p159
      %p166 = scmp.eq.s32.totalorder %s14, 3
      %p167 = por %p165, %p166
      %p168 = scmp.ne.s32.totalorder %s160, %s163
      %p169 = scmp.eq.s32.totalorder %s14, 0
      %p170 = por %p168, %p169
      %p171 = scmp.ne.s32.totalorder %s160, %s163
      %p172 = scmp.eq.s32.totalorder %s19, 3
      %p173 = por %p171, %p172
      %p174 = scmp.ne.s32.totalorder %s163, %s164
      %p175 = scmp.eq.s32.totalorder %s19, 0
      %p176 = por %p174, %p175
      %p177 = scmp.ne.s32.totalorder %s163, %s164
      %p178 = scmp.eq.s32.totalorder %s20, 3
      %p179 = por %p177, %p178
      %p181 = scmp.ne.s32.totalorder %s164, %s180
      %p182 = scmp.eq.s32.totalorder %s20, 0
      %p183 = por %p181, %p182
      %p184 = scmp.le.s32.totalorder 1, %s14
      %p185 = scmp.lt.s32.totalorder %s14, 5
      %p186 = pnand %p184, %p185
      %p187 = pneg %p186
      // Predicated region
      $region9: #{tpu_custom_call.1} parent=5 // pred_check
        _
      $region10: #{tpu_custom_call.1} parent=5 // pred_check_branch
        %189 = sbr.rel (%p186) target = $region12
      $region11: #{tpu_custom_call.1} parent=5 // pred_region
        %s190 = ssub.s32 %s14, 1
        // Predicated region
        $region13: #{tpu_custom_call.1} parent=11 // pred_check
          %p191 = pneg %p127
        $region14: #{tpu_custom_call.1} parent=11 // pred_check_branch
          %193 = sbr.rel (%p191) target = $region16
        $region15: #{tpu_custom_call.1} parent=11 // pred_region
          _
        $region16: #{tpu_custom_call.1} parent=11 // pred_fallthru
          _
        // Predicated region
        $region17: #{tpu_custom_call.1} parent=11 // pred_check
          %p194 = pneg %p148
        $region18: #{tpu_custom_call.1} parent=11 // pred_check_branch
          %196 = sbr.rel (%p194) target = $region20
        $region19: #{tpu_custom_call.1} parent=11 // pred_region
          _
        $region20: #{tpu_custom_call.1} parent=11 // pred_fallthru
          _
      $region12: #{tpu_custom_call.1} parent=5 // pred_fallthru
        _
      %p197 = scmp.lt.s32.totalorder %s14, 4
      // Predicated region
      $region21: #{tpu_custom_call.1} parent=5 // pred_check
        %p198 = pneg %p197
      $region22: #{tpu_custom_call.1} parent=5 // pred_check_branch
        %200 = sbr.rel (%p198) target = $region24
      $region23: #{tpu_custom_call.1} parent=5 // pred_region
        // Predicated region
        $region25: #{tpu_custom_call.1} parent=23 // pred_check
          %p201 = pneg %p46
        $region26: #{tpu_custom_call.1} parent=23 // pred_check_branch
          %203 = sbr.rel (%p201) target = $region28
        $region27: #{tpu_custom_call.1} parent=23 // pred_region
          %p204 = scmp.lt.s32.totalorder %s21, 1
          %s205 = scalar_select %p204, %s21, 1
          %s206 = smul.addr %s205, 16
          %s207 = smul.addr %s206, 8
          %s208 = scalar_lea.vmem %s0, %s207
        $region28: #{tpu_custom_call.1} parent=23 // pred_fallthru
          _
        // Predicated region
        $region29: #{tpu_custom_call.1} parent=23 // pred_check
          %p209 = pneg %p74
        $region30: #{tpu_custom_call.1} parent=23 // pred_check_branch
          %211 = sbr.rel (%p209) target = $region32
        $region31: #{tpu_custom_call.1} parent=23 // pred_region
          %p212 = scmp.lt.s32.totalorder %s21, 1
          %s213 = scalar_select %p212, %s21, 1
          %p214 = scmp.lt.s32.totalorder %s22, 1
          %s215 = scalar_select %p214, %s22, 1
          %s216 = smul.addr %s213, 2
          %s217 = sadd.s32 %s215, %s216
          %s218 = smul.addr %s217, 2
          %s219 = scalar_lea.vmem %s1, %s218
        $region32: #{tpu_custom_call.1} parent=23 // pred_fallthru
          _
        // Predicated region
        $region33: #{tpu_custom_call.1} parent=23 // pred_check
          %p220 = pneg %p100
        $region34: #{tpu_custom_call.1} parent=23 // pred_check_branch
          %222 = sbr.rel (%p220) target = $region36
        $region35: #{tpu_custom_call.1} parent=23 // pred_region
          %p223 = scmp.lt.s32.totalorder %s22, 1
          %s224 = scalar_select %p223, %s22, 1
          %s225 = smul.addr %s224, 2
          %s226 = scalar_lea.vmem %s2, %s225
        $region36: #{tpu_custom_call.1} parent=23 // pred_fallthru
          _
      $region24: #{tpu_custom_call.1} parent=5 // pred_fallthru
        _
      %p227 = scmp.le.s32.totalorder 1, %s14
      %p228 = scmp.lt.s32.totalorder %s14, 5
      %p229 = pnand %p227, %p228
      %p230 = pneg %p229
      // Predicated region
      $region37: #{tpu_custom_call.1} parent=5 // pred_check
        _
      $region38: #{tpu_custom_call.1} parent=5 // pred_check_branch
        %232 = sbr.rel (%p229) target = $region40
      $region39: #{tpu_custom_call.1} parent=5 // pred_region
        %s233 = ssub.s32 %s14, 1
        %p234 = scmp.lt.s32.totalorder %s23, 1
        %s235 = scalar_select %p234, %s23, 1
        %s236 = smul.addr %s235, 16
        %s237 = smul.addr %s236, 8
        %s238 = scalar_lea.vmem %s0, %s237
        %p239 = pneg %p52
        %p240 = pneg %p49
        %p241 = scmp.lt.s32.totalorder %s23, 1
        %s242 = scalar_select %p241, %s23, 1
        %p243 = scmp.lt.s32.totalorder %s24, 1
        %s244 = scalar_select %p243, %s24, 1
        %s245 = smul.addr %s242, 2
        %s246 = sadd.s32 %s244, %s245
        %s247 = smul.addr %s246, 2
        %s248 = scalar_lea.vmem %s1, %s247
        %p249 = pneg %p80
        %p250 = pneg %p77
        %p251 = scmp.lt.s32.totalorder %s24, 1
        %s252 = scalar_select %p251, %s24, 1
        %s253 = smul.addr %s252, 2
        %s254 = scalar_lea.vmem %s2, %s253
        %p255 = pneg %p106
        %p256 = pneg %p103
        %p257 = pneg %p127
        %p258 = pneg %p124
        %p259 = pneg %p148
        %p260 = pneg %p145
        %p261 = pneg %p176
        %p262 = pneg %p173
        %s263 = sand.u32 %s163, 1
        %s264 = scalar_lea.sflag [#allocation4], %s263
        %s265 = sand.u32 %s163, 1
        %s266 = smul.addr %s265, 8
        %s267 = scalar_lea.vmem [#allocation3], %s266
        %p268 = scmp.lt.s32.totalorder %s23, 1
        %s269 = scalar_select %p268, %s23, 1
        %s270 = smul.addr %s269, 16
        %s271 = smul.addr %s270, 8
        %s272 = scalar_lea.vmem %s0, %s271
        %p273 = scmp.lt.s32.totalorder %s23, 1
        %s274 = scalar_select %p273, %s23, 1
        %p275 = scmp.lt.s32.totalorder %s24, 1
        %s276 = scalar_select %p275, %s24, 1
        %s277 = smul.addr %s274, 2
        %s278 = sadd.s32 %s276, %s277
        %s279 = smul.addr %s278, 2
        %s280 = scalar_lea.vmem %s1, %s279
        %p281 = scmp.lt.s32.totalorder %s24, 1
        %s282 = scalar_select %p281, %s24, 1
        %s283 = smul.addr %s282, 2
        %s284 = scalar_lea.vmem %s2, %s283
        %v285 = vld [vmem:[%s284] sm:$0x1]
        %v286 = vld [vmem:[%s284 + $0x1] sm:$0x1]
        %v287 = vld [vmem:[%s280] sm:$0x3]
        %v288 = vlaneseq
        %v289 = vshrl.u32 %v288, 7
        %v290 = vadd.s32 %v289, 8
        %v291 = vcvt.s32.f32 %v289
        %v292 = vcvt.s32.f32 %v290
        %v293 = vmax.f32 %v287, 0.0
        %v294 = vmin.f32 %v293, 4.0
        %v295 = vsub.f32 %v294, 1.0
        %v296 = vadd.f32 %v285, 0.0
        %v297 = vmul.f32 %v295, -1.0
        %v298 = vadd.f32 %v296, %v297
        %v299 = vlaneseq
        %v300 = vshrl.u32 %v299, 7
        %v301 = vsub.s32 0, %v300
        %v302 = vrot.slane %v298, %v301
        %v303 = vsub.f32 %v291, %v302
        %v304 = vsub.f32 %v292, %v302
        %v305 = vand.u32 2147483647, %v303
        %v306 = vand.u32 2147483647, %v304
        %v307 = vsub.f32 1.0, %v305
        %v308 = vsub.f32 1.0, %v306
        %v309 = vmax.f32 %v307, 0.0
        %v310 = vmax.f32 %v308, 0.0
        %v311 = vadd.f32 %v285, 1.0
        %v312 = vlaneseq
        %v313 = vshrl.u32 %v312, 7
        %v314 = vsub.s32 0, %v313
        %v315 = vrot.slane %v311, %v314
        %v316 = vsub.f32 %v291, %v315
        %v317 = vsub.f32 %v292, %v315
        %v318 = vand.u32 2147483647, %v316
        %v319 = vand.u32 2147483647, %v317
        %v320 = vsub.f32 1.0, %v318
        %v321 = vsub.f32 1.0, %v319
        %v322 = vmax.f32 %v320, 0.0
        %v323 = vmax.f32 %v321, 0.0
        %v324 = vadd.f32 %v285, 2.0
        %v325 = vadd.f32 %v324, %v295
        %v326 = vlaneseq
        %v327 = vshrl.u32 %v326, 7
        %v328 = vsub.s32 0, %v327
        %v329 = vrot.slane %v325, %v328
        %v330 = vsub.f32 %v291, %v329
        %v331 = vsub.f32 %v292, %v329
        %v332 = vand.u32 2147483647, %v330
        %v333 = vand.u32 2147483647, %v331
        %v334 = vsub.f32 1.0, %v332
        %v335 = vsub.f32 1.0, %v333
        %v336 = vmax.f32 %v334, 0.0
        %v337 = vmax.f32 %v335, 0.0
        %v338 = vadd.f32 %v286, 0.0
        %v339 = vadd.f32 %v338, %v297
        %v340 = vlaneseq
        %v341 = vshrl.u32 %v340, 7
        %v342 = vsub.s32 0, %v341
        %v343 = vrot.slane %v339, %v342
        %v344 = vsub.f32 %v291, %v343
        %v345 = vsub.f32 %v292, %v343
        %v346 = vand.u32 2147483647, %v344
        %v347 = vand.u32 2147483647, %v345
        %v348 = vsub.f32 1.0, %v346
        %v349 = vsub.f32 1.0, %v347
        %v350 = vmax.f32 %v348, 0.0
        %v351 = vmax.f32 %v349, 0.0
        %v352 = vadd.f32 %v286, 1.0
        %v353 = vlaneseq
        %v354 = vshrl.u32 %v353, 7
        %v355 = vsub.s32 0, %v354
        %v356 = vrot.slane %v352, %v355
        %v357 = vsub.f32 %v291, %v356
        %v358 = vsub.f32 %v292, %v356
        %v359 = vand.u32 2147483647, %v357
        %v360 = vand.u32 2147483647, %v358
        %v361 = vsub.f32 1.0, %v359
        %v362 = vsub.f32 1.0, %v360
        %v363 = vmax.f32 %v361, 0.0
        %v364 = vmax.f32 %v362, 0.0
        %v365 = vadd.f32 %v286, 2.0
        %v366 = vadd.f32 %v365, %v295
        %v367 = vlaneseq
        %v368 = vshrl.u32 %v367, 7
        %v369 = vsub.s32 0, %v368
        %v370 = vrot.slane %v366, %v369
        %v371 = vsub.f32 %v291, %v370
        %v372 = vsub.f32 %v292, %v370
        %v373 = vand.u32 2147483647, %v371
        %v374 = vand.u32 2147483647, %v372
        %v375 = vsub.f32 1.0, %v373
        %v376 = vsub.f32 1.0, %v374
        %v377 = vmax.f32 %v375, 0.0
        %v378 = vmax.f32 %v376, 0.0
        %v379 = vmax.f32 %v287, 4.0
        %v380 = vmin.f32 %v379, 8.0
        %v381 = vsub.f32 %v380, 1.0
        %v382 = vmul.f32 %v381, -1.0
        %v384 = vrot.slane %v382, 1
        %v386 = vadd.f32 %v296, %v384
        %v387 = vlaneseq
        %v388 = vshrl.u32 %v387, 7
        %v389 = vsub.s32 0, %v388
        %v390 = vrot.slane %v386, %v389
        %v391 = vsub.f32 %v291, %v390
        %v392 = vsub.f32 %v292, %v390
        %v393 = vand.u32 2147483647, %v391
        %v394 = vand.u32 2147483647, %v392
        %v395 = vsub.f32 1.0, %v393
        %v396 = vsub.f32 1.0, %v394
        %v397 = vmax.f32 %v395, 0.0
        %v398 = vmax.f32 %v396, 0.0
        %v400 = vrot.slane %v381, 1
        %v402 = vadd.f32 %v324, %v400
        %v403 = vlaneseq
        %v404 = vshrl.u32 %v403, 7
        %v405 = vsub.s32 0, %v404
        %v406 = vrot.slane %v402, %v405
        %v407 = vsub.f32 %v291, %v406
        %v408 = vsub.f32 %v292, %v406
        %v409 = vand.u32 2147483647, %v407
        %v410 = vand.u32 2147483647, %v408
        %v411 = vsub.f32 1.0, %v409
        %v412 = vsub.f32 1.0, %v410
        %v413 = vmax.f32 %v411, 0.0
        %v414 = vmax.f32 %v412, 0.0
        %v415 = vadd.f32 %v338, %v384
        %v416 = vlaneseq
        %v417 = vshrl.u32 %v416, 7
        %v418 = vsub.s32 0, %v417
        %v419 = vrot.slane %v415, %v418
        %v420 = vsub.f32 %v291, %v419
        %v421 = vsub.f32 %v292, %v419
        %v422 = vand.u32 2147483647, %v420
        %v423 = vand.u32 2147483647, %v421
        %v424 = vsub.f32 1.0, %v422
        %v425 = vsub.f32 1.0, %v423
        %v426 = vmax.f32 %v424, 0.0
        %v427 = vmax.f32 %v425, 0.0
        %v428 = vadd.f32 %v365, %v400
        %v429 = vlaneseq
        %v430 = vshrl.u32 %v429, 7
        %v431 = vsub.s32 0, %v430
        %v432 = vrot.slane %v428, %v431
        %v433 = vsub.f32 %v291, %v432
        %v434 = vsub.f32 %v292, %v432
        %v435 = vand.u32 2147483647, %v433
        %v436 = vand.u32 2147483647, %v434
        %v437 = vsub.f32 1.0, %v435
        %v438 = vsub.f32 1.0, %v436
        %v439 = vmax.f32 %v437, 0.0
        %v440 = vmax.f32 %v438, 0.0
        %v441 = vld [vmem:[%s272] sm:$0xff]
        %v442 = vld [vmem:[%s272 + $0x8] sm:$0xff]
        %v443 = vld [vmem:[%s272 + $0x10] sm:$0xff]
        %v444 = vld [vmem:[%s272 + $0x18] sm:$0xff]
        %v445 = vld [vmem:[%s272 + $0x20] sm:$0xff]
        %v446 = vld [vmem:[%s272 + $0x28] sm:$0xff]
        %v447 = vld [vmem:[%s272 + $0x30] sm:$0xff]
        %v448 = vld [vmem:[%s272 + $0x38] sm:$0xff]
        %v449 = vld [vmem:[%s272 + $0x40] sm:$0xff]
        %v450 = vld [vmem:[%s272 + $0x48] sm:$0xff]
        %v451 = vld [vmem:[%s272 + $0x50] sm:$0xff]
        %v452 = vld [vmem:[%s272 + $0x58] sm:$0xff]
        %v453 = vld [vmem:[%s272 + $0x60] sm:$0xff]
        %v454 = vld [vmem:[%s272 + $0x68] sm:$0xff]
        %v455 = vld [vmem:[%s272 + $0x70] sm:$0xff]
        %v456 = vld [vmem:[%s272 + $0x78] sm:$0xff]
        %vm457 = vcmask 130048
        %v459 = vsel %vm457, %v441, 0
        %v462 = vsel %vm457, %v442, 0
        %v465 = vsel %vm457, %v443, 0
        %v468 = vsel %vm457, %v444, 0
        %v471 = vsel %vm457, %v445, 0
        %v474 = vsel %vm457, %v446, 0
        %v477 = vsel %vm457, %v447, 0
        %v480 = vsel %vm457, %v448, 0
        %v483 = vsel %vm457, %v449, 0
        %v486 = vsel %vm457, %v450, 0
        %v489 = vsel %vm457, %v451, 0
        %v492 = vsel %vm457, %v452, 0
        %v495 = vsel %vm457, %v453, 0
        %v498 = vsel %vm457, %v454, 0
        %v501 = vsel %vm457, %v455, 0
        %v504 = vsel %vm457, %v456, 0
        %506 = vmatprep.subr.mxu0 0.0
        %507 = vmatpush1.msra.mxu0 %v350
        %508 = vmatprep.subr.mxu0 0.0
        %509 = vmatpush1.msra.mxu0 %v351
        %510 = vmatprep.subr.mxu0 0.0
        %511 = vmatpush1.msra.mxu0 0.0
        %512 = vmatprep.subr.mxu0 0.0
        %513 = vmatpush1.msra.mxu0 0.0
        %514 = vmatprep.subr.mxu0 0.0
        %515 = vmatpush1.msra.mxu0 0.0
        %516 = vmatprep.subr.mxu0 0.0
        %517 = vmatpush1.msra.mxu0 0.0
        %518 = vmatprep.subr.mxu0 0.0
        %519 = vmatpush1.msra.mxu0 0.0
        %520 = vmatprep.subr.mxu0 0.0
        %521 = vmatpush1.msra.mxu0 0.0
        %522 = vmatprep.subr.mxu0 0.0
        %523 = vmatpush1.msra.mxu0 0.0
        %524 = vmatprep.subr.mxu0 0.0
        %525 = vmatpush1.msra.mxu0 0.0
        %526 = vmatprep.subr.mxu0 0.0
        %527 = vmatpush1.msra.mxu0 0.0
        %528 = vmatprep.subr.mxu0 0.0
        %529 = vmatpush1.msra.mxu0 0.0
        %530 = vmatprep.subr.mxu0 0.0
        %531 = vmatpush1.msra.mxu0 0.0
        %532 = vmatprep.subr.mxu0 0.0
        %533 = vmatpush1.msra.mxu0 0.0
        %534 = vmatprep.subr.mxu0 0.0
        %535 = vmatpush1.msra.mxu0 0.0
        %536 = vmatprep.subr.mxu0 0.0
        %537 = vmatpush1.msra.mxu0 0.0
        %538 = vmatprep.subr.mxu0 0.0
        %539 = vmatpush1.msra.mxu0 0.0
        %540 = vmatprep.subr.mxu0 0.0
        %541 = vmatpush1.msra.mxu0 0.0
        %542 = vmatprep.subr.mxu0 0.0
        %543 = vmatpush1.msra.mxu0 0.0
        %544 = vmatprep.subr.mxu0 0.0
        %545 = vmatpush1.msra.mxu0 0.0
        %546 = vmatprep.subr.mxu0 0.0
        %547 = vmatpush1.msra.mxu0 0.0
        %548 = vmatprep.subr.mxu0 0.0
        %549 = vmatpush1.msra.mxu0 0.0
        %550 = vmatprep.subr.mxu0 0.0
        %551 = vmatpush1.msra.mxu0 0.0
        %552 = vmatprep.subr.mxu0 0.0
        %553 = vmatpush1.msra.mxu0 0.0
        %554 = vmatprep.subr.mxu0 0.0
        %555 = vmatpush1.msra.mxu0 0.0
        %556 = vmatprep.subr.mxu0 0.0
        %557 = vmatpush1.msra.mxu0 0.0
        %558 = vmatprep.subr.mxu0 0.0
        %559 = vmatpush1.msra.mxu0 0.0
        %560 = vmatprep.subr.mxu0 0.0
        %561 = vmatpush1.msra.mxu0 0.0
        %562 = vmatprep.subr.mxu0 0.0
        %563 = vmatpush1.msra.mxu0 0.0
        %564 = vmatprep.subr.mxu0 0.0
        %565 = vmatpush1.msra.mxu0 0.0
        %566 = vmatprep.subr.mxu0 0.0
        %567 = vmatpush1.msra.mxu0 0.0
        %568 = vmatprep.subr.mxu0 0.0
        %569 = vmatpush1.msra.mxu0 0.0
        %570 = vmatprep.mubr.f32.mxu0 0.0
        %571 = vmatmul.mubr.f32.gmra.mrb[0].mxu0 %v459
        %v572 = vpop.f32.mrb[0].mxu0
        %v573 = vadd.f32 0.0, %v572
        %v574 = vpop.f32.mrb[0].mxu0
        %575 = vmatprep.mubr.f32.mxu0 0.0
        %576 = vmatmul.mubr.f32.gmra.mrb[0].mxu0 %v462
        %v577 = vpop.f32.mrb[0].mxu0
        %v578 = vadd.f32 0.0, %v577
        %v579 = vpop.f32.mrb[0].mxu0
        %580 = vmatprep.mubr.f32.mxu0 0.0
        %581 = vmatmul.mubr.f32.gmra.mrb[0].mxu0 %v465
        %v582 = vpop.f32.mrb[0].mxu0
        %v583 = vadd.f32 0.0, %v582
        %v584 = vpop.f32.mrb[0].mxu0
        %585 = vmatprep.mubr.f32.mxu0 0.0
        %586 = vmatmul.mubr.f32.gmra.mrb[0].mxu0 %v468
        %v587 = vpop.f32.mrb[0].mxu0
        %v588 = vadd.f32 0.0, %v587
        %v589 = vpop.f32.mrb[0].mxu0
        %590 = vmatprep.mubr.f32.mxu0 0.0
        %591 = vmatmul.mubr.f32.gmra.mrb[0].mxu0 %v471
        %v592 = vpop.f32.mrb[0].mxu0
        %v593 = vadd.f32 0.0, %v592
        %v594 = vpop.f32.mrb[0].mxu0
        %595 = vmatprep.mubr.f32.mxu0 0.0
        %596 = vmatmul.mubr.f32.gmra.mrb[0].mxu0 %v474
        %v597 = vpop.f32.mrb[0].mxu0
        %v598 = vadd.f32 0.0, %v597
        %v599 = vpop.f32.mrb[0].mxu0
        %600 = vmatprep.mubr.f32.mxu0 0.0
        %601 = vmatmul.mubr.f32.gmra.mrb[0].mxu0 %v477
        %v602 = vpop.f32.mrb[0].mxu0
        %v603 = vadd.f32 0.0, %v602
        %v604 = vpop.f32.mrb[0].mxu0
        %605 = vmatprep.mubr.f32.mxu0 0.0
        %606 = vmatmul.mubr.f32.gmra.mrb[0].mxu0 %v480
        %v607 = vpop.f32.mrb[0].mxu0
        %v608 = vadd.f32 0.0, %v607
        %v609 = vpop.f32.mrb[0].mxu0
        %610 = vmatprep.mubr.f32.mxu0 0.0
        %611 = vmatmul.mubr.f32.gmra.mrb[0].mxu0 %v483
        %v612 = vpop.f32.mrb[0].mxu0
        %v613 = vadd.f32 0.0, %v612
        %v614 = vpop.f32.mrb[0].mxu0
        %615 = vmatprep.mubr.f32.mxu0 0.0
        %616 = vmatmul.mubr.f32.gmra.mrb[0].mxu0 %v486
        %v617 = vpop.f32.mrb[0].mxu0
        %v618 = vadd.f32 0.0, %v617
        %v619 = vpop.f32.mrb[0].mxu0
        %620 = vmatprep.mubr.f32.mxu0 0.0
        %621 = vmatmul.mubr.f32.gmra.mrb[0].mxu0 %v489
        %v622 = vpop.f32.mrb[0].mxu0
        %v623 = vadd.f32 0.0, %v622
        %v624 = vpop.f32.mrb[0].mxu0
        %625 = vmatprep.mubr.f32.mxu0 0.0
        %626 = vmatmul.mubr.f32.gmra.mrb[0].mxu0 %v492
        %v627 = vpop.f32.mrb[0].mxu0
        %v628 = vadd.f32 0.0, %v627
        %v629 = vpop.f32.mrb[0].mxu0
        %630 = vmatprep.mubr.f32.mxu0 0.0
        %631 = vmatmul.mubr.f32.gmra.mrb[0].mxu0 %v495
        %v632 = vpop.f32.mrb[0].mxu0
        %v633 = vadd.f32 0.0, %v632
        %v634 = vpop.f32.mrb[0].mxu0
        %635 = vmatprep.mubr.f32.mxu0 0.0
        %636 = vmatmul.mubr.f32.gmra.mrb[0].mxu0 %v498
        %v637 = vpop.f32.mrb[0].mxu0
        %v638 = vadd.f32 0.0, %v637
        %v639 = vpop.f32.mrb[0].mxu0
        %640 = vmatprep.mubr.f32.mxu0 0.0
        %641 = vmatmul.mubr.f32.gmra.mrb[0].mxu0 %v501
        %v642 = vpop.f32.mrb[0].mxu0
        %v643 = vadd.f32 0.0, %v642
        %v644 = vpop.f32.mrb[0].mxu0
        %645 = vmatprep.mubr.f32.mxu0 0.0
        %646 = vmatmul.mubr.f32.gmra.mrb[0].mxu0 %v504
        %v647 = vpop.f32.mrb[0].mxu0
        %v648 = vadd.f32 0.0, %v647
        %v649 = vpop.f32.mrb[0].mxu0
        %650 = vdwg.mxu0
        %v651 = vmul.f32 %v573, %v309
        %v652 = vmul.f32 %v578, %v310
        %v653 = vmul.f32 %v583, %v309
        %v654 = vmul.f32 %v588, %v310
        %v655 = vmul.f32 %v593, %v309
        %v656 = vmul.f32 %v598, %v310
        %v657 = vmul.f32 %v603, %v309
        %v658 = vmul.f32 %v608, %v310
        %v659 = vmul.f32 %v613, %v309
        %v660 = vmul.f32 %v618, %v310
        %v661 = vmul.f32 %v623, %v309
        %v662 = vmul.f32 %v628, %v310
        %v663 = vmul.f32 %v633, %v309
        %v664 = vmul.f32 %v638, %v310
        %v665 = vmul.f32 %v643, %v309
        %v666 = vmul.f32 %v648, %v310
        %v667 = vadd.f32 %v651, %v652
        %v668 = vrot.slane %v667, 4
        %v669 = vadd.f32 %v667, %v668
        %v670 = vrot.slane %v669, 2
        %v671 = vadd.f32 %v669, %v670
        %v672 = vrot.slane %v671, 1
        %v673 = vadd.f32 %v671, %v672
        %v674 = vadd.f32 %v653, %v654
        %v675 = vrot.slane %v674, 4
        %v676 = vadd.f32 %v674, %v675
        %v677 = vrot.slane %v676, 2
        %v678 = vadd.f32 %v676, %v677
        %v679 = vrot.slane %v678, 1
        %v680 = vadd.f32 %v678, %v679
        %v681 = vadd.f32 %v655, %v656
        %v682 = vrot.slane %v681, 4
        %v683 = vadd.f32 %v681, %v682
        %v684 = vrot.slane %v683, 2
        %v685 = vadd.f32 %v683, %v684
        %v686 = vrot.slane %v685, 1
        %v687 = vadd.f32 %v685, %v686
        %v688 = vadd.f32 %v657, %v658
        %v689 = vrot.slane %v688, 4
        %v690 = vadd.f32 %v688, %v689
        %v691 = vrot.slane %v690, 2
        %v692 = vadd.f32 %v690, %v691
        %v693 = vrot.slane %v692, 1
        %v694 = vadd.f32 %v692, %v693
        %v695 = vadd.f32 %v659, %v660
        %v696 = vrot.slane %v695, 4
        %v697 = vadd.f32 %v695, %v696
        %v698 = vrot.slane %v697, 2
        %v699 = vadd.f32 %v697, %v698
        %v700 = vrot.slane %v699, 1
        %v701 = vadd.f32 %v699, %v700
        %v702 = vadd.f32 %v661, %v662
        %v703 = vrot.slane %v702, 4
        %v704 = vadd.f32 %v702, %v703
        %v705 = vrot.slane %v704, 2
        %v706 = vadd.f32 %v704, %v705
        %v707 = vrot.slane %v706, 1
        %v708 = vadd.f32 %v706, %v707
        %v709 = vadd.f32 %v663, %v664
        %v710 = vrot.slane %v709, 4
        %v711 = vadd.f32 %v709, %v710
        %v712 = vrot.slane %v711, 2
        %v713 = vadd.f32 %v711, %v712
        %v714 = vrot.slane %v713, 1
        %v715 = vadd.f32 %v713, %v714
        %v716 = vadd.f32 %v665, %v666
        %v717 = vrot.slane %v716, 4
        %v718 = vadd.f32 %v716, %v717
        %v719 = vrot.slane %v718, 2
        %v720 = vadd.f32 %v718, %v719
        %v721 = vrot.slane %v720, 1
        %v722 = vadd.f32 %v720, %v721
        %vm731 = vcmask 1041409
        %v732 = vsel %vm731, %v680, %v673
        %vm733 = vcmask 1042434
        %v734 = vsel %vm733, %v687, %v732
        %vm735 = vcmask 1043459
        %v736 = vsel %vm735, %v694, %v734
        %vm737 = vcmask 1044484
        %v738 = vsel %vm737, %v701, %v736
        %vm739 = vcmask 1045509
        %v740 = vsel %vm739, %v708, %v738
        %vm741 = vcmask 1046534
        %v742 = vsel %vm741, %v715, %v740
        %vm743 = vcmask 1047559
        %v744 = vsel %vm743, %v722, %v742
        %746 = vst [vmem:[#allocation2] sm:$0xff] %v744
        %v747 = vmul.f32 %v573, %v322
        %v748 = vmul.f32 %v578, %v323
        %v749 = vmul.f32 %v583, %v322
        %v750 = vmul.f32 %v588, %v323
        %v751 = vmul.f32 %v593, %v322
        %v752 = vmul.f32 %v598, %v323
        %v753 = vmul.f32 %v603, %v322
        %v754 = vmul.f32 %v608, %v323
        %v755 = vmul.f32 %v613, %v322
        %v756 = vmul.f32 %v618, %v323
        %v757 = vmul.f32 %v623, %v322
        %v758 = vmul.f32 %v628, %v323
        %v759 = vmul.f32 %v633, %v322
        %v760 = vmul.f32 %v638, %v323
        %v761 = vmul.f32 %v643, %v322
        %v762 = vmul.f32 %v648, %v323
        %v763 = vadd.f32 %v747, %v748
        %v764 = vrot.slane %v763, 4
        %v765 = vadd.f32 %v763, %v764
        %v766 = vrot.slane %v765, 2
        %v767 = vadd.f32 %v765, %v766
        %v768 = vrot.slane %v767, 1
        %v769 = vadd.f32 %v767, %v768
        %v770 = vadd.f32 %v749, %v750
        %v771 = vrot.slane %v770, 4
        %v772 = vadd.f32 %v770, %v771
        %v773 = vrot.slane %v772, 2
        %v774 = vadd.f32 %v772, %v773
        %v775 = vrot.slane %v774, 1
        %v776 = vadd.f32 %v774, %v775
        %v777 = vadd.f32 %v751, %v752
        %v778 = vrot.slane %v777, 4
        %v779 = vadd.f32 %v777, %v778
        %v780 = vrot.slane %v779, 2
        %v781 = vadd.f32 %v779, %v780
        %v782 = vrot.slane %v781, 1
        %v783 = vadd.f32 %v781, %v782
        %v784 = vadd.f32 %v753, %v754
        %v785 = vrot.slane %v784, 4
        %v786 = vadd.f32 %v784, %v785
        %v787 = vrot.slane %v786, 2
        %v788 = vadd.f32 %v786, %v787
        %v789 = vrot.slane %v788, 1
        %v790 = vadd.f32 %v788, %v789
        %v791 = vadd.f32 %v755, %v756
        %v792 = vrot.slane %v791, 4
        %v793 = vadd.f32 %v791, %v792
        %v794 = vrot.slane %v793, 2
        %v795 = vadd.f32 %v793, %v794
        %v796 = vrot.slane %v795, 1
        %v797 = vadd.f32 %v795, %v796
        %v798 = vadd.f32 %v757, %v758
        %v799 = vrot.slane %v798, 4
        %v800 = vadd.f32 %v798, %v799
        %v801 = vrot.slane %v800, 2
        %v802 = vadd.f32 %v800, %v801
        %v803 = vrot.slane %v802, 1
        %v804 = vadd.f32 %v802, %v803
        %v805 = vadd.f32 %v759, %v760
        %v806 = vrot.slane %v805, 4
        %v807 = vadd.f32 %v805, %v806
        %v808 = vrot.slane %v807, 2
        %v809 = vadd.f32 %v807, %v808
        %v810 = vrot.slane %v809, 1
        %v811 = vadd.f32 %v809, %v810
        %v812 = vadd.f32 %v761, %v762
        %v813 = vrot.slane %v812, 4
        %v814 = vadd.f32 %v812, %v813
        %v815 = vrot.slane %v814, 2
        %v816 = vadd.f32 %v814, %v815
        %v817 = vrot.slane %v816, 1
        %v818 = vadd.f32 %v816, %v817
        %v827 = vsel %vm731, %v776, %v769
        %v828 = vsel %vm733, %v783, %v827
        %v829 = vsel %vm735, %v790, %v828
        %v830 = vsel %vm737, %v797, %v829
        %v831 = vsel %vm739, %v804, %v830
        %v832 = vsel %vm741, %v811, %v831
        %v833 = vsel %vm743, %v818, %v832
        %835 = vst [vmem:[#allocation2 + $0x18] sm:$0xff] %v833
        %v836 = vmul.f32 %v573, %v336
        %v837 = vmul.f32 %v578, %v337
        %v838 = vmul.f32 %v583, %v336
        %v839 = vmul.f32 %v588, %v337
        %v840 = vmul.f32 %v593, %v336
        %v841 = vmul.f32 %v598, %v337
        %v842 = vmul.f32 %v603, %v336
        %v843 = vmul.f32 %v608, %v337
        %v844 = vmul.f32 %v613, %v336
        %v845 = vmul.f32 %v618, %v337
        %v846 = vmul.f32 %v623, %v336
        %v847 = vmul.f32 %v628, %v337
        %v848 = vmul.f32 %v633, %v336
        %v849 = vmul.f32 %v638, %v337
        %v850 = vmul.f32 %v643, %v336
        %v851 = vmul.f32 %v648, %v337
        %v852 = vadd.f32 %v836, %v837
        %v853 = vrot.slane %v852, 4
        %v854 = vadd.f32 %v852, %v853
        %v855 = vrot.slane %v854, 2
        %v856 = vadd.f32 %v854, %v855
        %v857 = vrot.slane %v856, 1
        %v858 = vadd.f32 %v856, %v857
        %v859 = vadd.f32 %v838, %v839
        %v860 = vrot.slane %v859, 4
        %v861 = vadd.f32 %v859, %v860
        %v862 = vrot.slane %v861, 2
        %v863 = vadd.f32 %v861, %v862
        %v864 = vrot.slane %v863, 1
        %v865 = vadd.f32 %v863, %v864
        %v866 = vadd.f32 %v840, %v841
        %v867 = vrot.slane %v866, 4
        %v868 = vadd.f32 %v866, %v867
        %v869 = vrot.slane %v868, 2
        %v870 = vadd.f32 %v868, %v869
        %v871 = vrot.slane %v870, 1
        %v872 = vadd.f32 %v870, %v871
        %v873 = vadd.f32 %v842, %v843
        %v874 = vrot.slane %v873, 4
        %v875 = vadd.f32 %v873, %v874
        %v876 = vrot.slane %v875, 2
        %v877 = vadd.f32 %v875, %v876
        %v878 = vrot.slane %v877, 1
        %v879 = vadd.f32 %v877, %v878
        %v880 = vadd.f32 %v844, %v845
        %v881 = vrot.slane %v880, 4
        %v882 = vadd.f32 %v880, %v881
        %v883 = vrot.slane %v882, 2
        %v884 = vadd.f32 %v882, %v883
        %v885 = vrot.slane %v884, 1
        %v886 = vadd.f32 %v884, %v885
        %v887 = vadd.f32 %v846, %v847
        %v888 = vrot.slane %v887, 4
        %v889 = vadd.f32 %v887, %v888
        %v890 = vrot.slane %v889, 2
        %v891 = vadd.f32 %v889, %v890
        %v892 = vrot.slane %v891, 1
        %v893 = vadd.f32 %v891, %v892
        %v894 = vadd.f32 %v848, %v849
        %v895 = vrot.slane %v894, 4
        %v896 = vadd.f32 %v894, %v895
        %v897 = vrot.slane %v896, 2
        %v898 = vadd.f32 %v896, %v897
        %v899 = vrot.slane %v898, 1
        %v900 = vadd.f32 %v898, %v899
        %v901 = vadd.f32 %v850, %v851
        %v902 = vrot.slane %v901, 4
        %v903 = vadd.f32 %v901, %v902
        %v904 = vrot.slane %v903, 2
        %v905 = vadd.f32 %v903, %v904
        %v906 = vrot.slane %v905, 1
        %v907 = vadd.f32 %v905, %v906
        %v916 = vsel %vm731, %v865, %v858
        %v917 = vsel %vm733, %v872, %v916
        %v918 = vsel %vm735, %v879, %v917
        %v919 = vsel %vm737, %v886, %v918
        %v920 = vsel %vm739, %v893, %v919
        %v921 = vsel %vm741, %v900, %v920
        %v922 = vsel %vm743, %v907, %v921
        %924 = vst [vmem:[#allocation2 + $0x30] sm:$0xff] %v922
        %925 = vmatprep.subr.mxu0 0.0
        %926 = vmatpush1.msra.mxu0 %v363
        %927 = vmatprep.subr.mxu0 0.0
        %928 = vmatpush1.msra.mxu0 %v364
        %929 = vmatprep.subr.mxu0 0.0
        %930 = vmatpush1.msra.mxu0 0.0
        %931 = vmatprep.subr.mxu0 0.0
        %932 = vmatpush1.msra.mxu0 0.0
        %933 = vmatprep.subr.mxu0 0.0
        %934 = vmatpush1.msra.mxu0 0.0
        %935 = vmatprep.subr.mxu0 0.0
        %936 = vmatpush1.msra.mxu0 0.0
        %937 = vmatprep.subr.mxu0 0.0
        %938 = vmatpush1.msra.mxu0 0.0
        %939 = vmatprep.subr.mxu0 0.0
        %940 = vmatpush1.msra.mxu0 0.0
        %941 = vmatprep.subr.mxu0 0.0
        %942 = vmatpush1.msra.mxu0 0.0
        %943 = vmatprep.subr.mxu0 0.0
        %944 = vmatpush1.msra.mxu0 0.0
        %945 = vmatprep.subr.mxu0 0.0
        %946 = vmatpush1.msra.mxu0 0.0
        %947 = vmatprep.subr.mxu0 0.0
        %948 = vmatpush1.msra.mxu0 0.0
        %949 = vmatprep.subr.mxu0 0.0
        %950 = vmatpush1.msra.mxu0 0.0
        %951 = vmatprep.subr.mxu0 0.0
        %952 = vmatpush1.msra.mxu0 0.0
        %953 = vmatprep.subr.mxu0 0.0
        %954 = vmatpush1.msra.mxu0 0.0
        %955 = vmatprep.subr.mxu0 0.0
        %956 = vmatpush1.msra.mxu0 0.0
        %957 = vmatprep.subr.mxu0 0.0
        %958 = vmatpush1.msra.mxu0 0.0
        %959 = vmatprep.subr.mxu0 0.0
        %960 = vmatpush1.msra.mxu0 0.0
        %961 = vmatprep.subr.mxu0 0.0
        %962 = vmatpush1.msra.mxu0 0.0
        %963 = vmatprep.subr.mxu0 0.0
        %964 = vmatpush1.msra.mxu0 0.0
        %965 = vmatprep.subr.mxu0 0.0
        %966 = vmatpush1.msra.mxu0 0.0
        %967 = vmatprep.subr.mxu0 0.0
        %968 = vmatpush1.msra.mxu0 0.0
        %969 = vmatprep.subr.mxu0 0.0
        %970 = vmatpush1.msra.mxu0 0.0
        %971 = vmatprep.subr.mxu0 0.0
        %972 = vmatpush1.msra.mxu0 0.0
        %973 = vmatprep.subr.mxu0 0.0
        %974 = vmatpush1.msra.mxu0 0.0
        %975 = vmatprep.subr.mxu0 0.0
        %976 = vmatpush1.msra.mxu0 0.0
        %977 = vmatprep.subr.mxu0 0.0
        %978 = vmatpush1.msra.mxu0 0.0
        %979 = vmatprep.subr.mxu0 0.0
        %980 = vmatpush1.msra.mxu0 0.0
        %981 = vmatprep.subr.mxu0 0.0
        %982 = vmatpush1.msra.mxu0 0.0
        %983 = vmatprep.subr.mxu0 0.0
        %984 = vmatpush1.msra.mxu0 0.0
        %985 = vmatprep.subr.mxu0 0.0
        %986 = vmatpush1.msra.mxu0 0.0
        %987 = vmatprep.subr.mxu0 0.0
        %988 = vmatpush1.msra.mxu0 0.0
        %989 = vmatprep.mubr.f32.mxu0 0.0
        %990 = vmatmul.mubr.f32.gmra.mrb[0].mxu0 %v459
        %v991 = vpop.f32.mrb[0].mxu0
        %v992 = vadd.f32 0.0, %v991
        %v993 = vpop.f32.mrb[0].mxu0
        %994 = vmatprep.mubr.f32.mxu0 0.0
        %995 = vmatmul.mubr.f32.gmra.mrb[0].mxu0 %v462
        %v996 = vpop.f32.mrb[0].mxu0
        %v997 = vadd.f32 0.0, %v996
        %v998 = vpop.f32.mrb[0].mxu0
        %999 = vmatprep.mubr.f32.mxu0 0.0
        %1000 = vmatmul.mubr.f32.gmra.mrb[0].mxu0 %v465
        %v1001 = vpop.f32.mrb[0].mxu0
        %v1002 = vadd.f32 0.0, %v1001
        %v1003 = vpop.f32.mrb[0].mxu0
        %1004 = vmatprep.mubr.f32.mxu0 0.0
        %1005 = vmatmul.mubr.f32.gmra.mrb[0].mxu0 %v468
        %v1006 = vpop.f32.mrb[0].mxu0
        %v1007 = vadd.f32 0.0, %v1006
        %v1008 = vpop.f32.mrb[0].mxu0
        %1009 = vmatprep.mubr.f32.mxu0 0.0
        %1010 = vmatmul.mubr.f32.gmra.mrb[0].mxu0 %v471
        %v1011 = vpop.f32.mrb[0].mxu0
        %v1012 = vadd.f32 0.0, %v1011
        %v1013 = vpop.f32.mrb[0].mxu0
        %1014 = vmatprep.mubr.f32.mxu0 0.0
        %1015 = vmatmul.mubr.f32.gmra.mrb[0].mxu0 %v474
        %v1016 = vpop.f32.mrb[0].mxu0
        %v1017 = vadd.f32 0.0, %v1016
        %v1018 = vpop.f32.mrb[0].mxu0
        %1019 = vmatprep.mubr.f32.mxu0 0.0
        %1020 = vmatmul.mubr.f32.gmra.mrb[0].mxu0 %v477
        %v1021 = vpop.f32.mrb[0].mxu0
        %v1022 = vadd.f32 0.0, %v1021
        %v1023 = vpop.f32.mrb[0].mxu0
        %1024 = vmatprep.mubr.f32.mxu0 0.0
        %1025 = vmatmul.mubr.f32.gmra.mrb[0].mxu0 %v480
        %v1026 = vpop.f32.mrb[0].mxu0
        %v1027 = vadd.f32 0.0, %v1026
        %v1028 = vpop.f32.mrb[0].mxu0
        %1029 = vmatprep.mubr.f32.mxu0 0.0
        %1030 = vmatmul.mubr.f32.gmra.mrb[0].mxu0 %v483
        %v1031 = vpop.f32.mrb[0].mxu0
        %v1032 = vadd.f32 0.0, %v1031
        %v1033 = vpop.f32.mrb[0].mxu0
        %1034 = vmatprep.mubr.f32.mxu0 0.0
        %1035 = vmatmul.mubr.f32.gmra.mrb[0].mxu0 %v486
        %v1036 = vpop.f32.mrb[0].mxu0
        %v1037 = vadd.f32 0.0, %v1036
        %v1038 = vpop.f32.mrb[0].mxu0
        %1039 = vmatprep.mubr.f32.mxu0 0.0
        %1040 = vmatmul.mubr.f32.gmra.mrb[0].mxu0 %v489
        %v1041 = vpop.f32.mrb[0].mxu0
        %v1042 = vadd.f32 0.0, %v1041
        %v1043 = vpop.f32.mrb[0].mxu0
        %1044 = vmatprep.mubr.f32.mxu0 0.0
        %1045 = vmatmul.mubr.f32.gmra.mrb[0].mxu0 %v492
        %v1046 = vpop.f32.mrb[0].mxu0
        %v1047 = vadd.f32 0.0, %v1046
        %v1048 = vpop.f32.mrb[0].mxu0
        %1049 = vmatprep.mubr.f32.mxu0 0.0
        %1050 = vmatmul.mubr.f32.gmra.mrb[0].mxu0 %v495
        %v1051 = vpop.f32.mrb[0].mxu0
        %v1052 = vadd.f32 0.0, %v1051
        %v1053 = vpop.f32.mrb[0].mxu0
        %1054 = vmatprep.mubr.f32.mxu0 0.0
        %1055 = vmatmul.mubr.f32.gmra.mrb[0].mxu0 %v498
        %v1056 = vpop.f32.mrb[0].mxu0
        %v1057 = vadd.f32 0.0, %v1056
        %v1058 = vpop.f32.mrb[0].mxu0
        %1059 = vmatprep.mubr.f32.mxu0 0.0
        %1060 = vmatmul.mubr.f32.gmra.mrb[0].mxu0 %v501
        %v1061 = vpop.f32.mrb[0].mxu0
        %v1062 = vadd.f32 0.0, %v1061
        %v1063 = vpop.f32.mrb[0].mxu0
        %1064 = vmatprep.mubr.f32.mxu0 0.0
        %1065 = vmatmul.mubr.f32.gmra.mrb[0].mxu0 %v504
        %v1066 = vpop.f32.mrb[0].mxu0
        %v1067 = vadd.f32 0.0, %v1066
        %v1068 = vpop.f32.mrb[0].mxu0
        %1069 = vdwg.mxu0
        %v1070 = vmul.f32 %v992, %v309
        %v1071 = vmul.f32 %v997, %v310
        %v1072 = vmul.f32 %v1002, %v309
        %v1073 = vmul.f32 %v1007, %v310
        %v1074 = vmul.f32 %v1012, %v309
        %v1075 = vmul.f32 %v1017, %v310
        %v1076 = vmul.f32 %v1022, %v309
        %v1077 = vmul.f32 %v1027, %v310
        %v1078 = vmul.f32 %v1032, %v309
        %v1079 = vmul.f32 %v1037, %v310
        %v1080 = vmul.f32 %v1042, %v309
        %v1081 = vmul.f32 %v1047, %v310
        %v1082 = vmul.f32 %v1052, %v309
        %v1083 = vmul.f32 %v1057, %v310
        %v1084 = vmul.f32 %v1062, %v309
        %v1085 = vmul.f32 %v1067, %v310
        %v1086 = vadd.f32 %v1070, %v1071
        %v1087 = vrot.slane %v1086, 4
        %v1088 = vadd.f32 %v1086, %v1087
        %v1089 = vrot.slane %v1088, 2
        %v1090 = vadd.f32 %v1088, %v1089
        %v1091 = vrot.slane %v1090, 1
        %v1092 = vadd.f32 %v1090, %v1091
        %v1093 = vadd.f32 %v1072, %v1073
        %v1094 = vrot.slane %v1093, 4
        %v1095 = vadd.f32 %v1093, %v1094
        %v1096 = vrot.slane %v1095, 2
        %v1097 = vadd.f32 %v1095, %v1096
        %v1098 = vrot.slane %v1097, 1
        %v1099 = vadd.f32 %v1097, %v1098
        %v1100 = vadd.f32 %v1074, %v1075
        %v1101 = vrot.slane %v1100, 4
        %v1102 = vadd.f32 %v1100, %v1101
        %v1103 = vrot.slane %v1102, 2
        %v1104 = vadd.f32 %v1102, %v1103
        %v1105 = vrot.slane %v1104, 1
        %v1106 = vadd.f32 %v1104, %v1105
        %v1107 = vadd.f32 %v1076, %v1077
        %v1108 = vrot.slane %v1107, 4
        %v1109 = vadd.f32 %v1107, %v1108
        %v1110 = vrot.slane %v1109, 2
        %v1111 = vadd.f32 %v1109, %v1110
        %v1112 = vrot.slane %v1111, 1
        %v1113 = vadd.f32 %v1111, %v1112
        %v1114 = vadd.f32 %v1078, %v1079
        %v1115 = vrot.slane %v1114, 4
        %v1116 = vadd.f32 %v1114, %v1115
        %v1117 = vrot.slane %v1116, 2
        %v1118 = vadd.f32 %v1116, %v1117
        %v1119 = vrot.slane %v1118, 1
        %v1120 = vadd.f32 %v1118, %v1119
        %v1121 = vadd.f32 %v1080, %v1081
        %v1122 = vrot.slane %v1121, 4
        %v1123 = vadd.f32 %v1121, %v1122
        %v1124 = vrot.slane %v1123, 2
        %v1125 = vadd.f32 %v1123, %v1124
        %v1126 = vrot.slane %v1125, 1
        %v1127 = vadd.f32 %v1125, %v1126
        %v1128 = vadd.f32 %v1082, %v1083
        %v1129 = vrot.slane %v1128, 4
        %v1130 = vadd.f32 %v1128, %v1129
        %v1131 = vrot.slane %v1130, 2
        %v1132 = vadd.f32 %v1130, %v1131
        %v1133 = vrot.slane %v1132, 1
        %v1134 = vadd.f32 %v1132, %v1133
        %v1135 = vadd.f32 %v1084, %v1085
        %v1136 = vrot.slane %v1135, 4
        %v1137 = vadd.f32 %v1135, %v1136
        %v1138 = vrot.slane %v1137, 2
        %v1139 = vadd.f32 %v1137, %v1138
        %v1140 = vrot.slane %v1139, 1
        %v1141 = vadd.f32 %v1139, %v1140
        %v1150 = vsel %vm731, %v1099, %v1092
        %v1151 = vsel %vm733, %v1106, %v1150
        %v1152 = vsel %vm735, %v1113, %v1151
        %v1153 = vsel %vm737, %v1120, %v1152
        %v1154 = vsel %vm739, %v1127, %v1153
        %v1155 = vsel %vm741, %v1134, %v1154
        %v1156 = vsel %vm743, %v1141, %v1155
        %1158 = vst [vmem:[#allocation2 + $0x8] sm:$0xff] %v1156
        %v1159 = vmul.f32 %v992, %v322
        %v1160 = vmul.f32 %v997, %v323
        %v1161 = vmul.f32 %v1002, %v322
        %v1162 = vmul.f32 %v1007, %v323
        %v1163 = vmul.f32 %v1012, %v322
        %v1164 = vmul.f32 %v1017, %v323
        %v1165 = vmul.f32 %v1022, %v322
        %v1166 = vmul.f32 %v1027, %v323
        %v1167 = vmul.f32 %v1032, %v322
        %v1168 = vmul.f32 %v1037, %v323
        %v1169 = vmul.f32 %v1042, %v322
        %v1170 = vmul.f32 %v1047, %v323
        %v1171 = vmul.f32 %v1052, %v322
        %v1172 = vmul.f32 %v1057, %v323
        %v1173 = vmul.f32 %v1062, %v322
        %v1174 = vmul.f32 %v1067, %v323
        %v1175 = vadd.f32 %v1159, %v1160
        %v1176 = vrot.slane %v1175, 4
        %v1177 = vadd.f32 %v1175, %v1176
        %v1178 = vrot.slane %v1177, 2
        %v1179 = vadd.f32 %v1177, %v1178
        %v1180 = vrot.slane %v1179, 1
        %v1181 = vadd.f32 %v1179, %v1180
        %v1182 = vadd.f32 %v1161, %v1162
        %v1183 = vrot.slane %v1182, 4
        %v1184 = vadd.f32 %v1182, %v1183
        %v1185 = vrot.slane %v1184, 2
        %v1186 = vadd.f32 %v1184, %v1185
        %v1187 = vrot.slane %v1186, 1
        %v1188 = vadd.f32 %v1186, %v1187
        %v1189 = vadd.f32 %v1163, %v1164
        %v1190 = vrot.slane %v1189, 4
        %v1191 = vadd.f32 %v1189, %v1190
        %v1192 = vrot.slane %v1191, 2
        %v1193 = vadd.f32 %v1191, %v1192
        %v1194 = vrot.slane %v1193, 1
        %v1195 = vadd.f32 %v1193, %v1194
        %v1196 = vadd.f32 %v1165, %v1166
        %v1197 = vrot.slane %v1196, 4
        %v1198 = vadd.f32 %v1196, %v1197
        %v1199 = vrot.slane %v1198, 2
        %v1200 = vadd.f32 %v1198, %v1199
        %v1201 = vrot.slane %v1200, 1
        %v1202 = vadd.f32 %v1200, %v1201
        %v1203 = vadd.f32 %v1167, %v1168
        %v1204 = vrot.slane %v1203, 4
        %v1205 = vadd.f32 %v1203, %v1204
        %v1206 = vrot.slane %v1205, 2
        %v1207 = vadd.f32 %v1205, %v1206
        %v1208 = vrot.slane %v1207, 1
        %v1209 = vadd.f32 %v1207, %v1208
        %v1210 = vadd.f32 %v1169, %v1170
        %v1211 = vrot.slane %v1210, 4
        %v1212 = vadd.f32 %v1210, %v1211
        %v1213 = vrot.slane %v1212, 2
        %v1214 = vadd.f32 %v1212, %v1213
        %v1215 = vrot.slane %v1214, 1
        %v1216 = vadd.f32 %v1214, %v1215
        %v1217 = vadd.f32 %v1171, %v1172
        %v1218 = vrot.slane %v1217, 4
        %v1219 = vadd.f32 %v1217, %v1218
        %v1220 = vrot.slane %v1219, 2
        %v1221 = vadd.f32 %v1219, %v1220
        %v1222 = vrot.slane %v1221, 1
        %v1223 = vadd.f32 %v1221, %v1222
        %v1224 = vadd.f32 %v1173, %v1174
        %v1225 = vrot.slane %v1224, 4
        %v1226 = vadd.f32 %v1224, %v1225
        %v1227 = vrot.slane %v1226, 2
        %v1228 = vadd.f32 %v1226, %v1227
        %v1229 = vrot.slane %v1228, 1
        %v1230 = vadd.f32 %v1228, %v1229
        %v1239 = vsel %vm731, %v1188, %v1181
        %v1240 = vsel %vm733, %v1195, %v1239
        %v1241 = vsel %vm735, %v1202, %v1240
        %v1242 = vsel %vm737, %v1209, %v1241
        %v1243 = vsel %vm739, %v1216, %v1242
        %v1244 = vsel %vm741, %v1223, %v1243
        %v1245 = vsel %vm743, %v1230, %v1244
        %1247 = vst [vmem:[#allocation2 + $0x20] sm:$0xff] %v1245
        %v1248 = vmul.f32 %v992, %v336
        %v1249 = vmul.f32 %v997, %v337
        %v1250 = vmul.f32 %v1002, %v336
        %v1251 = vmul.f32 %v1007, %v337
        %v1252 = vmul.f32 %v1012, %v336
        %v1253 = vmul.f32 %v1017, %v337
        %v1254 = vmul.f32 %v1022, %v336
        %v1255 = vmul.f32 %v1027, %v337
        %v1256 = vmul.f32 %v1032, %v336
        %v1257 = vmul.f32 %v1037, %v337
        %v1258 = vmul.f32 %v1042, %v336
        %v1259 = vmul.f32 %v1047, %v337
        %v1260 = vmul.f32 %v1052, %v336
        %v1261 = vmul.f32 %v1057, %v337
        %v1262 = vmul.f32 %v1062, %v336
        %v1263 = vmul.f32 %v1067, %v337
        %v1264 = vadd.f32 %v1248, %v1249
        %v1265 = vrot.slane %v1264, 4
        %v1266 = vadd.f32 %v1264, %v1265
        %v1267 = vrot.slane %v1266, 2
        %v1268 = vadd.f32 %v1266, %v1267
        %v1269 = vrot.slane %v1268, 1
        %v1270 = vadd.f32 %v1268, %v1269
        %v1271 = vadd.f32 %v1250, %v1251
        %v1272 = vrot.slane %v1271, 4
        %v1273 = vadd.f32 %v1271, %v1272
        %v1274 = vrot.slane %v1273, 2
        %v1275 = vadd.f32 %v1273, %v1274
        %v1276 = vrot.slane %v1275, 1
        %v1277 = vadd.f32 %v1275, %v1276
        %v1278 = vadd.f32 %v1252, %v1253
        %v1279 = vrot.slane %v1278, 4
        %v1280 = vadd.f32 %v1278, %v1279
        %v1281 = vrot.slane %v1280, 2
        %v1282 = vadd.f32 %v1280, %v1281
        %v1283 = vrot.slane %v1282, 1
        %v1284 = vadd.f32 %v1282, %v1283
        %v1285 = vadd.f32 %v1254, %v1255
        %v1286 = vrot.slane %v1285, 4
        %v1287 = vadd.f32 %v1285, %v1286
        %v1288 = vrot.slane %v1287, 2
        %v1289 = vadd.f32 %v1287, %v1288
        %v1290 = vrot.slane %v1289, 1
        %v1291 = vadd.f32 %v1289, %v1290
        %v1292 = vadd.f32 %v1256, %v1257
        %v1293 = vrot.slane %v1292, 4
        %v1294 = vadd.f32 %v1292, %v1293
        %v1295 = vrot.slane %v1294, 2
        %v1296 = vadd.f32 %v1294, %v1295
        %v1297 = vrot.slane %v1296, 1
        %v1298 = vadd.f32 %v1296, %v1297
        %v1299 = vadd.f32 %v1258, %v1259
        %v1300 = vrot.slane %v1299, 4
        %v1301 = vadd.f32 %v1299, %v1300
        %v1302 = vrot.slane %v1301, 2
        %v1303 = vadd.f32 %v1301, %v1302
        %v1304 = vrot.slane %v1303, 1
        %v1305 = vadd.f32 %v1303, %v1304
        %v1306 = vadd.f32 %v1260, %v1261
        %v1307 = vrot.slane %v1306, 4
        %v1308 = vadd.f32 %v1306, %v1307
        %v1309 = vrot.slane %v1308, 2
        %v1310 = vadd.f32 %v1308, %v1309
        %v1311 = vrot.slane %v1310, 1
        %v1312 = vadd.f32 %v1310, %v1311
        %v1313 = vadd.f32 %v1262, %v1263
        %v1314 = vrot.slane %v1313, 4
        %v1315 = vadd.f32 %v1313, %v1314
        %v1316 = vrot.slane %v1315, 2
        %v1317 = vadd.f32 %v1315, %v1316
        %v1318 = vrot.slane %v1317, 1
        %v1319 = vadd.f32 %v1317, %v1318
        %v1328 = vsel %vm731, %v1277, %v1270
        %v1329 = vsel %vm733, %v1284, %v1328
        %v1330 = vsel %vm735, %v1291, %v1329
        %v1331 = vsel %vm737, %v1298, %v1330
        %v1332 = vsel %vm739, %v1305, %v1331
        %v1333 = vsel %vm741, %v1312, %v1332
        %v1334 = vsel %vm743, %v1319, %v1333
        %1336 = vst [vmem:[#allocation2 + $0x38] sm:$0xff] %v1334
        %1337 = vmatprep.subr.mxu0 0.0
        %1338 = vmatpush1.msra.mxu0 %v377
        %1339 = vmatprep.subr.mxu0 0.0
        %1340 = vmatpush1.msra.mxu0 %v378
        %1341 = vmatprep.subr.mxu0 0.0
        %1342 = vmatpush1.msra.mxu0 0.0
        %1343 = vmatprep.subr.mxu0 0.0
        %1344 = vmatpush1.msra.mxu0 0.0
        %1345 = vmatprep.subr.mxu0 0.0
        %1346 = vmatpush1.msra.mxu0 0.0
        %1347 = vmatprep.subr.mxu0 0.0
        %1348 = vmatpush1.msra.mxu0 0.0
        %1349 = vmatprep.subr.mxu0 0.0
        %1350 = vmatpush1.msra.mxu0 0.0
        %1351 = vmatprep.subr.mxu0 0.0
        %1352 = vmatpush1.msra.mxu0 0.0
        %1353 = vmatprep.subr.mxu0 0.0
        %1354 = vmatpush1.msra.mxu0 0.0
        %1355 = vmatprep.subr.mxu0 0.0
        %1356 = vmatpush1.msra.mxu0 0.0
        %1357 = vmatprep.subr.mxu0 0.0
        %1358 = vmatpush1.msra.mxu0 0.0
        %1359 = vmatprep.subr.mxu0 0.0
        %1360 = vmatpush1.msra.mxu0 0.0
        %1361 = vmatprep.subr.mxu0 0.0
        %1362 = vmatpush1.msra.mxu0 0.0
        %1363 = vmatprep.subr.mxu0 0.0
        %1364 = vmatpush1.msra.mxu0 0.0
        %1365 = vmatprep.subr.mxu0 0.0
        %1366 = vmatpush1.msra.mxu0 0.0
        %1367 = vmatprep.subr.mxu0 0.0
        %1368 = vmatpush1.msra.mxu0 0.0
        %1369 = vmatprep.subr.mxu0 0.0
        %1370 = vmatpush1.msra.mxu0 0.0
        %1371 = vmatprep.subr.mxu0 0.0
        %1372 = vmatpush1.msra.mxu0 0.0
        %1373 = vmatprep.subr.mxu0 0.0
        %1374 = vmatpush1.msra.mxu0 0.0
        %1375 = vmatprep.subr.mxu0 0.0
        %1376 = vmatpush1.msra.mxu0 0.0
        %1377 = vmatprep.subr.mxu0 0.0
        %1378 = vmatpush1.msra.mxu0 0.0
        %1379 = vmatprep.subr.mxu0 0.0
        %1380 = vmatpush1.msra.mxu0 0.0
        %1381 = vmatprep.subr.mxu0 0.0
        %1382 = vmatpush1.msra.mxu0 0.0
        %1383 = vmatprep.subr.mxu0 0.0
        %1384 = vmatpush1.msra.mxu0 0.0
        %1385 = vmatprep.subr.mxu0 0.0
        %1386 = vmatpush1.msra.mxu0 0.0
        %1387 = vmatprep.subr.mxu0 0.0
        %1388 = vmatpush1.msra.mxu0 0.0
        %1389 = vmatprep.subr.mxu0 0.0
        %1390 = vmatpush1.msra.mxu0 0.0
        %1391 = vmatprep.subr.mxu0 0.0
        %1392 = vmatpush1.msra.mxu0 0.0
        %1393 = vmatprep.subr.mxu0 0.0
        %1394 = vmatpush1.msra.mxu0 0.0
        %1395 = vmatprep.subr.mxu0 0.0
        %1396 = vmatpush1.msra.mxu0 0.0
        %1397 = vmatprep.subr.mxu0 0.0
        %1398 = vmatpush1.msra.mxu0 0.0
        %1399 = vmatprep.subr.mxu0 0.0
        %1400 = vmatpush1.msra.mxu0 0.0
        %1401 = vmatprep.mubr.f32.mxu0 0.0
        %1402 = vmatmul.mubr.f32.gmra.mrb[0].mxu0 %v459
        %v1403 = vpop.f32.mrb[0].mxu0
        %v1404 = vadd.f32 0.0, %v1403
        %v1405 = vpop.f32.mrb[0].mxu0
        %1406 = vmatprep.mubr.f32.mxu0 0.0
        %1407 = vmatmul.mubr.f32.gmra.mrb[0].mxu0 %v462
        %v1408 = vpop.f32.mrb[0].mxu0
        %v1409 = vadd.f32 0.0, %v1408
        %v1410 = vpop.f32.mrb[0].mxu0
        %1411 = vmatprep.mubr.f32.mxu0 0.0
        %1412 = vmatmul.mubr.f32.gmra.mrb[0].mxu0 %v465
        %v1413 = vpop.f32.mrb[0].mxu0
        %v1414 = vadd.f32 0.0, %v1413
        %v1415 = vpop.f32.mrb[0].mxu0
        %1416 = vmatprep.mubr.f32.mxu0 0.0
        %1417 = vmatmul.mubr.f32.gmra.mrb[0].mxu0 %v468
        %v1418 = vpop.f32.mrb[0].mxu0
        %v1419 = vadd.f32 0.0, %v1418
        %v1420 = vpop.f32.mrb[0].mxu0
        %1421 = vmatprep.mubr.f32.mxu0 0.0
        %1422 = vmatmul.mubr.f32.gmra.mrb[0].mxu0 %v471
        %v1423 = vpop.f32.mrb[0].mxu0
        %v1424 = vadd.f32 0.0, %v1423
        %v1425 = vpop.f32.mrb[0].mxu0
        %1426 = vmatprep.mubr.f32.mxu0 0.0
        %1427 = vmatmul.mubr.f32.gmra.mrb[0].mxu0 %v474
        %v1428 = vpop.f32.mrb[0].mxu0
        %v1429 = vadd.f32 0.0, %v1428
        %v1430 = vpop.f32.mrb[0].mxu0
        %1431 = vmatprep.mubr.f32.mxu0 0.0
        %1432 = vmatmul.mubr.f32.gmra.mrb[0].mxu0 %v477
        %v1433 = vpop.f32.mrb[0].mxu0
        %v1434 = vadd.f32 0.0, %v1433
        %v1435 = vpop.f32.mrb[0].mxu0
        %1436 = vmatprep.mubr.f32.mxu0 0.0
        %1437 = vmatmul.mubr.f32.gmra.mrb[0].mxu0 %v480
        %v1438 = vpop.f32.mrb[0].mxu0
        %v1439 = vadd.f32 0.0, %v1438
        %v1440 = vpop.f32.mrb[0].mxu0
        %1441 = vmatprep.mubr.f32.mxu0 0.0
        %1442 = vmatmul.mubr.f32.gmra.mrb[0].mxu0 %v483
        %v1443 = vpop.f32.mrb[0].mxu0
        %v1444 = vadd.f32 0.0, %v1443
        %v1445 = vpop.f32.mrb[0].mxu0
        %1446 = vmatprep.mubr.f32.mxu0 0.0
        %1447 = vmatmul.mubr.f32.gmra.mrb[0].mxu0 %v486
        %v1448 = vpop.f32.mrb[0].mxu0
        %v1449 = vadd.f32 0.0, %v1448
        %v1450 = vpop.f32.mrb[0].mxu0
        %1451 = vmatprep.mubr.f32.mxu0 0.0
        %1452 = vmatmul.mubr.f32.gmra.mrb[0].mxu0 %v489
        %v1453 = vpop.f32.mrb[0].mxu0
        %v1454 = vadd.f32 0.0, %v1453
        %v1455 = vpop.f32.mrb[0].mxu0
        %1456 = vmatprep.mubr.f32.mxu0 0.0
        %1457 = vmatmul.mubr.f32.gmra.mrb[0].mxu0 %v492
        %v1458 = vpop.f32.mrb[0].mxu0
        %v1459 = vadd.f32 0.0, %v1458
        %v1460 = vpop.f32.mrb[0].mxu0
        %1461 = vmatprep.mubr.f32.mxu0 0.0
        %1462 = vmatmul.mubr.f32.gmra.mrb[0].mxu0 %v495
        %v1463 = vpop.f32.mrb[0].mxu0
        %v1464 = vadd.f32 0.0, %v1463
        %v1465 = vpop.f32.mrb[0].mxu0
        %1466 = vmatprep.mubr.f32.mxu0 0.0
        %1467 = vmatmul.mubr.f32.gmra.mrb[0].mxu0 %v498
        %v1468 = vpop.f32.mrb[0].mxu0
        %v1469 = vadd.f32 0.0, %v1468
        %v1470 = vpop.f32.mrb[0].mxu0
        %1471 = vmatprep.mubr.f32.mxu0 0.0
        %1472 = vmatmul.mubr.f32.gmra.mrb[0].mxu0 %v501
        %v1473 = vpop.f32.mrb[0].mxu0
        %v1474 = vadd.f32 0.0, %v1473
        %v1475 = vpop.f32.mrb[0].mxu0
        %1476 = vmatprep.mubr.f32.mxu0 0.0
        %1477 = vmatmul.mubr.f32.gmra.mrb[0].mxu0 %v504
        %v1478 = vpop.f32.mrb[0].mxu0
        %v1479 = vadd.f32 0.0, %v1478
        %v1480 = vpop.f32.mrb[0].mxu0
        %1481 = vdwg.mxu0
        %v1482 = vmul.f32 %v1404, %v309
        %v1483 = vmul.f32 %v1409, %v310
        %v1484 = vmul.f32 %v1414, %v309
        %v1485 = vmul.f32 %v1419, %v310
        %v1486 = vmul.f32 %v1424, %v309
        %v1487 = vmul.f32 %v1429, %v310
        %v1488 = vmul.f32 %v1434, %v309
        %v1489 = vmul.f32 %v1439, %v310
        %v1490 = vmul.f32 %v1444, %v309
        %v1491 = vmul.f32 %v1449, %v310
        %v1492 = vmul.f32 %v1454, %v309
        %v1493 = vmul.f32 %v1459, %v310
        %v1494 = vmul.f32 %v1464, %v309
        %v1495 = vmul.f32 %v1469, %v310
        %v1496 = vmul.f32 %v1474, %v309
        %v1497 = vmul.f32 %v1479, %v310
        %v1498 = vadd.f32 %v1482, %v1483
        %v1499 = vrot.slane %v1498, 4
        %v1500 = vadd.f32 %v1498, %v1499
        %v1501 = vrot.slane %v1500, 2
        %v1502 = vadd.f32 %v1500, %v1501
        %v1503 = vrot.slane %v1502, 1
        %v1504 = vadd.f32 %v1502, %v1503
        %v1505 = vadd.f32 %v1484, %v1485
        %v1506 = vrot.slane %v1505, 4
        %v1507 = vadd.f32 %v1505, %v1506
        %v1508 = vrot.slane %v1507, 2
        %v1509 = vadd.f32 %v1507, %v1508
        %v1510 = vrot.slane %v1509, 1
        %v1511 = vadd.f32 %v1509, %v1510
        %v1512 = vadd.f32 %v1486, %v1487
        %v1513 = vrot.slane %v1512, 4
        %v1514 = vadd.f32 %v1512, %v1513
        %v1515 = vrot.slane %v1514, 2
        %v1516 = vadd.f32 %v1514, %v1515
        %v1517 = vrot.slane %v1516, 1
        %v1518 = vadd.f32 %v1516, %v1517
        %v1519 = vadd.f32 %v1488, %v1489
        %v1520 = vrot.slane %v1519, 4
        %v1521 = vadd.f32 %v1519, %v1520
        %v1522 = vrot.slane %v1521, 2
        %v1523 = vadd.f32 %v1521, %v1522
        %v1524 = vrot.slane %v1523, 1
        %v1525 = vadd.f32 %v1523, %v1524
        %v1526 = vadd.f32 %v1490, %v1491
        %v1527 = vrot.slane %v1526, 4
        %v1528 = vadd.f32 %v1526, %v1527
        %v1529 = vrot.slane %v1528, 2
        %v1530 = vadd.f32 %v1528, %v1529
        %v1531 = vrot.slane %v1530, 1
        %v1532 = vadd.f32 %v1530, %v1531
        %v1533 = vadd.f32 %v1492, %v1493
        %v1534 = vrot.slane %v1533, 4
        %v1535 = vadd.f32 %v1533, %v1534
        %v1536 = vrot.slane %v1535, 2
        %v1537 = vadd.f32 %v1535, %v1536
        %v1538 = vrot.slane %v1537, 1
        %v1539 = vadd.f32 %v1537, %v1538
        %v1540 = vadd.f32 %v1494, %v1495
        %v1541 = vrot.slane %v1540, 4
        %v1542 = vadd.f32 %v1540, %v1541
        %v1543 = vrot.slane %v1542, 2
        %v1544 = vadd.f32 %v1542, %v1543
        %v1545 = vrot.slane %v1544, 1
        %v1546 = vadd.f32 %v1544, %v1545
        %v1547 = vadd.f32 %v1496, %v1497
        %v1548 = vrot.slane %v1547, 4
        %v1549 = vadd.f32 %v1547, %v1548
        %v1550 = vrot.slane %v1549, 2
        %v1551 = vadd.f32 %v1549, %v1550
        %v1552 = vrot.slane %v1551, 1
        %v1553 = vadd.f32 %v1551, %v1552
        %v1562 = vsel %vm731, %v1511, %v1504
        %v1563 = vsel %vm733, %v1518, %v1562
        %v1564 = vsel %vm735, %v1525, %v1563
        %v1565 = vsel %vm737, %v1532, %v1564
        %v1566 = vsel %vm739, %v1539, %v1565
        %v1567 = vsel %vm741, %v1546, %v1566
        %v1568 = vsel %vm743, %v1553, %v1567
        %1570 = vst [vmem:[#allocation2 + $0x10] sm:$0xff] %v1568
        %v1571 = vmul.f32 %v1404, %v322
        %v1572 = vmul.f32 %v1409, %v323
        %v1573 = vmul.f32 %v1414, %v322
        %v1574 = vmul.f32 %v1419, %v323
        %v1575 = vmul.f32 %v1424, %v322
        %v1576 = vmul.f32 %v1429, %v323
        %v1577 = vmul.f32 %v1434, %v322
        %v1578 = vmul.f32 %v1439, %v323
        %v1579 = vmul.f32 %v1444, %v322
        %v1580 = vmul.f32 %v1449, %v323
        %v1581 = vmul.f32 %v1454, %v322
        %v1582 = vmul.f32 %v1459, %v323
        %v1583 = vmul.f32 %v1464, %v322
        %v1584 = vmul.f32 %v1469, %v323
        %v1585 = vmul.f32 %v1474, %v322
        %v1586 = vmul.f32 %v1479, %v323
        %v1587 = vadd.f32 %v1571, %v1572
        %v1588 = vrot.slane %v1587, 4
        %v1589 = vadd.f32 %v1587, %v1588
        %v1590 = vrot.slane %v1589, 2
        %v1591 = vadd.f32 %v1589, %v1590
        %v1592 = vrot.slane %v1591, 1
        %v1593 = vadd.f32 %v1591, %v1592
        %v1594 = vadd.f32 %v1573, %v1574
        %v1595 = vrot.slane %v1594, 4
        %v1596 = vadd.f32 %v1594, %v1595
        %v1597 = vrot.slane %v1596, 2
        %v1598 = vadd.f32 %v1596, %v1597
        %v1599 = vrot.slane %v1598, 1
        %v1600 = vadd.f32 %v1598, %v1599
        %v1601 = vadd.f32 %v1575, %v1576
        %v1602 = vrot.slane %v1601, 4
        %v1603 = vadd.f32 %v1601, %v1602
        %v1604 = vrot.slane %v1603, 2
        %v1605 = vadd.f32 %v1603, %v1604
        %v1606 = vrot.slane %v1605, 1
        %v1607 = vadd.f32 %v1605, %v1606
        %v1608 = vadd.f32 %v1577, %v1578
        %v1609 = vrot.slane %v1608, 4
        %v1610 = vadd.f32 %v1608, %v1609
        %v1611 = vrot.slane %v1610, 2
        %v1612 = vadd.f32 %v1610, %v1611
        %v1613 = vrot.slane %v1612, 1
        %v1614 = vadd.f32 %v1612, %v1613
        %v1615 = vadd.f32 %v1579, %v1580
        %v1616 = vrot.slane %v1615, 4
        %v1617 = vadd.f32 %v1615, %v1616
        %v1618 = vrot.slane %v1617, 2
        %v1619 = vadd.f32 %v1617, %v1618
        %v1620 = vrot.slane %v1619, 1
        %v1621 = vadd.f32 %v1619, %v1620
        %v1622 = vadd.f32 %v1581, %v1582
        %v1623 = vrot.slane %v1622, 4
        %v1624 = vadd.f32 %v1622, %v1623
        %v1625 = vrot.slane %v1624, 2
        %v1626 = vadd.f32 %v1624, %v1625
        %v1627 = vrot.slane %v1626, 1
        %v1628 = vadd.f32 %v1626, %v1627
        %v1629 = vadd.f32 %v1583, %v1584
        %v1630 = vrot.slane %v1629, 4
        %v1631 = vadd.f32 %v1629, %v1630
        %v1632 = vrot.slane %v1631, 2
        %v1633 = vadd.f32 %v1631, %v1632
        %v1634 = vrot.slane %v1633, 1
        %v1635 = vadd.f32 %v1633, %v1634
        %v1636 = vadd.f32 %v1585, %v1586
        %v1637 = vrot.slane %v1636, 4
        %v1638 = vadd.f32 %v1636, %v1637
        %v1639 = vrot.slane %v1638, 2
        %v1640 = vadd.f32 %v1638, %v1639
        %v1641 = vrot.slane %v1640, 1
        %v1642 = vadd.f32 %v1640, %v1641
        %v1651 = vsel %vm731, %v1600, %v1593
        %v1652 = vsel %vm733, %v1607, %v1651
        %v1653 = vsel %vm735, %v1614, %v1652
        %v1654 = vsel %vm737, %v1621, %v1653
        %v1655 = vsel %vm739, %v1628, %v1654
        %v1656 = vsel %vm741, %v1635, %v1655
        %v1657 = vsel %vm743, %v1642, %v1656
        %1659 = vst [vmem:[#allocation2 + $0x28] sm:$0xff] %v1657
        %v1660 = vmul.f32 %v1404, %v336
        %v1661 = vmul.f32 %v1409, %v337
        %v1662 = vmul.f32 %v1414, %v336
        %v1663 = vmul.f32 %v1419, %v337
        %v1664 = vmul.f32 %v1424, %v336
        %v1665 = vmul.f32 %v1429, %v337
        %v1666 = vmul.f32 %v1434, %v336
        %v1667 = vmul.f32 %v1439, %v337
        %v1668 = vmul.f32 %v1444, %v336
        %v1669 = vmul.f32 %v1449, %v337
        %v1670 = vmul.f32 %v1454, %v336
        %v1671 = vmul.f32 %v1459, %v337
        %v1672 = vmul.f32 %v1464, %v336
        %v1673 = vmul.f32 %v1469, %v337
        %v1674 = vmul.f32 %v1474, %v336
        %v1675 = vmul.f32 %v1479, %v337
        %v1676 = vadd.f32 %v1660, %v1661
        %v1677 = vrot.slane %v1676, 4
        %v1678 = vadd.f32 %v1676, %v1677
        %v1679 = vrot.slane %v1678, 2
        %v1680 = vadd.f32 %v1678, %v1679
        %v1681 = vrot.slane %v1680, 1
        %v1682 = vadd.f32 %v1680, %v1681
        %v1683 = vadd.f32 %v1662, %v1663
        %v1684 = vrot.slane %v1683, 4
        %v1685 = vadd.f32 %v1683, %v1684
        %v1686 = vrot.slane %v1685, 2
        %v1687 = vadd.f32 %v1685, %v1686
        %v1688 = vrot.slane %v1687, 1
        %v1689 = vadd.f32 %v1687, %v1688
        %v1690 = vadd.f32 %v1664, %v1665
        %v1691 = vrot.slane %v1690, 4
        %v1692 = vadd.f32 %v1690, %v1691
        %v1693 = vrot.slane %v1692, 2
        %v1694 = vadd.f32 %v1692, %v1693
        %v1695 = vrot.slane %v1694, 1
        %v1696 = vadd.f32 %v1694, %v1695
        %v1697 = vadd.f32 %v1666, %v1667
        %v1698 = vrot.slane %v1697, 4
        %v1699 = vadd.f32 %v1697, %v1698
        %v1700 = vrot.slane %v1699, 2
        %v1701 = vadd.f32 %v1699, %v1700
        %v1702 = vrot.slane %v1701, 1
        %v1703 = vadd.f32 %v1701, %v1702
        %v1704 = vadd.f32 %v1668, %v1669
        %v1705 = vrot.slane %v1704, 4
        %v1706 = vadd.f32 %v1704, %v1705
        %v1707 = vrot.slane %v1706, 2
        %v1708 = vadd.f32 %v1706, %v1707
        %v1709 = vrot.slane %v1708, 1
        %v1710 = vadd.f32 %v1708, %v1709
        %v1711 = vadd.f32 %v1670, %v1671
        %v1712 = vrot.slane %v1711, 4
        %v1713 = vadd.f32 %v1711, %v1712
        %v1714 = vrot.slane %v1713, 2
        %v1715 = vadd.f32 %v1713, %v1714
        %v1716 = vrot.slane %v1715, 1
        %v1717 = vadd.f32 %v1715, %v1716
        %v1718 = vadd.f32 %v1672, %v1673
        %v1719 = vrot.slane %v1718, 4
        %v1720 = vadd.f32 %v1718, %v1719
        %v1721 = vrot.slane %v1720, 2
        %v1722 = vadd.f32 %v1720, %v1721
        %v1723 = vrot.slane %v1722, 1
        %v1724 = vadd.f32 %v1722, %v1723
        %v1725 = vadd.f32 %v1674, %v1675
        %v1726 = vrot.slane %v1725, 4
        %v1727 = vadd.f32 %v1725, %v1726
        %v1728 = vrot.slane %v1727, 2
        %v1729 = vadd.f32 %v1727, %v1728
        %v1730 = vrot.slane %v1729, 1
        %v1731 = vadd.f32 %v1729, %v1730
        %v1740 = vsel %vm731, %v1689, %v1682
        %v1741 = vsel %vm733, %v1696, %v1740
        %v1742 = vsel %vm735, %v1703, %v1741
        %v1743 = vsel %vm737, %v1710, %v1742
        %v1744 = vsel %vm739, %v1717, %v1743
        %v1745 = vsel %vm741, %v1724, %v1744
        %v1746 = vsel %vm743, %v1731, %v1745
        %1748 = vst [vmem:[#allocation2 + $0x40] sm:$0xff] %v1746
        %1749 = vmatprep.subr.mxu0 0.0
        %1750 = vmatpush1.msra.mxu0 %v426
        %1751 = vmatprep.subr.mxu0 0.0
        %1752 = vmatpush1.msra.mxu0 %v427
        %1753 = vmatprep.subr.mxu0 0.0
        %1754 = vmatpush1.msra.mxu0 0.0
        %1755 = vmatprep.subr.mxu0 0.0
        %1756 = vmatpush1.msra.mxu0 0.0
        %1757 = vmatprep.subr.mxu0 0.0
        %1758 = vmatpush1.msra.mxu0 0.0
        %1759 = vmatprep.subr.mxu0 0.0
        %1760 = vmatpush1.msra.mxu0 0.0
        %1761 = vmatprep.subr.mxu0 0.0
        %1762 = vmatpush1.msra.mxu0 0.0
        %1763 = vmatprep.subr.mxu0 0.0
        %1764 = vmatpush1.msra.mxu0 0.0
        %1765 = vmatprep.subr.mxu0 0.0
        %1766 = vmatpush1.msra.mxu0 0.0
        %1767 = vmatprep.subr.mxu0 0.0
        %1768 = vmatpush1.msra.mxu0 0.0
        %1769 = vmatprep.subr.mxu0 0.0
        %1770 = vmatpush1.msra.mxu0 0.0
        %1771 = vmatprep.subr.mxu0 0.0
        %1772 = vmatpush1.msra.mxu0 0.0
        %1773 = vmatprep.subr.mxu0 0.0
        %1774 = vmatpush1.msra.mxu0 0.0
        %1775 = vmatprep.subr.mxu0 0.0
        %1776 = vmatpush1.msra.mxu0 0.0
        %1777 = vmatprep.subr.mxu0 0.0
        %1778 = vmatpush1.msra.mxu0 0.0
        %1779 = vmatprep.subr.mxu0 0.0
        %1780 = vmatpush1.msra.mxu0 0.0
        %1781 = vmatprep.subr.mxu0 0.0
        %1782 = vmatpush1.msra.mxu0 0.0
        %1783 = vmatprep.subr.mxu0 0.0
        %1784 = vmatpush1.msra.mxu0 0.0
        %1785 = vmatprep.subr.mxu0 0.0
        %1786 = vmatpush1.msra.mxu0 0.0
        %1787 = vmatprep.subr.mxu0 0.0
        %1788 = vmatpush1.msra.mxu0 0.0
        %1789 = vmatprep.subr.mxu0 0.0
        %1790 = vmatpush1.msra.mxu0 0.0
        %1791 = vmatprep.subr.mxu0 0.0
        %1792 = vmatpush1.msra.mxu0 0.0
        %1793 = vmatprep.subr.mxu0 0.0
        %1794 = vmatpush1.msra.mxu0 0.0
        %1795 = vmatprep.subr.mxu0 0.0
        %1796 = vmatpush1.msra.mxu0 0.0
        %1797 = vmatprep.subr.mxu0 0.0
        %1798 = vmatpush1.msra.mxu0 0.0
        %1799 = vmatprep.subr.mxu0 0.0
        %1800 = vmatpush1.msra.mxu0 0.0
        %1801 = vmatprep.subr.mxu0 0.0
        %1802 = vmatpush1.msra.mxu0 0.0
        %1803 = vmatprep.subr.mxu0 0.0
        %1804 = vmatpush1.msra.mxu0 0.0
        %1805 = vmatprep.subr.mxu0 0.0
        %1806 = vmatpush1.msra.mxu0 0.0
        %1807 = vmatprep.subr.mxu0 0.0
        %1808 = vmatpush1.msra.mxu0 0.0
        %1809 = vmatprep.subr.mxu0 0.0
        %1810 = vmatpush1.msra.mxu0 0.0
        %1811 = vmatprep.subr.mxu0 0.0
        %1812 = vmatpush1.msra.mxu0 0.0
        %1813 = vmatprep.mubr.f32.mxu0 0.0
        %1814 = vmatmul.mubr.f32.gmra.mrb[0].mxu0 %v459
        %v1815 = vpop.f32.mrb[0].mxu0
        %v1816 = vadd.f32 0.0, %v1815
        %v1817 = vpop.f32.mrb[0].mxu0
        %1818 = vmatprep.mubr.f32.mxu0 0.0
        %1819 = vmatmul.mubr.f32.gmra.mrb[0].mxu0 %v462
        %v1820 = vpop.f32.mrb[0].mxu0
        %v1821 = vadd.f32 0.0, %v1820
        %v1822 = vpop.f32.mrb[0].mxu0
        %1823 = vmatprep.mubr.f32.mxu0 0.0
        %1824 = vmatmul.mubr.f32.gmra.mrb[0].mxu0 %v465
        %v1825 = vpop.f32.mrb[0].mxu0
        %v1826 = vadd.f32 0.0, %v1825
        %v1827 = vpop.f32.mrb[0].mxu0
        %1828 = vmatprep.mubr.f32.mxu0 0.0
        %1829 = vmatmul.mubr.f32.gmra.mrb[0].mxu0 %v468
        %v1830 = vpop.f32.mrb[0].mxu0
        %v1831 = vadd.f32 0.0, %v1830
        %v1832 = vpop.f32.mrb[0].mxu0
        %1833 = vmatprep.mubr.f32.mxu0 0.0
        %1834 = vmatmul.mubr.f32.gmra.mrb[0].mxu0 %v471
        %v1835 = vpop.f32.mrb[0].mxu0
        %v1836 = vadd.f32 0.0, %v1835
        %v1837 = vpop.f32.mrb[0].mxu0
        %1838 = vmatprep.mubr.f32.mxu0 0.0
        %1839 = vmatmul.mubr.f32.gmra.mrb[0].mxu0 %v474
        %v1840 = vpop.f32.mrb[0].mxu0
        %v1841 = vadd.f32 0.0, %v1840
        %v1842 = vpop.f32.mrb[0].mxu0
        %1843 = vmatprep.mubr.f32.mxu0 0.0
        %1844 = vmatmul.mubr.f32.gmra.mrb[0].mxu0 %v477
        %v1845 = vpop.f32.mrb[0].mxu0
        %v1846 = vadd.f32 0.0, %v1845
        %v1847 = vpop.f32.mrb[0].mxu0
        %1848 = vmatprep.mubr.f32.mxu0 0.0
        %1849 = vmatmul.mubr.f32.gmra.mrb[0].mxu0 %v480
        %v1850 = vpop.f32.mrb[0].mxu0
        %v1851 = vadd.f32 0.0, %v1850
        %v1852 = vpop.f32.mrb[0].mxu0
        %1853 = vmatprep.mubr.f32.mxu0 0.0
        %1854 = vmatmul.mubr.f32.gmra.mrb[0].mxu0 %v483
        %v1855 = vpop.f32.mrb[0].mxu0
        %v1856 = vadd.f32 0.0, %v1855
        %v1857 = vpop.f32.mrb[0].mxu0
        %1858 = vmatprep.mubr.f32.mxu0 0.0
        %1859 = vmatmul.mubr.f32.gmra.mrb[0].mxu0 %v486
        %v1860 = vpop.f32.mrb[0].mxu0
        %v1861 = vadd.f32 0.0, %v1860
        %v1862 = vpop.f32.mrb[0].mxu0
        %1863 = vmatprep.mubr.f32.mxu0 0.0
        %1864 = vmatmul.mubr.f32.gmra.mrb[0].mxu0 %v489
        %v1865 = vpop.f32.mrb[0].mxu0
        %v1866 = vadd.f32 0.0, %v1865
        %v1867 = vpop.f32.mrb[0].mxu0
        %1868 = vmatprep.mubr.f32.mxu0 0.0
        %1869 = vmatmul.mubr.f32.gmra.mrb[0].mxu0 %v492
        %v1870 = vpop.f32.mrb[0].mxu0
        %v1871 = vadd.f32 0.0, %v1870
        %v1872 = vpop.f32.mrb[0].mxu0
        %1873 = vmatprep.mubr.f32.mxu0 0.0
        %1874 = vmatmul.mubr.f32.gmra.mrb[0].mxu0 %v495
        %v1875 = vpop.f32.mrb[0].mxu0
        %v1876 = vadd.f32 0.0, %v1875
        %v1877 = vpop.f32.mrb[0].mxu0
        %1878 = vmatprep.mubr.f32.mxu0 0.0
        %1879 = vmatmul.mubr.f32.gmra.mrb[0].mxu0 %v498
        %v1880 = vpop.f32.mrb[0].mxu0
        %v1881 = vadd.f32 0.0, %v1880
        %v1882 = vpop.f32.mrb[0].mxu0
        %1883 = vmatprep.mubr.f32.mxu0 0.0
        %1884 = vmatmul.mubr.f32.gmra.mrb[0].mxu0 %v501
        %v1885 = vpop.f32.mrb[0].mxu0
        %v1886 = vadd.f32 0.0, %v1885
        %v1887 = vpop.f32.mrb[0].mxu0
        %1888 = vmatprep.mubr.f32.mxu0 0.0
        %1889 = vmatmul.mubr.f32.gmra.mrb[0].mxu0 %v504
        %v1890 = vpop.f32.mrb[0].mxu0
        %v1891 = vadd.f32 0.0, %v1890
        %v1892 = vpop.f32.mrb[0].mxu0
        %1893 = vdwg.mxu0
        %v1894 = vmul.f32 %v1816, %v397
        %v1895 = vmul.f32 %v1821, %v398
        %v1896 = vmul.f32 %v1826, %v397
        %v1897 = vmul.f32 %v1831, %v398
        %v1898 = vmul.f32 %v1836, %v397
        %v1899 = vmul.f32 %v1841, %v398
        %v1900 = vmul.f32 %v1846, %v397
        %v1901 = vmul.f32 %v1851, %v398
        %v1902 = vmul.f32 %v1856, %v397
        %v1903 = vmul.f32 %v1861, %v398
        %v1904 = vmul.f32 %v1866, %v397
        %v1905 = vmul.f32 %v1871, %v398
        %v1906 = vmul.f32 %v1876, %v397
        %v1907 = vmul.f32 %v1881, %v398
        %v1908 = vmul.f32 %v1886, %v397
        %v1909 = vmul.f32 %v1891, %v398
        %v1910 = vadd.f32 %v1894, %v1895
        %v1911 = vrot.slane %v1910, 4
        %v1912 = vadd.f32 %v1910, %v1911
        %v1913 = vrot.slane %v1912, 2
        %v1914 = vadd.f32 %v1912, %v1913
        %v1915 = vrot.slane %v1914, 1
        %v1916 = vadd.f32 %v1914, %v1915
        %v1917 = vadd.f32 %v1896, %v1897
        %v1918 = vrot.slane %v1917, 4
        %v1919 = vadd.f32 %v1917, %v1918
        %v1920 = vrot.slane %v1919, 2
        %v1921 = vadd.f32 %v1919, %v1920
        %v1922 = vrot.slane %v1921, 1
        %v1923 = vadd.f32 %v1921, %v1922
        %v1924 = vadd.f32 %v1898, %v1899
        %v1925 = vrot.slane %v1924, 4
        %v1926 = vadd.f32 %v1924, %v1925
        %v1927 = vrot.slane %v1926, 2
        %v1928 = vadd.f32 %v1926, %v1927
        %v1929 = vrot.slane %v1928, 1
        %v1930 = vadd.f32 %v1928, %v1929
        %v1931 = vadd.f32 %v1900, %v1901
        %v1932 = vrot.slane %v1931, 4
        %v1933 = vadd.f32 %v1931, %v1932
        %v1934 = vrot.slane %v1933, 2
        %v1935 = vadd.f32 %v1933, %v1934
        %v1936 = vrot.slane %v1935, 1
        %v1937 = vadd.f32 %v1935, %v1936
        %v1938 = vadd.f32 %v1902, %v1903
        %v1939 = vrot.slane %v1938, 4
        %v1940 = vadd.f32 %v1938, %v1939
        %v1941 = vrot.slane %v1940, 2
        %v1942 = vadd.f32 %v1940, %v1941
        %v1943 = vrot.slane %v1942, 1
        %v1944 = vadd.f32 %v1942, %v1943
        %v1945 = vadd.f32 %v1904, %v1905
        %v1946 = vrot.slane %v1945, 4
        %v1947 = vadd.f32 %v1945, %v1946
        %v1948 = vrot.slane %v1947, 2
        %v1949 = vadd.f32 %v1947, %v1948
        %v1950 = vrot.slane %v1949, 1
        %v1951 = vadd.f32 %v1949, %v1950
        %v1952 = vadd.f32 %v1906, %v1907
        %v1953 = vrot.slane %v1952, 4
        %v1954 = vadd.f32 %v1952, %v1953
        %v1955 = vrot.slane %v1954, 2
        %v1956 = vadd.f32 %v1954, %v1955
        %v1957 = vrot.slane %v1956, 1
        %v1958 = vadd.f32 %v1956, %v1957
        %v1959 = vadd.f32 %v1908, %v1909
        %v1960 = vrot.slane %v1959, 4
        %v1961 = vadd.f32 %v1959, %v1960
        %v1962 = vrot.slane %v1961, 2
        %v1963 = vadd.f32 %v1961, %v1962
        %v1964 = vrot.slane %v1963, 1
        %v1965 = vadd.f32 %v1963, %v1964
        %v1974 = vsel %vm731, %v1923, %v1916
        %v1975 = vsel %vm733, %v1930, %v1974
        %v1976 = vsel %vm735, %v1937, %v1975
        %v1977 = vsel %vm737, %v1944, %v1976
        %v1978 = vsel %vm739, %v1951, %v1977
        %v1979 = vsel %vm741, %v1958, %v1978
        %v1980 = vsel %vm743, %v1965, %v1979
        %1982 = vst [vmem:[#allocation2 + $0x48] sm:$0xff] %v1980
        %v1983 = vmul.f32 %v1816, %v322
        %v1984 = vmul.f32 %v1821, %v323
        %v1985 = vmul.f32 %v1826, %v322
        %v1986 = vmul.f32 %v1831, %v323
        %v1987 = vmul.f32 %v1836, %v322
        %v1988 = vmul.f32 %v1841, %v323
        %v1989 = vmul.f32 %v1846, %v322
        %v1990 = vmul.f32 %v1851, %v323
        %v1991 = vmul.f32 %v1856, %v322
        %v1992 = vmul.f32 %v1861, %v323
        %v1993 = vmul.f32 %v1866, %v322
        %v1994 = vmul.f32 %v1871, %v323
        %v1995 = vmul.f32 %v1876, %v322
        %v1996 = vmul.f32 %v1881, %v323
        %v1997 = vmul.f32 %v1886, %v322
        %v1998 = vmul.f32 %v1891, %v323
        %v1999 = vadd.f32 %v1983, %v1984
        %v2000 = vrot.slane %v1999, 4
        %v2001 = vadd.f32 %v1999, %v2000
        %v2002 = vrot.slane %v2001, 2
        %v2003 = vadd.f32 %v2001, %v2002
        %v2004 = vrot.slane %v2003, 1
        %v2005 = vadd.f32 %v2003, %v2004
        %v2006 = vadd.f32 %v1985, %v1986
        %v2007 = vrot.slane %v2006, 4
        %v2008 = vadd.f32 %v2006, %v2007
        %v2009 = vrot.slane %v2008, 2
        %v2010 = vadd.f32 %v2008, %v2009
        %v2011 = vrot.slane %v2010, 1
        %v2012 = vadd.f32 %v2010, %v2011
        %v2013 = vadd.f32 %v1987, %v1988
        %v2014 = vrot.slane %v2013, 4
        %v2015 = vadd.f32 %v2013, %v2014
        %v2016 = vrot.slane %v2015, 2
        %v2017 = vadd.f32 %v2015, %v2016
        %v2018 = vrot.slane %v2017, 1
        %v2019 = vadd.f32 %v2017, %v2018
        %v2020 = vadd.f32 %v1989, %v1990
        %v2021 = vrot.slane %v2020, 4
        %v2022 = vadd.f32 %v2020, %v2021
        %v2023 = vrot.slane %v2022, 2
        %v2024 = vadd.f32 %v2022, %v2023
        %v2025 = vrot.slane %v2024, 1
        %v2026 = vadd.f32 %v2024, %v2025
        %v2027 = vadd.f32 %v1991, %v1992
        %v2028 = vrot.slane %v2027, 4
        %v2029 = vadd.f32 %v2027, %v2028
        %v2030 = vrot.slane %v2029, 2
        %v2031 = vadd.f32 %v2029, %v2030
        %v2032 = vrot.slane %v2031, 1
        %v2033 = vadd.f32 %v2031, %v2032
        %v2034 = vadd.f32 %v1993, %v1994
        %v2035 = vrot.slane %v2034, 4
        %v2036 = vadd.f32 %v2034, %v2035
        %v2037 = vrot.slane %v2036, 2
        %v2038 = vadd.f32 %v2036, %v2037
        %v2039 = vrot.slane %v2038, 1
        %v2040 = vadd.f32 %v2038, %v2039
        %v2041 = vadd.f32 %v1995, %v1996
        %v2042 = vrot.slane %v2041, 4
        %v2043 = vadd.f32 %v2041, %v2042
        %v2044 = vrot.slane %v2043, 2
        %v2045 = vadd.f32 %v2043, %v2044
        %v2046 = vrot.slane %v2045, 1
        %v2047 = vadd.f32 %v2045, %v2046
        %v2048 = vadd.f32 %v1997, %v1998
        %v2049 = vrot.slane %v2048, 4
        %v2050 = vadd.f32 %v2048, %v2049
        %v2051 = vrot.slane %v2050, 2
        %v2052 = vadd.f32 %v2050, %v2051
        %v2053 = vrot.slane %v2052, 1
        %v2054 = vadd.f32 %v2052, %v2053
        %v2063 = vsel %vm731, %v2012, %v2005
        %v2064 = vsel %vm733, %v2019, %v2063
        %v2065 = vsel %vm735, %v2026, %v2064
        %v2066 = vsel %vm737, %v2033, %v2065
        %v2067 = vsel %vm739, %v2040, %v2066
        %v2068 = vsel %vm741, %v2047, %v2067
        %v2069 = vsel %vm743, %v2054, %v2068
        %2071 = vst [vmem:[#allocation2 + $0x60] sm:$0xff] %v2069
        %v2072 = vmul.f32 %v1816, %v413
        %v2073 = vmul.f32 %v1821, %v414
        %v2074 = vmul.f32 %v1826, %v413
        %v2075 = vmul.f32 %v1831, %v414
        %v2076 = vmul.f32 %v1836, %v413
        %v2077 = vmul.f32 %v1841, %v414
        %v2078 = vmul.f32 %v1846, %v413
        %v2079 = vmul.f32 %v1851, %v414
        %v2080 = vmul.f32 %v1856, %v413
        %v2081 = vmul.f32 %v1861, %v414
        %v2082 = vmul.f32 %v1866, %v413
        %v2083 = vmul.f32 %v1871, %v414
        %v2084 = vmul.f32 %v1876, %v413
        %v2085 = vmul.f32 %v1881, %v414
        %v2086 = vmul.f32 %v1886, %v413
        %v2087 = vmul.f32 %v1891, %v414
        %v2088 = vadd.f32 %v2072, %v2073
        %v2089 = vrot.slane %v2088, 4
        %v2090 = vadd.f32 %v2088, %v2089
        %v2091 = vrot.slane %v2090, 2
        %v2092 = vadd.f32 %v2090, %v2091
        %v2093 = vrot.slane %v2092, 1
        %v2094 = vadd.f32 %v2092, %v2093
        %v2095 = vadd.f32 %v2074, %v2075
        %v2096 = vrot.slane %v2095, 4
        %v2097 = vadd.f32 %v2095, %v2096
        %v2098 = vrot.slane %v2097, 2
        %v2099 = vadd.f32 %v2097, %v2098
        %v2100 = vrot.slane %v2099, 1
        %v2101 = vadd.f32 %v2099, %v2100
        %v2102 = vadd.f32 %v2076, %v2077
        %v2103 = vrot.slane %v2102, 4
        %v2104 = vadd.f32 %v2102, %v2103
        %v2105 = vrot.slane %v2104, 2
        %v2106 = vadd.f32 %v2104, %v2105
        %v2107 = vrot.slane %v2106, 1
        %v2108 = vadd.f32 %v2106, %v2107
        %v2109 = vadd.f32 %v2078, %v2079
        %v2110 = vrot.slane %v2109, 4
        %v2111 = vadd.f32 %v2109, %v2110
        %v2112 = vrot.slane %v2111, 2
        %v2113 = vadd.f32 %v2111, %v2112
        %v2114 = vrot.slane %v2113, 1
        %v2115 = vadd.f32 %v2113, %v2114
        %v2116 = vadd.f32 %v2080, %v2081
        %v2117 = vrot.slane %v2116, 4
        %v2118 = vadd.f32 %v2116, %v2117
        %v2119 = vrot.slane %v2118, 2
        %v2120 = vadd.f32 %v2118, %v2119
        %v2121 = vrot.slane %v2120, 1
        %v2122 = vadd.f32 %v2120, %v2121
        %v2123 = vadd.f32 %v2082, %v2083
        %v2124 = vrot.slane %v2123, 4
        %v2125 = vadd.f32 %v2123, %v2124
        %v2126 = vrot.slane %v2125, 2
        %v2127 = vadd.f32 %v2125, %v2126
        %v2128 = vrot.slane %v2127, 1
        %v2129 = vadd.f32 %v2127, %v2128
        %v2130 = vadd.f32 %v2084, %v2085
        %v2131 = vrot.slane %v2130, 4
        %v2132 = vadd.f32 %v2130, %v2131
        %v2133 = vrot.slane %v2132, 2
        %v2134 = vadd.f32 %v2132, %v2133
        %v2135 = vrot.slane %v2134, 1
        %v2136 = vadd.f32 %v2134, %v2135
        %v2137 = vadd.f32 %v2086, %v2087
        %v2138 = vrot.slane %v2137, 4
        %v2139 = vadd.f32 %v2137, %v2138
        %v2140 = vrot.slane %v2139, 2
        %v2141 = vadd.f32 %v2139, %v2140
        %v2142 = vrot.slane %v2141, 1
        %v2143 = vadd.f32 %v2141, %v2142
        %v2152 = vsel %vm731, %v2101, %v2094
        %v2153 = vsel %vm733, %v2108, %v2152
        %v2154 = vsel %vm735, %v2115, %v2153
        %v2155 = vsel %vm737, %v2122, %v2154
        %v2156 = vsel %vm739, %v2129, %v2155
        %v2157 = vsel %vm741, %v2136, %v2156
        %v2158 = vsel %vm743, %v2143, %v2157
        %2160 = vst [vmem:[#allocation2 + $0x78] sm:$0xff] %v2158
        %v2161 = vmul.f32 %v992, %v397
        %v2162 = vmul.f32 %v997, %v398
        %v2163 = vmul.f32 %v1002, %v397
        %v2164 = vmul.f32 %v1007, %v398
        %v2165 = vmul.f32 %v1012, %v397
        %v2166 = vmul.f32 %v1017, %v398
        %v2167 = vmul.f32 %v1022, %v397
        %v2168 = vmul.f32 %v1027, %v398
        %v2169 = vmul.f32 %v1032, %v397
        %v2170 = vmul.f32 %v1037, %v398
        %v2171 = vmul.f32 %v1042, %v397
        %v2172 = vmul.f32 %v1047, %v398
        %v2173 = vmul.f32 %v1052, %v397
        %v2174 = vmul.f32 %v1057, %v398
        %v2175 = vmul.f32 %v1062, %v397
        %v2176 = vmul.f32 %v1067, %v398
        %v2177 = vadd.f32 %v2161, %v2162
        %v2178 = vrot.slane %v2177, 4
        %v2179 = vadd.f32 %v2177, %v2178
        %v2180 = vrot.slane %v2179, 2
        %v2181 = vadd.f32 %v2179, %v2180
        %v2182 = vrot.slane %v2181, 1
        %v2183 = vadd.f32 %v2181, %v2182
        %v2184 = vadd.f32 %v2163, %v2164
        %v2185 = vrot.slane %v2184, 4
        %v2186 = vadd.f32 %v2184, %v2185
        %v2187 = vrot.slane %v2186, 2
        %v2188 = vadd.f32 %v2186, %v2187
        %v2189 = vrot.slane %v2188, 1
        %v2190 = vadd.f32 %v2188, %v2189
        %v2191 = vadd.f32 %v2165, %v2166
        %v2192 = vrot.slane %v2191, 4
        %v2193 = vadd.f32 %v2191, %v2192
        %v2194 = vrot.slane %v2193, 2
        %v2195 = vadd.f32 %v2193, %v2194
        %v2196 = vrot.slane %v2195, 1
        %v2197 = vadd.f32 %v2195, %v2196
        %v2198 = vadd.f32 %v2167, %v2168
        %v2199 = vrot.slane %v2198, 4
        %v2200 = vadd.f32 %v2198, %v2199
        %v2201 = vrot.slane %v2200, 2
        %v2202 = vadd.f32 %v2200, %v2201
        %v2203 = vrot.slane %v2202, 1
        %v2204 = vadd.f32 %v2202, %v2203
        %v2205 = vadd.f32 %v2169, %v2170
        %v2206 = vrot.slane %v2205, 4
        %v2207 = vadd.f32 %v2205, %v2206
        %v2208 = vrot.slane %v2207, 2
        %v2209 = vadd.f32 %v2207, %v2208
        %v2210 = vrot.slane %v2209, 1
        %v2211 = vadd.f32 %v2209, %v2210
        %v2212 = vadd.f32 %v2171, %v2172
        %v2213 = vrot.slane %v2212, 4
        %v2214 = vadd.f32 %v2212, %v2213
        %v2215 = vrot.slane %v2214, 2
        %v2216 = vadd.f32 %v2214, %v2215
        %v2217 = vrot.slane %v2216, 1
        %v2218 = vadd.f32 %v2216, %v2217
        %v2219 = vadd.f32 %v2173, %v2174
        %v2220 = vrot.slane %v2219, 4
        %v2221 = vadd.f32 %v2219, %v2220
        %v2222 = vrot.slane %v2221, 2
        %v2223 = vadd.f32 %v2221, %v2222
        %v2224 = vrot.slane %v2223, 1
        %v2225 = vadd.f32 %v2223, %v2224
        %v2226 = vadd.f32 %v2175, %v2176
        %v2227 = vrot.slane %v2226, 4
        %v2228 = vadd.f32 %v2226, %v2227
        %v2229 = vrot.slane %v2228, 2
        %v2230 = vadd.f32 %v2228, %v2229
        %v2231 = vrot.slane %v2230, 1
        %v2232 = vadd.f32 %v2230, %v2231
        %v2241 = vsel %vm731, %v2190, %v2183
        %v2242 = vsel %vm733, %v2197, %v2241
        %v2243 = vsel %vm735, %v2204, %v2242
        %v2244 = vsel %vm737, %v2211, %v2243
        %v2245 = vsel %vm739, %v2218, %v2244
        %v2246 = vsel %vm741, %v2225, %v2245
        %v2247 = vsel %vm743, %v2232, %v2246
        %2249 = vst [vmem:[#allocation2 + $0x50] sm:$0xff] %v2247
        %2250 = vst [vmem:[#allocation2 + $0x68] sm:$0xff] %v1245
        %v2251 = vmul.f32 %v992, %v413
        %v2252 = vmul.f32 %v997, %v414
        %v2253 = vmul.f32 %v1002, %v413
        %v2254 = vmul.f32 %v1007, %v414
        %v2255 = vmul.f32 %v1012, %v413
        %v2256 = vmul.f32 %v1017, %v414
        %v2257 = vmul.f32 %v1022, %v413
        %v2258 = vmul.f32 %v1027, %v414
        %v2259 = vmul.f32 %v1032, %v413
        %v2260 = vmul.f32 %v1037, %v414
        %v2261 = vmul.f32 %v1042, %v413
        %v2262 = vmul.f32 %v1047, %v414
        %v2263 = vmul.f32 %v1052, %v413
        %v2264 = vmul.f32 %v1057, %v414
        %v2265 = vmul.f32 %v1062, %v413
        %v2266 = vmul.f32 %v1067, %v414
        %v2267 = vadd.f32 %v2251, %v2252
        %v2268 = vrot.slane %v2267, 4
        %v2269 = vadd.f32 %v2267, %v2268
        %v2270 = vrot.slane %v2269, 2
        %v2271 = vadd.f32 %v2269, %v2270
        %v2272 = vrot.slane %v2271, 1
        %v2273 = vadd.f32 %v2271, %v2272
        %v2274 = vadd.f32 %v2253, %v2254
        %v2275 = vrot.slane %v2274, 4
        %v2276 = vadd.f32 %v2274, %v2275
        %v2277 = vrot.slane %v2276, 2
        %v2278 = vadd.f32 %v2276, %v2277
        %v2279 = vrot.slane %v2278, 1
        %v2280 = vadd.f32 %v2278, %v2279
        %v2281 = vadd.f32 %v2255, %v2256
        %v2282 = vrot.slane %v2281, 4
        %v2283 = vadd.f32 %v2281, %v2282
        %v2284 = vrot.slane %v2283, 2
        %v2285 = vadd.f32 %v2283, %v2284
        %v2286 = vrot.slane %v2285, 1
        %v2287 = vadd.f32 %v2285, %v2286
        %v2288 = vadd.f32 %v2257, %v2258
        %v2289 = vrot.slane %v2288, 4
        %v2290 = vadd.f32 %v2288, %v2289
        %v2291 = vrot.slane %v2290, 2
        %v2292 = vadd.f32 %v2290, %v2291
        %v2293 = vrot.slane %v2292, 1
        %v2294 = vadd.f32 %v2292, %v2293
        %v2295 = vadd.f32 %v2259, %v2260
        %v2296 = vrot.slane %v2295, 4
        %v2297 = vadd.f32 %v2295, %v2296
        %v2298 = vrot.slane %v2297, 2
        %v2299 = vadd.f32 %v2297, %v2298
        %v2300 = vrot.slane %v2299, 1
        %v2301 = vadd.f32 %v2299, %v2300
        %v2302 = vadd.f32 %v2261, %v2262
        %v2303 = vrot.slane %v2302, 4
        %v2304 = vadd.f32 %v2302, %v2303
        %v2305 = vrot.slane %v2304, 2
        %v2306 = vadd.f32 %v2304, %v2305
        %v2307 = vrot.slane %v2306, 1
        %v2308 = vadd.f32 %v2306, %v2307
        %v2309 = vadd.f32 %v2263, %v2264
        %v2310 = vrot.slane %v2309, 4
        %v2311 = vadd.f32 %v2309, %v2310
        %v2312 = vrot.slane %v2311, 2
        %v2313 = vadd.f32 %v2311, %v2312
        %v2314 = vrot.slane %v2313, 1
        %v2315 = vadd.f32 %v2313, %v2314
        %v2316 = vadd.f32 %v2265, %v2266
        %v2317 = vrot.slane %v2316, 4
        %v2318 = vadd.f32 %v2316, %v2317
        %v2319 = vrot.slane %v2318, 2
        %v2320 = vadd.f32 %v2318, %v2319
        %v2321 = vrot.slane %v2320, 1
        %v2322 = vadd.f32 %v2320, %v2321
        %v2331 = vsel %vm731, %v2280, %v2273
        %v2332 = vsel %vm733, %v2287, %v2331
        %v2333 = vsel %vm735, %v2294, %v2332
        %v2334 = vsel %vm737, %v2301, %v2333
        %v2335 = vsel %vm739, %v2308, %v2334
        %v2336 = vsel %vm741, %v2315, %v2335
        %v2337 = vsel %vm743, %v2322, %v2336
        %2339 = vst [vmem:[#allocation2 + $0x80] sm:$0xff] %v2337
        %2340 = vmatprep.subr.mxu0 0.0
        %2341 = vmatpush1.msra.mxu0 %v439
        %2342 = vmatprep.subr.mxu0 0.0
        %2343 = vmatpush1.msra.mxu0 %v440
        %2344 = vmatprep.subr.mxu0 0.0
        %2345 = vmatpush1.msra.mxu0 0.0
        %2346 = vmatprep.subr.mxu0 0.0
        %2347 = vmatpush1.msra.mxu0 0.0
        %2348 = vmatprep.subr.mxu0 0.0
        %2349 = vmatpush1.msra.mxu0 0.0
        %2350 = vmatprep.subr.mxu0 0.0
        %2351 = vmatpush1.msra.mxu0 0.0
        %2352 = vmatprep.subr.mxu0 0.0
        %2353 = vmatpush1.msra.mxu0 0.0
        %2354 = vmatprep.subr.mxu0 0.0
        %2355 = vmatpush1.msra.mxu0 0.0
        %2356 = vmatprep.subr.mxu0 0.0
        %2357 = vmatpush1.msra.mxu0 0.0
        %2358 = vmatprep.subr.mxu0 0.0
        %2359 = vmatpush1.msra.mxu0 0.0
        %2360 = vmatprep.subr.mxu0 0.0
        %2361 = vmatpush1.msra.mxu0 0.0
        %2362 = vmatprep.subr.mxu0 0.0
        %2363 = vmatpush1.msra.mxu0 0.0
        %2364 = vmatprep.subr.mxu0 0.0
        %2365 = vmatpush1.msra.mxu0 0.0
        %2366 = vmatprep.subr.mxu0 0.0
        %2367 = vmatpush1.msra.mxu0 0.0
        %2368 = vmatprep.subr.mxu0 0.0
        %2369 = vmatpush1.msra.mxu0 0.0
        %2370 = vmatprep.subr.mxu0 0.0
        %2371 = vmatpush1.msra.mxu0 0.0
        %2372 = vmatprep.subr.mxu0 0.0
        %2373 = vmatpush1.msra.mxu0 0.0
        %2374 = vmatprep.subr.mxu0 0.0
        %2375 = vmatpush1.msra.mxu0 0.0
        %2376 = vmatprep.subr.mxu0 0.0
        %2377 = vmatpush1.msra.mxu0 0.0
        %2378 = vmatprep.subr.mxu0 0.0
        %2379 = vmatpush1.msra.mxu0 0.0
        %2380 = vmatprep.subr.mxu0 0.0
        %2381 = vmatpush1.msra.mxu0 0.0
        %2382 = vmatprep.subr.mxu0 0.0
        %2383 = vmatpush1.msra.mxu0 0.0
        %2384 = vmatprep.subr.mxu0 0.0
        %2385 = vmatpush1.msra.mxu0 0.0
        %2386 = vmatprep.subr.mxu0 0.0
        %2387 = vmatpush1.msra.mxu0 0.0
        %2388 = vmatprep.subr.mxu0 0.0
        %2389 = vmatpush1.msra.mxu0 0.0
        %2390 = vmatprep.subr.mxu0 0.0
        %2391 = vmatpush1.msra.mxu0 0.0
        %2392 = vmatprep.subr.mxu0 0.0
        %2393 = vmatpush1.msra.mxu0 0.0
        %2394 = vmatprep.subr.mxu0 0.0
        %2395 = vmatpush1.msra.mxu0 0.0
        %2396 = vmatprep.subr.mxu0 0.0
        %2397 = vmatpush1.msra.mxu0 0.0
        %2398 = vmatprep.subr.mxu0 0.0
        %2399 = vmatpush1.msra.mxu0 0.0
        %2400 = vmatprep.subr.mxu0 0.0
        %2401 = vmatpush1.msra.mxu0 0.0
        %2402 = vmatprep.subr.mxu0 0.0
        %2403 = vmatpush1.msra.mxu0 0.0
        %2404 = vmatprep.mubr.f32.mxu0 0.0
        %2405 = vmatmul.mubr.f32.gmra.mrb[0].mxu0 %v459
        %v2406 = vpop.f32.mrb[0].mxu0
        %v2407 = vadd.f32 0.0, %v2406
        %v2408 = vpop.f32.mrb[0].mxu0
        %2409 = vmatprep.mubr.f32.mxu0 0.0
        %2410 = vmatmul.mubr.f32.gmra.mrb[0].mxu0 %v462
        %v2411 = vpop.f32.mrb[0].mxu0
        %v2412 = vadd.f32 0.0, %v2411
        %v2413 = vpop.f32.mrb[0].mxu0
        %2414 = vmatprep.mubr.f32.mxu0 0.0
        %2415 = vmatmul.mubr.f32.gmra.mrb[0].mxu0 %v465
        %v2416 = vpop.f32.mrb[0].mxu0
        %v2417 = vadd.f32 0.0, %v2416
        %v2418 = vpop.f32.mrb[0].mxu0
        %2419 = vmatprep.mubr.f32.mxu0 0.0
        %2420 = vmatmul.mubr.f32.gmra.mrb[0].mxu0 %v468
        %v2421 = vpop.f32.mrb[0].mxu0
        %v2422 = vadd.f32 0.0, %v2421
        %v2423 = vpop.f32.mrb[0].mxu0
        %2424 = vmatprep.mubr.f32.mxu0 0.0
        %2425 = vmatmul.mubr.f32.gmra.mrb[0].mxu0 %v471
        %v2426 = vpop.f32.mrb[0].mxu0
        %v2427 = vadd.f32 0.0, %v2426
        %v2428 = vpop.f32.mrb[0].mxu0
        %2429 = vmatprep.mubr.f32.mxu0 0.0
        %2430 = vmatmul.mubr.f32.gmra.mrb[0].mxu0 %v474
        %v2431 = vpop.f32.mrb[0].mxu0
        %v2432 = vadd.f32 0.0, %v2431
        %v2433 = vpop.f32.mrb[0].mxu0
        %2434 = vmatprep.mubr.f32.mxu0 0.0
        %2435 = vmatmul.mubr.f32.gmra.mrb[0].mxu0 %v477
        %v2436 = vpop.f32.mrb[0].mxu0
        %v2437 = vadd.f32 0.0, %v2436
        %v2438 = vpop.f32.mrb[0].mxu0
        %2439 = vmatprep.mubr.f32.mxu0 0.0
        %2440 = vmatmul.mubr.f32.gmra.mrb[0].mxu0 %v480
        %v2441 = vpop.f32.mrb[0].mxu0
        %v2442 = vadd.f32 0.0, %v2441
        %v2443 = vpop.f32.mrb[0].mxu0
        %2444 = vmatprep.mubr.f32.mxu0 0.0
        %2445 = vmatmul.mubr.f32.gmra.mrb[0].mxu0 %v483
        %v2446 = vpop.f32.mrb[0].mxu0
        %v2447 = vadd.f32 0.0, %v2446
        %v2448 = vpop.f32.mrb[0].mxu0
        %2449 = vmatprep.mubr.f32.mxu0 0.0
        %2450 = vmatmul.mubr.f32.gmra.mrb[0].mxu0 %v486
        %v2451 = vpop.f32.mrb[0].mxu0
        %v2452 = vadd.f32 0.0, %v2451
        %v2453 = vpop.f32.mrb[0].mxu0
        %2454 = vmatprep.mubr.f32.mxu0 0.0
        %2455 = vmatmul.mubr.f32.gmra.mrb[0].mxu0 %v489
        %v2456 = vpop.f32.mrb[0].mxu0
        %v2457 = vadd.f32 0.0, %v2456
        %v2458 = vpop.f32.mrb[0].mxu0
        %2459 = vmatprep.mubr.f32.mxu0 0.0
        %2460 = vmatmul.mubr.f32.gmra.mrb[0].mxu0 %v492
        %v2461 = vpop.f32.mrb[0].mxu0
        %v2462 = vadd.f32 0.0, %v2461
        %v2463 = vpop.f32.mrb[0].mxu0
        %2464 = vmatprep.mubr.f32.mxu0 0.0
        %2465 = vmatmul.mubr.f32.gmra.mrb[0].mxu0 %v495
        %v2466 = vpop.f32.mrb[0].mxu0
        %v2467 = vadd.f32 0.0, %v2466
        %v2468 = vpop.f32.mrb[0].mxu0
        %2469 = vmatprep.mubr.f32.mxu0 0.0
        %2470 = vmatmul.mubr.f32.gmra.mrb[0].mxu0 %v498
        %v2471 = vpop.f32.mrb[0].mxu0
        %v2472 = vadd.f32 0.0, %v2471
        %v2473 = vpop.f32.mrb[0].mxu0
        %2474 = vmatprep.mubr.f32.mxu0 0.0
        %2475 = vmatmul.mubr.f32.gmra.mrb[0].mxu0 %v501
        %v2476 = vpop.f32.mrb[0].mxu0
        %v2477 = vadd.f32 0.0, %v2476
        %v2478 = vpop.f32.mrb[0].mxu0
        %2479 = vmatprep.mubr.f32.mxu0 0.0
        %2480 = vmatmul.mubr.f32.gmra.mrb[0].mxu0 %v504
        %v2481 = vpop.f32.mrb[0].mxu0
        %v2482 = vadd.f32 0.0, %v2481
        %v2483 = vpop.f32.mrb[0].mxu0
        %2484 = vdwg.mxu0
        %v2485 = vmul.f32 %v2407, %v397
        %v2486 = vmul.f32 %v2412, %v398
        %v2487 = vmul.f32 %v2417, %v397
        %v2488 = vmul.f32 %v2422, %v398
        %v2489 = vmul.f32 %v2427, %v397
        %v2490 = vmul.f32 %v2432, %v398
        %v2491 = vmul.f32 %v2437, %v397
        %v2492 = vmul.f32 %v2442, %v398
        %v2493 = vmul.f32 %v2447, %v397
        %v2494 = vmul.f32 %v2452, %v398
        %v2495 = vmul.f32 %v2457, %v397
        %v2496 = vmul.f32 %v2462, %v398
        %v2497 = vmul.f32 %v2467, %v397
        %v2498 = vmul.f32 %v2472, %v398
        %v2499 = vmul.f32 %v2477, %v397
        %v2500 = vmul.f32 %v2482, %v398
        %v2501 = vadd.f32 %v2485, %v2486
        %v2502 = vrot.slane %v2501, 4
        %v2503 = vadd.f32 %v2501, %v2502
        %v2504 = vrot.slane %v2503, 2
        %v2505 = vadd.f32 %v2503, %v2504
        %v2506 = vrot.slane %v2505, 1
        %v2507 = vadd.f32 %v2505, %v2506
        %v2508 = vadd.f32 %v2487, %v2488
        %v2509 = vrot.slane %v2508, 4
        %v2510 = vadd.f32 %v2508, %v2509
        %v2511 = vrot.slane %v2510, 2
        %v2512 = vadd.f32 %v2510, %v2511
        %v2513 = vrot.slane %v2512, 1
        %v2514 = vadd.f32 %v2512, %v2513
        %v2515 = vadd.f32 %v2489, %v2490
        %v2516 = vrot.slane %v2515, 4
        %v2517 = vadd.f32 %v2515, %v2516
        %v2518 = vrot.slane %v2517, 2
        %v2519 = vadd.f32 %v2517, %v2518
        %v2520 = vrot.slane %v2519, 1
        %v2521 = vadd.f32 %v2519, %v2520
        %v2522 = vadd.f32 %v2491, %v2492
        %v2523 = vrot.slane %v2522, 4
        %v2524 = vadd.f32 %v2522, %v2523
        %v2525 = vrot.slane %v2524, 2
        %v2526 = vadd.f32 %v2524, %v2525
        %v2527 = vrot.slane %v2526, 1
        %v2528 = vadd.f32 %v2526, %v2527
        %v2529 = vadd.f32 %v2493, %v2494
        %v2530 = vrot.slane %v2529, 4
        %v2531 = vadd.f32 %v2529, %v2530
        %v2532 = vrot.slane %v2531, 2
        %v2533 = vadd.f32 %v2531, %v2532
        %v2534 = vrot.slane %v2533, 1
        %v2535 = vadd.f32 %v2533, %v2534
        %v2536 = vadd.f32 %v2495, %v2496
        %v2537 = vrot.slane %v2536, 4
        %v2538 = vadd.f32 %v2536, %v2537
        %v2539 = vrot.slane %v2538, 2
        %v2540 = vadd.f32 %v2538, %v2539
        %v2541 = vrot.slane %v2540, 1
        %v2542 = vadd.f32 %v2540, %v2541
        %v2543 = vadd.f32 %v2497, %v2498
        %v2544 = vrot.slane %v2543, 4
        %v2545 = vadd.f32 %v2543, %v2544
        %v2546 = vrot.slane %v2545, 2
        %v2547 = vadd.f32 %v2545, %v2546
        %v2548 = vrot.slane %v2547, 1
        %v2549 = vadd.f32 %v2547, %v2548
        %v2550 = vadd.f32 %v2499, %v2500
        %v2551 = vrot.slane %v2550, 4
        %v2552 = vadd.f32 %v2550, %v2551
        %v2553 = vrot.slane %v2552, 2
        %v2554 = vadd.f32 %v2552, %v2553
        %v2555 = vrot.slane %v2554, 1
        %v2556 = vadd.f32 %v2554, %v2555
        %v2565 = vsel %vm731, %v2514, %v2507
        %v2566 = vsel %vm733, %v2521, %v2565
        %v2567 = vsel %vm735, %v2528, %v2566
        %v2568 = vsel %vm737, %v2535, %v2567
        %v2569 = vsel %vm739, %v2542, %v2568
        %v2570 = vsel %vm741, %v2549, %v2569
        %v2571 = vsel %vm743, %v2556, %v2570
        %2573 = vst [vmem:[#allocation2 + $0x58] sm:$0xff] %v2571
        %v2574 = vmul.f32 %v2407, %v322
        %v2575 = vmul.f32 %v2412, %v323
        %v2576 = vmul.f32 %v2417, %v322
        %v2577 = vmul.f32 %v2422, %v323
        %v2578 = vmul.f32 %v2427, %v322
        %v2579 = vmul.f32 %v2432, %v323
        %v2580 = vmul.f32 %v2437, %v322
        %v2581 = vmul.f32 %v2442, %v323
        %v2582 = vmul.f32 %v2447, %v322
        %v2583 = vmul.f32 %v2452, %v323
        %v2584 = vmul.f32 %v2457, %v322
        %v2585 = vmul.f32 %v2462, %v323
        %v2586 = vmul.f32 %v2467, %v322
        %v2587 = vmul.f32 %v2472, %v323
        %v2588 = vmul.f32 %v2477, %v322
        %v2589 = vmul.f32 %v2482, %v323
        %v2590 = vadd.f32 %v2574, %v2575
        %v2591 = vrot.slane %v2590, 4
        %v2592 = vadd.f32 %v2590, %v2591
        %v2593 = vrot.slane %v2592, 2
        %v2594 = vadd.f32 %v2592, %v2593
        %v2595 = vrot.slane %v2594, 1
        %v2596 = vadd.f32 %v2594, %v2595
        %v2597 = vadd.f32 %v2576, %v2577
        %v2598 = vrot.slane %v2597, 4
        %v2599 = vadd.f32 %v2597, %v2598
        %v2600 = vrot.slane %v2599, 2
        %v2601 = vadd.f32 %v2599, %v2600
        %v2602 = vrot.slane %v2601, 1
        %v2603 = vadd.f32 %v2601, %v2602
        %v2604 = vadd.f32 %v2578, %v2579
        %v2605 = vrot.slane %v2604, 4
        %v2606 = vadd.f32 %v2604, %v2605
        %v2607 = vrot.slane %v2606, 2
        %v2608 = vadd.f32 %v2606, %v2607
        %v2609 = vrot.slane %v2608, 1
        %v2610 = vadd.f32 %v2608, %v2609
        %v2611 = vadd.f32 %v2580, %v2581
        %v2612 = vrot.slane %v2611, 4
        %v2613 = vadd.f32 %v2611, %v2612
        %v2614 = vrot.slane %v2613, 2
        %v2615 = vadd.f32 %v2613, %v2614
        %v2616 = vrot.slane %v2615, 1
        %v2617 = vadd.f32 %v2615, %v2616
        %v2618 = vadd.f32 %v2582, %v2583
        %v2619 = vrot.slane %v2618, 4
        %v2620 = vadd.f32 %v2618, %v2619
        %v2621 = vrot.slane %v2620, 2
        %v2622 = vadd.f32 %v2620, %v2621
        %v2623 = vrot.slane %v2622, 1
        %v2624 = vadd.f32 %v2622, %v2623
        %v2625 = vadd.f32 %v2584, %v2585
        %v2626 = vrot.slane %v2625, 4
        %v2627 = vadd.f32 %v2625, %v2626
        %v2628 = vrot.slane %v2627, 2
        %v2629 = vadd.f32 %v2627, %v2628
        %v2630 = vrot.slane %v2629, 1
        %v2631 = vadd.f32 %v2629, %v2630
        %v2632 = vadd.f32 %v2586, %v2587
        %v2633 = vrot.slane %v2632, 4
        %v2634 = vadd.f32 %v2632, %v2633
        %v2635 = vrot.slane %v2634, 2
        %v2636 = vadd.f32 %v2634, %v2635
        %v2637 = vrot.slane %v2636, 1
        %v2638 = vadd.f32 %v2636, %v2637
        %v2639 = vadd.f32 %v2588, %v2589
        %v2640 = vrot.slane %v2639, 4
        %v2641 = vadd.f32 %v2639, %v2640
        %v2642 = vrot.slane %v2641, 2
        %v2643 = vadd.f32 %v2641, %v2642
        %v2644 = vrot.slane %v2643, 1
        %v2645 = vadd.f32 %v2643, %v2644
        %v2654 = vsel %vm731, %v2603, %v2596
        %v2655 = vsel %vm733, %v2610, %v2654
        %v2656 = vsel %vm735, %v2617, %v2655
        %v2657 = vsel %vm737, %v2624, %v2656
        %v2658 = vsel %vm739, %v2631, %v2657
        %v2659 = vsel %vm741, %v2638, %v2658
        %v2660 = vsel %vm743, %v2645, %v2659
        %2662 = vst [vmem:[#allocation2 + $0x70] sm:$0xff] %v2660
        %v2663 = vmul.f32 %v2407, %v413
        %v2664 = vmul.f32 %v2412, %v414
        %v2665 = vmul.f32 %v2417, %v413
        %v2666 = vmul.f32 %v2422, %v414
        %v2667 = vmul.f32 %v2427, %v413
        %v2668 = vmul.f32 %v2432, %v414
        %v2669 = vmul.f32 %v2437, %v413
        %v2670 = vmul.f32 %v2442, %v414
        %v2671 = vmul.f32 %v2447, %v413
        %v2672 = vmul.f32 %v2452, %v414
        %v2673 = vmul.f32 %v2457, %v413
        %v2674 = vmul.f32 %v2462, %v414
        %v2675 = vmul.f32 %v2467, %v413
        %v2676 = vmul.f32 %v2472, %v414
        %v2677 = vmul.f32 %v2477, %v413
        %v2678 = vmul.f32 %v2482, %v414
        %v2679 = vadd.f32 %v2663, %v2664
        %v2680 = vrot.slane %v2679, 4
        %v2681 = vadd.f32 %v2679, %v2680
        %v2682 = vrot.slane %v2681, 2
        %v2683 = vadd.f32 %v2681, %v2682
        %v2684 = vrot.slane %v2683, 1
        %v2685 = vadd.f32 %v2683, %v2684
        %v2686 = vadd.f32 %v2665, %v2666
        %v2687 = vrot.slane %v2686, 4
        %v2688 = vadd.f32 %v2686, %v2687
        %v2689 = vrot.slane %v2688, 2
        %v2690 = vadd.f32 %v2688, %v2689
        %v2691 = vrot.slane %v2690, 1
        %v2692 = vadd.f32 %v2690, %v2691
        %v2693 = vadd.f32 %v2667, %v2668
        %v2694 = vrot.slane %v2693, 4
        %v2695 = vadd.f32 %v2693, %v2694
        %v2696 = vrot.slane %v2695, 2
        %v2697 = vadd.f32 %v2695, %v2696
        %v2698 = vrot.slane %v2697, 1
        %v2699 = vadd.f32 %v2697, %v2698
        %v2700 = vadd.f32 %v2669, %v2670
        %v2701 = vrot.slane %v2700, 4
        %v2702 = vadd.f32 %v2700, %v2701
        %v2703 = vrot.slane %v2702, 2
        %v2704 = vadd.f32 %v2702, %v2703
        %v2705 = vrot.slane %v2704, 1
        %v2706 = vadd.f32 %v2704, %v2705
        %v2707 = vadd.f32 %v2671, %v2672
        %v2708 = vrot.slane %v2707, 4
        %v2709 = vadd.f32 %v2707, %v2708
        %v2710 = vrot.slane %v2709, 2
        %v2711 = vadd.f32 %v2709, %v2710
        %v2712 = vrot.slane %v2711, 1
        %v2713 = vadd.f32 %v2711, %v2712
        %v2714 = vadd.f32 %v2673, %v2674
        %v2715 = vrot.slane %v2714, 4
        %v2716 = vadd.f32 %v2714, %v2715
        %v2717 = vrot.slane %v2716, 2
        %v2718 = vadd.f32 %v2716, %v2717
        %v2719 = vrot.slane %v2718, 1
        %v2720 = vadd.f32 %v2718, %v2719
        %v2721 = vadd.f32 %v2675, %v2676
        %v2722 = vrot.slane %v2721, 4
        %v2723 = vadd.f32 %v2721, %v2722
        %v2724 = vrot.slane %v2723, 2
        %v2725 = vadd.f32 %v2723, %v2724
        %v2726 = vrot.slane %v2725, 1
        %v2727 = vadd.f32 %v2725, %v2726
        %v2728 = vadd.f32 %v2677, %v2678
        %v2729 = vrot.slane %v2728, 4
        %v2730 = vadd.f32 %v2728, %v2729
        %v2731 = vrot.slane %v2730, 2
        %v2732 = vadd.f32 %v2730, %v2731
        %v2733 = vrot.slane %v2732, 1
        %v2734 = vadd.f32 %v2732, %v2733
        %v2743 = vsel %vm731, %v2692, %v2685
        %v2744 = vsel %vm733, %v2699, %v2743
        %v2745 = vsel %vm735, %v2706, %v2744
        %v2746 = vsel %vm737, %v2713, %v2745
        %v2747 = vsel %vm739, %v2720, %v2746
        %v2748 = vsel %vm741, %v2727, %v2747
        %v2749 = vsel %vm743, %v2734, %v2748
        %2751 = vst [vmem:[#allocation2 + $0x88] sm:$0xff] %v2749
        %v2752 = vld [vmem:[%s3] sm:$0xff]
        %v2753 = vld [vmem:[%s3 + $0x8] sm:$0xff]
        %v2754 = vld [vmem:[#allocation2] sm:$0xff]
        %v2755 = vld [vmem:[#allocation2 + $0x8] sm:$0xff]
        %v2756 = vld [vmem:[#allocation2 + $0x10] sm:$0xff]
        %v2757 = vld [vmem:[#allocation2 + $0x18] sm:$0xff]
        %v2758 = vld [vmem:[#allocation2 + $0x20] sm:$0xff]
        %v2759 = vld [vmem:[#allocation2 + $0x28] sm:$0xff]
        %v2760 = vld [vmem:[#allocation2 + $0x30] sm:$0xff]
        %v2761 = vld [vmem:[#allocation2 + $0x38] sm:$0xff]
        %v2762 = vld [vmem:[#allocation2 + $0x40] sm:$0xff]
        %v2763 = vld [vmem:[#allocation2 + $0x48] sm:$0xff]
        %v2764 = vld [vmem:[#allocation2 + $0x50] sm:$0xff]
        %v2765 = vld [vmem:[#allocation2 + $0x58] sm:$0xff]
        %v2766 = vld [vmem:[#allocation2 + $0x60] sm:$0xff]
        %v2767 = vld [vmem:[#allocation2 + $0x68] sm:$0xff]
        %v2768 = vld [vmem:[#allocation2 + $0x70] sm:$0xff]
        %v2769 = vld [vmem:[#allocation2 + $0x78] sm:$0xff]
        %v2770 = vld [vmem:[#allocation2 + $0x80] sm:$0xff]
        %v2771 = vld [vmem:[#allocation2 + $0x88] sm:$0xff]
        %v2772 = vld [vmem:[%s4] sm:$0xff]
        %2774 = vset.pattern.permute.xlu0 0
        %2775 = vperm.xlu0 %2774, %v2772
        %v2776 = vpop.permute.xlu0 %2775
        %v2779 = vsel %vm457, %v2753, 0
        %2781 = vmatprep.subr.mxu0 0.0
        %2782 = vmatpush1.msra.mxu0 %v2754
        %2783 = vmatprep.subr.mxu0 0.0
        %2784 = vmatpush1.msra.mxu0 %v2755
        %2785 = vmatprep.subr.mxu0 0.0
        %2786 = vmatpush1.msra.mxu0 %v2756
        %2787 = vmatprep.subr.mxu0 0.0
        %2788 = vmatpush1.msra.mxu0 %v2757
        %2789 = vmatprep.subr.mxu0 0.0
        %2790 = vmatpush1.msra.mxu0 %v2758
        %2791 = vmatprep.subr.mxu0 0.0
        %2792 = vmatpush1.msra.mxu0 %v2759
        %2793 = vmatprep.subr.mxu0 0.0
        %2794 = vmatpush1.msra.mxu0 %v2760
        %2795 = vmatprep.subr.mxu0 0.0
        %2796 = vmatpush1.msra.mxu0 %v2761
        %2797 = vmatprep.subr.mxu0 0.0
        %2798 = vmatpush1.msra.mxu0 %v2762
        %2799 = vmatprep.subr.mxu0 0.0
        %2800 = vmatpush1.msra.mxu0 %v2763
        %2801 = vmatprep.subr.mxu0 0.0
        %2802 = vmatpush1.msra.mxu0 %v2764
        %2803 = vmatprep.subr.mxu0 0.0
        %2804 = vmatpush1.msra.mxu0 %v2765
        %2805 = vmatprep.subr.mxu0 0.0
        %2806 = vmatpush1.msra.mxu0 %v2766
        %2807 = vmatprep.subr.mxu0 0.0
        %2808 = vmatpush1.msra.mxu0 %v2767
        %2809 = vmatprep.subr.mxu0 0.0
        %2810 = vmatpush1.msra.mxu0 %v2768
        %2811 = vmatprep.subr.mxu0 0.0
        %2812 = vmatpush1.msra.mxu0 %v2769
        %2813 = vmatprep.subr.mxu0 0.0
        %2814 = vmatpush1.msra.mxu0 %v2770
        %2815 = vmatprep.subr.mxu0 0.0
        %2816 = vmatpush1.msra.mxu0 %v2771
        %2817 = vmatprep.subr.mxu0 0.0
        %2818 = vmatpush1.msra.mxu0 0.0
        %2819 = vmatprep.subr.mxu0 0.0
        %2820 = vmatpush1.msra.mxu0 0.0
        %2821 = vmatprep.subr.mxu0 0.0
        %2822 = vmatpush1.msra.mxu0 0.0
        %2823 = vmatprep.subr.mxu0 0.0
        %2824 = vmatpush1.msra.mxu0 0.0
        %2825 = vmatprep.subr.mxu0 0.0
        %2826 = vmatpush1.msra.mxu0 0.0
        %2827 = vmatprep.subr.mxu0 0.0
        %2828 = vmatpush1.msra.mxu0 0.0
        %2829 = vmatprep.subr.mxu0 0.0
        %2830 = vmatpush1.msra.mxu0 0.0
        %2831 = vmatprep.subr.mxu0 0.0
        %2832 = vmatpush1.msra.mxu0 0.0
        %2833 = vmatprep.subr.mxu0 0.0
        %2834 = vmatpush1.msra.mxu0 0.0
        %2835 = vmatprep.subr.mxu0 0.0
        %2836 = vmatpush1.msra.mxu0 0.0
        %2837 = vmatprep.subr.mxu0 0.0
        %2838 = vmatpush1.msra.mxu0 0.0
        %2839 = vmatprep.subr.mxu0 0.0
        %2840 = vmatpush1.msra.mxu0 0.0
        %2841 = vmatprep.subr.mxu0 0.0
        %2842 = vmatpush1.msra.mxu0 0.0
        %2843 = vmatprep.subr.mxu0 0.0
        %2844 = vmatpush1.msra.mxu0 0.0
        %2845 = vmatprep.mubr.f32.mxu0 %v2779
        %2846 = vmatmul.mubr.f32.gmra.mrb[0].mxu0 %v2752
        %v2847 = vpop.f32.mrb[0].mxu0
        %v2848 = vadd.f32 %v2776, %v2847
        %v2849 = vpop.f32.mrb[0].mxu0
        %2850 = vdwg.mxu0
        %2851 = vst [vmem:[%s267] sm:$0xff] %v2848
        %s2852 = sand.u32 %s163, 1
        %s2853 = scalar_lea.sflag [#allocation4], %s2852
        %s2854 = sand.u32 %s163, 1
        %s2855 = smul.addr %s2854, 8
        %s2856 = scalar_lea.vmem [#allocation3], %s2855
        // Predicated region
        $region41: #{tpu_custom_call.1} parent=39 // pred_check
          %p2857 = pneg %p173
        $region42: #{tpu_custom_call.1} parent=39 // pred_check_branch
          %2859 = sbr.rel (%p2857) target = $region44
        $region43: #{tpu_custom_call.1} parent=39 // pred_region
          %s2861 = ssub.s32 128, 128
          %2862 = vsyncadd %s2853, %s2861
          %s2863 = smul.addr %s23, 2
          %s2864 = sadd.s32 %s24, %s2863
          %s2865 = smul.addr %s2864, 128
          %s2866 = scalar_lea.hbm %s5, %s2865
          %s2868 = sshll.u32 %s2856, 4
          %s2869 = int_to_ptr.vmem [resolvable:$true] %s2868
          %2871 = dma.vmem_to_hbm [thread:$0]  %s2869, 128, %s2866, %s2853
        $region44: #{tpu_custom_call.1} parent=39 // pred_fallthru
          _
      $region40: #{tpu_custom_call.1} parent=5 // pred_fallthru
        _
      %p2872 = scmp.le.s32.totalorder 2, %s14
      // Predicated region
      $region45: #{tpu_custom_call.1} parent=5 // pred_check
        %p2873 = pneg %p2872
      $region46: #{tpu_custom_call.1} parent=5 // pred_check_branch
        %2875 = sbr.rel (%p2873) target = $region48
      $region47: #{tpu_custom_call.1} parent=5 // pred_region
        %s2876 = ssub.s32 %s14, 2
        // Predicated region
        $region49: #{tpu_custom_call.1} parent=47 // pred_check
          %p2877 = pneg %p179
        $region50: #{tpu_custom_call.1} parent=47 // pred_check_branch
          %2879 = sbr.rel (%p2877) target = $region52
        $region51: #{tpu_custom_call.1} parent=47 // pred_region
          %s2880 = sand.u32 %s164, 1
          %s2881 = scalar_lea.sflag [#allocation4], %s2880
          %s2882 = sand.u32 %s164, 1
          %s2883 = smul.addr %s2882, 8
          %s2884 = scalar_lea.vmem [#allocation3], %s2883
          %2885 = dma.done %s2881, 128
        $region52: #{tpu_custom_call.1} parent=47 // pred_fallthru
          _
      $region48: #{tpu_custom_call.1} parent=5 // pred_fallthru
        _
    $region6: #{tpu_custom_call.1} parent=1 // loop_footer
      %s18 = sadd.s32 1, %s14
    $region7: #{tpu_custom_call.1} parent=1 // loop_footer_branch
      %13 = sbr.rel target = $region3
    $region8: #{tpu_custom_call.1} parent=1 // loop_exit
      _
    %2886 = vsyncpa [#allocation4], 1
    %s2887 = scalar_lea.sflag [#allocation4], 1
    %2888 = vsyncpa %s2887, 1

</llo_original>
